<compile_context>
chip_gen: v6e
topology: v6e:2x2x1
jax: 0.10.0
libtpu: 0.0.40
codegen_flags: <defaults>
</compile_context>

<pallas_src>
import functools

import numpy as np

import jax
import jax.numpy as jnp
from jax.experimental import pallas as pl
from jax.experimental.pallas import tpu as pltpu


# ----------------------------------------------------------------------------
# Host-side constant builders (trace-time numpy -> baked-in constants)
# ----------------------------------------------------------------------------

@functools.lru_cache(maxsize=None)
def _conv_mask(H, W):
    """(9, H*W) validity mask per 3x3 tap: 1.0 where the shifted source pixel exists."""
    m = np.zeros((9, H * W), np.float32)
    for t in range(9):
        dy, dx = t // 3 - 1, t % 3 - 1
        for h in range(H):
            for w in range(W):
                if 0 <= h + dy < H and 0 <= w + dx < W:
                    m[t, h * W + w] = 1.0
    return m


@functools.lru_cache(maxsize=None)
def _pool_sel(H, W):
    """(H*W, H*W/4) 0/1 selection matrix: picks the top-left corner of each 2x2 window."""
    H2, W2 = H // 2, W // 2
    s = np.zeros((H * W, H2 * W2), np.float32)
    for h2 in range(H2):
        for w2 in range(W2):
            s[(2 * h2) * W + 2 * w2, h2 * W2 + w2] = 1.0
    return s


@functools.lru_cache(maxsize=None)
def _up_exp(H, W):
    """(H*W, 4*H*W) 0/1 expansion matrix: nearest-neighbour 2x upsample."""
    e = np.zeros((H * W, 4 * H * W), np.float32)
    for ho in range(2 * H):
        for wo in range(2 * W):
            e[(ho // 2) * W + wo // 2, ho * (2 * W) + wo] = 1.0
    return e


# ----------------------------------------------------------------------------
# Fused Pallas kernel (one grid step = one batch element, fully VMEM-resident)
# ----------------------------------------------------------------------------

def _nnet_kernel(x_ref,
                 w1a_ref, b1a_ref, w1b_ref, b1b_ref,
                 w2a_ref, b2a_ref, w2b_ref, b2b_ref,
                 wd2_ref, bd2_ref, wd1_ref, bd1_ref,
                 wh_ref, bh_ref,
                 m16_ref, m8_ref, sel1_ref, sel2_ref, exp2_ref, exp1_ref,
                 o_ref, *, width):
    """All tensors are channel-major (C, H*W); H*W sits on the lane axis."""

    def conv3x3(x, w_ref, b_ref, m_ref, w_cur):
        # x: (Cin, P). Build (9*Cin, P) patch matrix with lane rolls + edge masks, then
        # one matmul with contraction 9*Cin (single MXU push instead of 9 shallow ones).
        m = m_ref[...]
        taps = []
        for t in range(9):
            dy, dx = t // 3 - 1, t % 3 - 1
            off = dy * w_cur + dx
            s = x if off == 0 else jnp.roll(x, -off, axis=1)
            if t != 4:                      # centre tap is always valid
                s = s * m[t:t + 1, :]
            taps.append(s)
        patch = jnp.concatenate(taps, axis=0)                  # (9*Cin, P)
        y = jnp.dot(w_ref[...], patch,
                    preferred_element_type=jnp.float32)        # (Cout, P) lane-dense
        return jnp.maximum(y + b_ref[...], 0.0)

    def maxpool2(x, sel_ref, w_cur):
        # max over 2x2 windows via two lane-rolls, then exact 0/1-matmul compaction
        # (only top-left-corner columns are selected, so no wrap contamination).
        a = jnp.maximum(x, jnp.roll(x, -1, axis=1))
        a = jnp.maximum(a, jnp.roll(a, -w_cur, axis=1))
        return jnp.dot(a, sel_ref[...], preferred_element_type=jnp.float32)

    def upsample2(x, exp_ref):
        # exact nearest-neighbour 2x upsample as a 0/1-matmul.
        return jnp.dot(x, exp_ref[...], preferred_element_type=jnp.float32)

    w0, w1 = width, width // 2

    x = x_ref[0]                                         # (4, 256)

    # ----- FREDv2Encoder (returns bottleneck + residuals) -----
    h = conv3x3(x, w1a_ref, b1a_ref, m16_ref, w0)        # (16, 256)
    r1 = conv3x3(h, w1b_ref, b1b_ref, m16_ref, w0)       # residual @ 16x16
    h = maxpool2(r1, sel1_ref, w0)                       # (16, 64)
    h = conv3x3(h, w2a_ref, b2a_ref, m8_ref, w1)         # (32, 64)
    r2 = conv3x3(h, w2b_ref, b2b_ref, m8_ref, w1)        # residual @ 8x8
    h = maxpool2(r2, sel2_ref, w1)                       # bottleneck (32, 16)

    # ----- FREDv2Decoder (use_residuals=True, out_channels=5) -----
    h = upsample2(h, exp2_ref)                           # (32, 64)
    h = jnp.concatenate([h, r2], axis=0)                 # (64, 64) sublane concat
    h = conv3x3(h, wd2_ref, bd2_ref, m8_ref, w1)         # (32, 64)
    h = upsample2(h, exp1_ref)                           # (32, 256)
    h = jnp.concatenate([h, r1], axis=0)                 # (48, 256)
    h = conv3x3(h, wd1_ref, bd1_ref, m16_ref, w0)        # (16, 256)

    y = jnp.dot(wh_ref[...], h,
                preferred_element_type=jnp.float32) + bh_ref[...]   # 1x1 head -> (5, 256)
    o_ref[0] = y.astype(o_ref.dtype)


# ----------------------------------------------------------------------------
# Parameters (deterministic synthetic init; raw HWIO layout kept for the reference)
# ----------------------------------------------------------------------------

def _conv_init(key, k, cin, cout):
    wkey, bkey = jax.random.split(key)
    scale = 1.0 / float(np.sqrt(k * k * cin))
    w = jax.random.normal(wkey, (k, k, cin, cout), jnp.float32) * scale
    b = jax.random.normal(bkey, (cout,), jnp.float32) * 0.1
    return w, b


def init_params(key, in_channels=4, out_channels=5):
    keys = jax.random.split(key, 7)
    p = {}
    p["enc1a_w"], p["enc1a_b"] = _conv_init(keys[0], 3, in_channels, 16)
    p["enc1b_w"], p["enc1b_b"] = _conv_init(keys[1], 3, 16, 16)
    p["enc2a_w"], p["enc2a_b"] = _conv_init(keys[2], 3, 16, 32)
    p["enc2b_w"], p["enc2b_b"] = _conv_init(keys[3], 3, 32, 32)
    p["dec2_w"], p["dec2_b"] = _conv_init(keys[4], 3, 32 + 32, 32)
    p["dec1_w"], p["dec1_b"] = _conv_init(keys[5], 3, 32 + 16, 16)
    p["head_w"], p["head_b"] = _conv_init(keys[6], 1, 16, out_channels)
    return p


# ----------------------------------------------------------------------------
# Forward pass: one fused pallas_call
# ----------------------------------------------------------------------------

@jax.jit
def nnet_forward(params, x_nchw):
    B, cin, H, W = x_nchw.shape
    P0 = H * W
    x = x_nchw.reshape(B, cin, P0)          # NCHW is already channel-major; free reshape

    def wmat(w):  # (K,K,Cin,Cout) -> (Cout, K*K*Cin), tap-major rows matching the kernel
        k, _, ci, co = w.shape
        return w.reshape(k * k * ci, co).T

    def bcol(b):
        return b.reshape(-1, 1)

    m16 = jnp.asarray(_conv_mask(H, W))
    m8 = jnp.asarray(_conv_mask(H // 2, W // 2))
    sel1 = jnp.asarray(_pool_sel(H, W))
    sel2 = jnp.asarray(_pool_sel(H // 2, W // 2))
    exp2 = jnp.asarray(_up_exp(H // 4, W // 4))
    exp1 = jnp.asarray(_up_exp(H // 2, W // 2))

    args = [
        x,
        wmat(params["enc1a_w"]), bcol(params["enc1a_b"]),
        wmat(params["enc1b_w"]), bcol(params["enc1b_b"]),
        wmat(params["enc2a_w"]), bcol(params["enc2a_b"]),
        wmat(params["enc2b_w"]), bcol(params["enc2b_b"]),
        wmat(params["dec2_w"]), bcol(params["dec2_b"]),
        wmat(params["dec1_w"]), bcol(params["dec1_b"]),
        wmat(params["head_w"]), bcol(params["head_b"]),
        m16, m8, sel1, sel2, exp2, exp1,
    ]

    # Batched input iterates over the grid; all weights / constant matrices use a
    # constant index_map so they are fetched into VMEM once and reused across steps.
    in_specs = [pl.BlockSpec((1, cin, P0), lambda bi: (bi, 0, 0))]
    in_specs += [pl.BlockSpec(a.shape, lambda bi: (0, 0)) for a in args[1:]]

    out_ch = params["head_w"].shape[-1]
    out = pl.pallas_call(
        functools.partial(_nnet_kernel, width=W),
        out_shape=jax.ShapeDtypeStruct((B, out_ch, P0), x.dtype),
        grid_spec=pltpu.PrefetchScalarGridSpec(
            num_scalar_prefetch=0,
            grid=(B,),
            in_specs=in_specs,
            out_specs=pl.BlockSpec((1, out_ch, P0), lambda bi: (bi, 0, 0)),
        ),
        compiler_params=pltpu.CompilerParams(dimension_semantics=("parallel",)),
    )(*args)

    return out.reshape(B, out_ch, H, W)     # already NCHW


# ----------------------------------------------------------------------------
# Pure-JAX reference (for correctness check only)
# ----------------------------------------------------------------------------

def nnet_reference(params, x):
    def conv(h, w, b, relu):
        y = jax.lax.conv_general_dilated(
            h, w, (1, 1), "SAME",
            dimension_numbers=("NCHW", "HWIO", "NCHW"),
            precision=jax.lax.Precision.HIGHEST)
        y = y + b[None, :, None, None]
        return jnp.maximum(y, 0.0) if relu else y

    def pool(h):
        return jax.lax.reduce_window(h, -jnp.inf, jax.lax.max,
                                     (1, 1, 2, 2), (1, 1, 2, 2), "VALID")

    def up(h):
        return jnp.repeat(jnp.repeat(h, 2, axis=2), 2, axis=3)

    h = conv(x, params["enc1a_w"], params["enc1a_b"], True)
    r1 = conv(h, params["enc1b_w"], params["enc1b_b"], True)
    h = pool(r1)
    h = conv(h, params["enc2a_w"], params["enc2a_b"], True)
    r2 = conv(h, params["enc2b_w"], params["enc2b_b"], True)
    h = pool(r2)
    h = up(h)
    h = jnp.concatenate([h, r2], axis=1)
    h = conv(h, params["dec2_w"], params["dec2_b"], True)
    h = up(h)
    h = jnp.concatenate([h, r1], axis=1)
    h = conv(h, params["dec1_w"], params["dec1_b"], True)
    return conv(h, params["head_w"], params["head_b"], False)


if __name__ == "__main__":
    key = jax.random.PRNGKey(0)
    xkey, pkey = jax.random.split(key)
    # batch=2, channels=4, spatial=16x16 (NCHW, matching the PyTorch convention)
    x = jax.random.normal(xkey, (2, 4, 16, 16), jnp.float32)
    params = init_params(pkey)

    out = nnet_forward(params, x)
    out = jax.block_until_ready(out)

    assert out.shape == (2, 5, 16, 16), out.shape
    assert out.dtype == jnp.float32
    assert bool(jnp.all(jnp.isfinite(out)))

    ref = jax.block_until_ready(jax.jit(nnet_reference)(params, x))
    err = float(jnp.max(jnp.abs(out - ref)))
    assert err < 2e-3, f"mismatch vs pure-JAX reference: max abs err = {err}"

    print("KERNEL_OK")
</pallas_src>

<mosaic_0001>
module attributes {stable_mosaic.version = 11 : i64} {
  func.func @_nnet_kernel(%arg0: i32, %arg1: memref<1x4x256xf32, #tpu.memory_space<vmem>>, %arg2: memref<16x36xf32, #tpu.memory_space<vmem>>, %arg3: memref<16x1xf32, #tpu.memory_space<vmem>>, %arg4: memref<16x144xf32, #tpu.memory_space<vmem>>, %arg5: memref<16x1xf32, #tpu.memory_space<vmem>>, %arg6: memref<32x144xf32, #tpu.memory_space<vmem>>, %arg7: memref<32x1xf32, #tpu.memory_space<vmem>>, %arg8: memref<32x288xf32, #tpu.memory_space<vmem>>, %arg9: memref<32x1xf32, #tpu.memory_space<vmem>>, %arg10: memref<32x576xf32, #tpu.memory_space<vmem>>, %arg11: memref<32x1xf32, #tpu.memory_space<vmem>>, %arg12: memref<16x432xf32, #tpu.memory_space<vmem>>, %arg13: memref<16x1xf32, #tpu.memory_space<vmem>>, %arg14: memref<5x16xf32, #tpu.memory_space<vmem>>, %arg15: memref<5x1xf32, #tpu.memory_space<vmem>>, %arg16: memref<9x256xf32, #tpu.memory_space<vmem>>, %arg17: memref<9x64xf32, #tpu.memory_space<vmem>>, %arg18: memref<256x64xf32, #tpu.memory_space<vmem>>, %arg19: memref<64x16xf32, #tpu.memory_space<vmem>>, %arg20: memref<16x64xf32, #tpu.memory_space<vmem>>, %arg21: memref<64x256xf32, #tpu.memory_space<vmem>>, %arg22: memref<1x5x256xf32, #tpu.memory_space<vmem>>) attributes {dimension_semantics = [#tpu.dimension_semantics<parallel>], iteration_bounds = array<i64: 2>, scalar_prefetch = 0 : i64, scratch_operands = 0 : i64, tpu.core_type = #tpu.core_type<tc>, window_params = [{transform_indices = @transform_0, window_bounds = array<i64: 1, 4, 256>}, {pipeline_mode = #tpu.pipeline_mode<synchronous>, transform_indices = @transform_1, window_bounds = array<i64: 16, 36>}, {pipeline_mode = #tpu.pipeline_mode<synchronous>, transform_indices = @transform_2, window_bounds = array<i64: 16, 1>}, {pipeline_mode = #tpu.pipeline_mode<synchronous>, transform_indices = @transform_3, window_bounds = array<i64: 16, 144>}, {pipeline_mode = #tpu.pipeline_mode<synchronous>, transform_indices = @transform_4, window_bounds = array<i64: 16, 1>}, {pipeline_mode = #tpu.pipeline_mode<synchronous>, transform_indices = @transform_5, window_bounds = array<i64: 32, 144>}, {pipeline_mode = #tpu.pipeline_mode<synchronous>, transform_indices = @transform_6, window_bounds = array<i64: 32, 1>}, {pipeline_mode = #tpu.pipeline_mode<synchronous>, transform_indices = @transform_7, window_bounds = array<i64: 32, 288>}, {pipeline_mode = #tpu.pipeline_mode<synchronous>, transform_indices = @transform_8, window_bounds = array<i64: 32, 1>}, {pipeline_mode = #tpu.pipeline_mode<synchronous>, transform_indices = @transform_9, window_bounds = array<i64: 32, 576>}, {pipeline_mode = #tpu.pipeline_mode<synchronous>, transform_indices = @transform_10, window_bounds = array<i64: 32, 1>}, {pipeline_mode = #tpu.pipeline_mode<synchronous>, transform_indices = @transform_11, window_bounds = array<i64: 16, 432>}, {pipeline_mode = #tpu.pipeline_mode<synchronous>, transform_indices = @transform_12, window_bounds = array<i64: 16, 1>}, {pipeline_mode = #tpu.pipeline_mode<synchronous>, transform_indices = @transform_13, window_bounds = array<i64: 5, 16>}, {pipeline_mode = #tpu.pipeline_mode<synchronous>, transform_indices = @transform_14, window_bounds = array<i64: 5, 1>}, {pipeline_mode = #tpu.pipeline_mode<synchronous>, transform_indices = @transform_15, window_bounds = array<i64: 9, 256>}, {pipeline_mode = #tpu.pipeline_mode<synchronous>, transform_indices = @transform_16, window_bounds = array<i64: 9, 64>}, {pipeline_mode = #tpu.pipeline_mode<synchronous>, transform_indices = @transform_17, window_bounds = array<i64: 256, 64>}, {pipeline_mode = #tpu.pipeline_mode<synchronous>, transform_indices = @transform_18, window_bounds = array<i64: 64, 16>}, {pipeline_mode = #tpu.pipeline_mode<synchronous>, transform_indices = @transform_19, window_bounds = array<i64: 16, 64>}, {pipeline_mode = #tpu.pipeline_mode<synchronous>, transform_indices = @transform_20, window_bounds = array<i64: 64, 256>}, {transform_indices = @transform_21, window_bounds = array<i64: 1, 5, 256>}]} {
    %c0 = arith.constant 0 : index
    %c0_0 = arith.constant 0 : index
    %c0_1 = arith.constant 0 : index
    %0 = vector.load %arg1[%c0, %c0_0, %c0_1] : memref<1x4x256xf32, #tpu.memory_space<vmem>>, vector<1x4x256xf32>
    %1 = vector.shape_cast %0 : vector<1x4x256xf32> to vector<4x256xf32>
    %c0_2 = arith.constant 0 : index
    %c0_3 = arith.constant 0 : index
    %2 = vector.load %arg16[%c0_2, %c0_3] : memref<9x256xf32, #tpu.memory_space<vmem>>, vector<9x256xf32>
    %3 = vector.extract_strided_slice %1 {offsets = [0, 239], sizes = [4, 17], strides = [1, 1]} : vector<4x256xf32> to vector<4x17xf32>
    %4 = vector.extract_strided_slice %1 {offsets = [0, 0], sizes = [4, 239], strides = [1, 1]} : vector<4x256xf32> to vector<4x239xf32>
    %5 = tpu.concatenate %3, %4 in 1 : vector<4x17xf32>, vector<4x239xf32> -> vector<4x256xf32>
    %6 = vector.extract_strided_slice %2 {offsets = [0, 0], sizes = [1, 256], strides = [1, 1]} : vector<9x256xf32> to vector<1x256xf32>
    %7 = vector.broadcast %6 : vector<1x256xf32> to vector<4x256xf32>
    %8 = arith.mulf %5, %7 : vector<4x256xf32>
    %9 = vector.extract_strided_slice %1 {offsets = [0, 240], sizes = [4, 16], strides = [1, 1]} : vector<4x256xf32> to vector<4x16xf32>
    %10 = vector.extract_strided_slice %1 {offsets = [0, 0], sizes = [4, 240], strides = [1, 1]} : vector<4x256xf32> to vector<4x240xf32>
    %11 = tpu.concatenate %9, %10 in 1 : vector<4x16xf32>, vector<4x240xf32> -> vector<4x256xf32>
    %12 = vector.extract_strided_slice %2 {offsets = [1, 0], sizes = [1, 256], strides = [1, 1]} : vector<9x256xf32> to vector<1x256xf32>
    %13 = vector.broadcast %12 : vector<1x256xf32> to vector<4x256xf32>
    %14 = arith.mulf %11, %13 : vector<4x256xf32>
    %15 = vector.extract_strided_slice %1 {offsets = [0, 241], sizes = [4, 15], strides = [1, 1]} : vector<4x256xf32> to vector<4x15xf32>
    %16 = vector.extract_strided_slice %1 {offsets = [0, 0], sizes = [4, 241], strides = [1, 1]} : vector<4x256xf32> to vector<4x241xf32>
    %17 = tpu.concatenate %15, %16 in 1 : vector<4x15xf32>, vector<4x241xf32> -> vector<4x256xf32>
    %18 = vector.extract_strided_slice %2 {offsets = [2, 0], sizes = [1, 256], strides = [1, 1]} : vector<9x256xf32> to vector<1x256xf32>
    %19 = vector.broadcast %18 : vector<1x256xf32> to vector<4x256xf32>
    %20 = arith.mulf %17, %19 : vector<4x256xf32>
    %21 = vector.extract_strided_slice %1 {offsets = [0, 255], sizes = [4, 1], strides = [1, 1]} : vector<4x256xf32> to vector<4x1xf32>
    %22 = vector.extract_strided_slice %1 {offsets = [0, 0], sizes = [4, 255], strides = [1, 1]} : vector<4x256xf32> to vector<4x255xf32>
    %23 = tpu.concatenate %21, %22 in 1 : vector<4x1xf32>, vector<4x255xf32> -> vector<4x256xf32>
    %24 = vector.extract_strided_slice %2 {offsets = [3, 0], sizes = [1, 256], strides = [1, 1]} : vector<9x256xf32> to vector<1x256xf32>
    %25 = vector.broadcast %24 : vector<1x256xf32> to vector<4x256xf32>
    %26 = arith.mulf %23, %25 : vector<4x256xf32>
    %27 = vector.extract_strided_slice %1 {offsets = [0, 1], sizes = [4, 255], strides = [1, 1]} : vector<4x256xf32> to vector<4x255xf32>
    %28 = vector.extract_strided_slice %1 {offsets = [0, 0], sizes = [4, 1], strides = [1, 1]} : vector<4x256xf32> to vector<4x1xf32>
    %29 = tpu.concatenate %27, %28 in 1 : vector<4x255xf32>, vector<4x1xf32> -> vector<4x256xf32>
    %30 = vector.extract_strided_slice %2 {offsets = [5, 0], sizes = [1, 256], strides = [1, 1]} : vector<9x256xf32> to vector<1x256xf32>
    %31 = vector.broadcast %30 : vector<1x256xf32> to vector<4x256xf32>
    %32 = arith.mulf %29, %31 : vector<4x256xf32>
    %33 = vector.extract_strided_slice %1 {offsets = [0, 15], sizes = [4, 241], strides = [1, 1]} : vector<4x256xf32> to vector<4x241xf32>
    %34 = vector.extract_strided_slice %1 {offsets = [0, 0], sizes = [4, 15], strides = [1, 1]} : vector<4x256xf32> to vector<4x15xf32>
    %35 = tpu.concatenate %33, %34 in 1 : vector<4x241xf32>, vector<4x15xf32> -> vector<4x256xf32>
    %36 = vector.extract_strided_slice %2 {offsets = [6, 0], sizes = [1, 256], strides = [1, 1]} : vector<9x256xf32> to vector<1x256xf32>
    %37 = vector.broadcast %36 : vector<1x256xf32> to vector<4x256xf32>
    %38 = arith.mulf %35, %37 : vector<4x256xf32>
    %39 = vector.extract_strided_slice %1 {offsets = [0, 16], sizes = [4, 240], strides = [1, 1]} : vector<4x256xf32> to vector<4x240xf32>
    %40 = vector.extract_strided_slice %1 {offsets = [0, 0], sizes = [4, 16], strides = [1, 1]} : vector<4x256xf32> to vector<4x16xf32>
    %41 = tpu.concatenate %39, %40 in 1 : vector<4x240xf32>, vector<4x16xf32> -> vector<4x256xf32>
    %42 = vector.extract_strided_slice %2 {offsets = [7, 0], sizes = [1, 256], strides = [1, 1]} : vector<9x256xf32> to vector<1x256xf32>
    %43 = vector.broadcast %42 : vector<1x256xf32> to vector<4x256xf32>
    %44 = arith.mulf %41, %43 : vector<4x256xf32>
    %45 = vector.extract_strided_slice %1 {offsets = [0, 17], sizes = [4, 239], strides = [1, 1]} : vector<4x256xf32> to vector<4x239xf32>
    %46 = vector.extract_strided_slice %1 {offsets = [0, 0], sizes = [4, 17], strides = [1, 1]} : vector<4x256xf32> to vector<4x17xf32>
    %47 = tpu.concatenate %45, %46 in 1 : vector<4x239xf32>, vector<4x17xf32> -> vector<4x256xf32>
    %48 = vector.extract_strided_slice %2 {offsets = [8, 0], sizes = [1, 256], strides = [1, 1]} : vector<9x256xf32> to vector<1x256xf32>
    %49 = vector.broadcast %48 : vector<1x256xf32> to vector<4x256xf32>
    %50 = arith.mulf %47, %49 : vector<4x256xf32>
    %51 = tpu.concatenate %8, %14, %20, %26, %1, %32, %38, %44, %50 in 0 : vector<4x256xf32>, vector<4x256xf32>, vector<4x256xf32>, vector<4x256xf32>, vector<4x256xf32>, vector<4x256xf32>, vector<4x256xf32>, vector<4x256xf32>, vector<4x256xf32> -> vector<36x256xf32>
    %c0_4 = arith.constant 0 : index
    %c0_5 = arith.constant 0 : index
    %52 = vector.load %arg2[%c0_4, %c0_5] : memref<16x36xf32, #tpu.memory_space<vmem>>, vector<16x36xf32>
    %cst = arith.constant dense<0.000000e+00> : vector<16x256xf32>
    %53 = tpu.matmul %52, %51, %cst {dimension_numbers = #tpu.dot_dimension_numbers<[1], [0], [0], [1], [0, 0, 1, 1], [], []>} : vector<16x36xf32>, vector<36x256xf32>, vector<16x256xf32> -> vector<16x256xf32>
    %c0_6 = arith.constant 0 : index
    %c0_7 = arith.constant 0 : index
    %54 = vector.load %arg3[%c0_6, %c0_7] : memref<16x1xf32, #tpu.memory_space<vmem>>, vector<16x1xf32>
    %55 = vector.broadcast %54 : vector<16x1xf32> to vector<16x256xf32>
    %56 = arith.addf %53, %55 : vector<16x256xf32>
    %cst_8 = arith.constant 0.000000e+00 : f32
    %57 = vector.broadcast %cst_8 : f32 to vector<16x256xf32>
    %58 = arith.maximumf %56, %57 : vector<16x256xf32>
    %c0_9 = arith.constant 0 : index
    %c0_10 = arith.constant 0 : index
    %59 = vector.load %arg16[%c0_9, %c0_10] : memref<9x256xf32, #tpu.memory_space<vmem>>, vector<9x256xf32>
    %60 = vector.extract_strided_slice %58 {offsets = [0, 239], sizes = [16, 17], strides = [1, 1]} : vector<16x256xf32> to vector<16x17xf32>
    %61 = vector.extract_strided_slice %58 {offsets = [0, 0], sizes = [16, 239], strides = [1, 1]} : vector<16x256xf32> to vector<16x239xf32>
    %62 = tpu.concatenate %60, %61 in 1 : vector<16x17xf32>, vector<16x239xf32> -> vector<16x256xf32>
    %63 = vector.extract_strided_slice %59 {offsets = [0, 0], sizes = [1, 256], strides = [1, 1]} : vector<9x256xf32> to vector<1x256xf32>
    %64 = vector.broadcast %63 : vector<1x256xf32> to vector<16x256xf32>
    %65 = arith.mulf %62, %64 : vector<16x256xf32>
    %66 = vector.extract_strided_slice %58 {offsets = [0, 240], sizes = [16, 16], strides = [1, 1]} : vector<16x256xf32> to vector<16x16xf32>
    %67 = vector.extract_strided_slice %58 {offsets = [0, 0], sizes = [16, 240], strides = [1, 1]} : vector<16x256xf32> to vector<16x240xf32>
    %68 = tpu.concatenate %66, %67 in 1 : vector<16x16xf32>, vector<16x240xf32> -> vector<16x256xf32>
    %69 = vector.extract_strided_slice %59 {offsets = [1, 0], sizes = [1, 256], strides = [1, 1]} : vector<9x256xf32> to vector<1x256xf32>
    %70 = vector.broadcast %69 : vector<1x256xf32> to vector<16x256xf32>
    %71 = arith.mulf %68, %70 : vector<16x256xf32>
    %72 = vector.extract_strided_slice %58 {offsets = [0, 241], sizes = [16, 15], strides = [1, 1]} : vector<16x256xf32> to vector<16x15xf32>
    %73 = vector.extract_strided_slice %58 {offsets = [0, 0], sizes = [16, 241], strides = [1, 1]} : vector<16x256xf32> to vector<16x241xf32>
    %74 = tpu.concatenate %72, %73 in 1 : vector<16x15xf32>, vector<16x241xf32> -> vector<16x256xf32>
    %75 = vector.extract_strided_slice %59 {offsets = [2, 0], sizes = [1, 256], strides = [1, 1]} : vector<9x256xf32> to vector<1x256xf32>
    %76 = vector.broadcast %75 : vector<1x256xf32> to vector<16x256xf32>
    %77 = arith.mulf %74, %76 : vector<16x256xf32>
    %78 = vector.extract_strided_slice %58 {offsets = [0, 255], sizes = [16, 1], strides = [1, 1]} : vector<16x256xf32> to vector<16x1xf32>
    %79 = vector.extract_strided_slice %58 {offsets = [0, 0], sizes = [16, 255], strides = [1, 1]} : vector<16x256xf32> to vector<16x255xf32>
    %80 = tpu.concatenate %78, %79 in 1 : vector<16x1xf32>, vector<16x255xf32> -> vector<16x256xf32>
    %81 = vector.extract_strided_slice %59 {offsets = [3, 0], sizes = [1, 256], strides = [1, 1]} : vector<9x256xf32> to vector<1x256xf32>
    %82 = vector.broadcast %81 : vector<1x256xf32> to vector<16x256xf32>
    %83 = arith.mulf %80, %82 : vector<16x256xf32>
    %84 = vector.extract_strided_slice %58 {offsets = [0, 1], sizes = [16, 255], strides = [1, 1]} : vector<16x256xf32> to vector<16x255xf32>
    %85 = vector.extract_strided_slice %58 {offsets = [0, 0], sizes = [16, 1], strides = [1, 1]} : vector<16x256xf32> to vector<16x1xf32>
    %86 = tpu.concatenate %84, %85 in 1 : vector<16x255xf32>, vector<16x1xf32> -> vector<16x256xf32>
    %87 = vector.extract_strided_slice %59 {offsets = [5, 0], sizes = [1, 256], strides = [1, 1]} : vector<9x256xf32> to vector<1x256xf32>
    %88 = vector.broadcast %87 : vector<1x256xf32> to vector<16x256xf32>
    %89 = arith.mulf %86, %88 : vector<16x256xf32>
    %90 = vector.extract_strided_slice %58 {offsets = [0, 15], sizes = [16, 241], strides = [1, 1]} : vector<16x256xf32> to vector<16x241xf32>
    %91 = vector.extract_strided_slice %58 {offsets = [0, 0], sizes = [16, 15], strides = [1, 1]} : vector<16x256xf32> to vector<16x15xf32>
    %92 = tpu.concatenate %90, %91 in 1 : vector<16x241xf32>, vector<16x15xf32> -> vector<16x256xf32>
    %93 = vector.extract_strided_slice %59 {offsets = [6, 0], sizes = [1, 256], strides = [1, 1]} : vector<9x256xf32> to vector<1x256xf32>
    %94 = vector.broadcast %93 : vector<1x256xf32> to vector<16x256xf32>
    %95 = arith.mulf %92, %94 : vector<16x256xf32>
    %96 = vector.extract_strided_slice %58 {offsets = [0, 16], sizes = [16, 240], strides = [1, 1]} : vector<16x256xf32> to vector<16x240xf32>
    %97 = vector.extract_strided_slice %58 {offsets = [0, 0], sizes = [16, 16], strides = [1, 1]} : vector<16x256xf32> to vector<16x16xf32>
    %98 = tpu.concatenate %96, %97 in 1 : vector<16x240xf32>, vector<16x16xf32> -> vector<16x256xf32>
    %99 = vector.extract_strided_slice %59 {offsets = [7, 0], sizes = [1, 256], strides = [1, 1]} : vector<9x256xf32> to vector<1x256xf32>
    %100 = vector.broadcast %99 : vector<1x256xf32> to vector<16x256xf32>
    %101 = arith.mulf %98, %100 : vector<16x256xf32>
    %102 = vector.extract_strided_slice %58 {offsets = [0, 17], sizes = [16, 239], strides = [1, 1]} : vector<16x256xf32> to vector<16x239xf32>
    %103 = vector.extract_strided_slice %58 {offsets = [0, 0], sizes = [16, 17], strides = [1, 1]} : vector<16x256xf32> to vector<16x17xf32>
    %104 = tpu.concatenate %102, %103 in 1 : vector<16x239xf32>, vector<16x17xf32> -> vector<16x256xf32>
    %105 = vector.extract_strided_slice %59 {offsets = [8, 0], sizes = [1, 256], strides = [1, 1]} : vector<9x256xf32> to vector<1x256xf32>
    %106 = vector.broadcast %105 : vector<1x256xf32> to vector<16x256xf32>
    %107 = arith.mulf %104, %106 : vector<16x256xf32>
    %108 = tpu.concatenate %65, %71, %77, %83, %58, %89, %95, %101, %107 in 0 : vector<16x256xf32>, vector<16x256xf32>, vector<16x256xf32>, vector<16x256xf32>, vector<16x256xf32>, vector<16x256xf32>, vector<16x256xf32>, vector<16x256xf32>, vector<16x256xf32> -> vector<144x256xf32>
    %c0_11 = arith.constant 0 : index
    %c0_12 = arith.constant 0 : index
    %109 = vector.load %arg4[%c0_11, %c0_12] : memref<16x144xf32, #tpu.memory_space<vmem>>, vector<16x144xf32>
    %cst_13 = arith.constant dense<0.000000e+00> : vector<16x256xf32>
    %110 = tpu.matmul %109, %108, %cst_13 {dimension_numbers = #tpu.dot_dimension_numbers<[1], [0], [0], [1], [0, 0, 1, 1], [], []>} : vector<16x144xf32>, vector<144x256xf32>, vector<16x256xf32> -> vector<16x256xf32>
    %c0_14 = arith.constant 0 : index
    %c0_15 = arith.constant 0 : index
    %111 = vector.load %arg5[%c0_14, %c0_15] : memref<16x1xf32, #tpu.memory_space<vmem>>, vector<16x1xf32>
    %112 = vector.broadcast %111 : vector<16x1xf32> to vector<16x256xf32>
    %113 = arith.addf %110, %112 : vector<16x256xf32>
    %cst_16 = arith.constant 0.000000e+00 : f32
    %114 = vector.broadcast %cst_16 : f32 to vector<16x256xf32>
    %115 = arith.maximumf %113, %114 : vector<16x256xf32>
    %116 = vector.extract_strided_slice %115 {offsets = [0, 1], sizes = [16, 255], strides = [1, 1]} : vector<16x256xf32> to vector<16x255xf32>
    %117 = vector.extract_strided_slice %115 {offsets = [0, 0], sizes = [16, 1], strides = [1, 1]} : vector<16x256xf32> to vector<16x1xf32>
    %118 = tpu.concatenate %116, %117 in 1 : vector<16x255xf32>, vector<16x1xf32> -> vector<16x256xf32>
    %119 = arith.maximumf %115, %118 : vector<16x256xf32>
    %120 = vector.extract_strided_slice %119 {offsets = [0, 16], sizes = [16, 240], strides = [1, 1]} : vector<16x256xf32> to vector<16x240xf32>
    %121 = vector.extract_strided_slice %119 {offsets = [0, 0], sizes = [16, 16], strides = [1, 1]} : vector<16x256xf32> to vector<16x16xf32>
    %122 = tpu.concatenate %120, %121 in 1 : vector<16x240xf32>, vector<16x16xf32> -> vector<16x256xf32>
    %123 = arith.maximumf %119, %122 : vector<16x256xf32>
    %c0_17 = arith.constant 0 : index
    %c0_18 = arith.constant 0 : index
    %124 = vector.load %arg18[%c0_17, %c0_18] : memref<256x64xf32, #tpu.memory_space<vmem>>, vector<256x64xf32>
    %cst_19 = arith.constant dense<0.000000e+00> : vector<16x64xf32>
    %125 = tpu.matmul %123, %124, %cst_19 {dimension_numbers = #tpu.dot_dimension_numbers<[1], [0], [0], [1], [0, 0, 1, 1], [], []>} : vector<16x256xf32>, vector<256x64xf32>, vector<16x64xf32> -> vector<16x64xf32>
    %c0_20 = arith.constant 0 : index
    %c0_21 = arith.constant 0 : index
    %126 = vector.load %arg17[%c0_20, %c0_21] : memref<9x64xf32, #tpu.memory_space<vmem>>, vector<9x64xf32>
    %127 = vector.extract_strided_slice %125 {offsets = [0, 55], sizes = [16, 9], strides = [1, 1]} : vector<16x64xf32> to vector<16x9xf32>
    %128 = vector.extract_strided_slice %125 {offsets = [0, 0], sizes = [16, 55], strides = [1, 1]} : vector<16x64xf32> to vector<16x55xf32>
    %129 = tpu.concatenate %127, %128 in 1 : vector<16x9xf32>, vector<16x55xf32> -> vector<16x64xf32>
    %130 = vector.extract_strided_slice %126 {offsets = [0, 0], sizes = [1, 64], strides = [1, 1]} : vector<9x64xf32> to vector<1x64xf32>
    %131 = vector.broadcast %130 : vector<1x64xf32> to vector<16x64xf32>
    %132 = arith.mulf %129, %131 : vector<16x64xf32>
    %133 = vector.extract_strided_slice %125 {offsets = [0, 56], sizes = [16, 8], strides = [1, 1]} : vector<16x64xf32> to vector<16x8xf32>
    %134 = vector.extract_strided_slice %125 {offsets = [0, 0], sizes = [16, 56], strides = [1, 1]} : vector<16x64xf32> to vector<16x56xf32>
    %135 = tpu.concatenate %133, %134 in 1 : vector<16x8xf32>, vector<16x56xf32> -> vector<16x64xf32>
    %136 = vector.extract_strided_slice %126 {offsets = [1, 0], sizes = [1, 64], strides = [1, 1]} : vector<9x64xf32> to vector<1x64xf32>
    %137 = vector.broadcast %136 : vector<1x64xf32> to vector<16x64xf32>
    %138 = arith.mulf %135, %137 : vector<16x64xf32>
    %139 = vector.extract_strided_slice %125 {offsets = [0, 57], sizes = [16, 7], strides = [1, 1]} : vector<16x64xf32> to vector<16x7xf32>
    %140 = vector.extract_strided_slice %125 {offsets = [0, 0], sizes = [16, 57], strides = [1, 1]} : vector<16x64xf32> to vector<16x57xf32>
    %141 = tpu.concatenate %139, %140 in 1 : vector<16x7xf32>, vector<16x57xf32> -> vector<16x64xf32>
    %142 = vector.extract_strided_slice %126 {offsets = [2, 0], sizes = [1, 64], strides = [1, 1]} : vector<9x64xf32> to vector<1x64xf32>
    %143 = vector.broadcast %142 : vector<1x64xf32> to vector<16x64xf32>
    %144 = arith.mulf %141, %143 : vector<16x64xf32>
    %145 = vector.extract_strided_slice %125 {offsets = [0, 63], sizes = [16, 1], strides = [1, 1]} : vector<16x64xf32> to vector<16x1xf32>
    %146 = vector.extract_strided_slice %125 {offsets = [0, 0], sizes = [16, 63], strides = [1, 1]} : vector<16x64xf32> to vector<16x63xf32>
    %147 = tpu.concatenate %145, %146 in 1 : vector<16x1xf32>, vector<16x63xf32> -> vector<16x64xf32>
    %148 = vector.extract_strided_slice %126 {offsets = [3, 0], sizes = [1, 64], strides = [1, 1]} : vector<9x64xf32> to vector<1x64xf32>
    %149 = vector.broadcast %148 : vector<1x64xf32> to vector<16x64xf32>
    %150 = arith.mulf %147, %149 : vector<16x64xf32>
    %151 = vector.extract_strided_slice %125 {offsets = [0, 1], sizes = [16, 63], strides = [1, 1]} : vector<16x64xf32> to vector<16x63xf32>
    %152 = vector.extract_strided_slice %125 {offsets = [0, 0], sizes = [16, 1], strides = [1, 1]} : vector<16x64xf32> to vector<16x1xf32>
    %153 = tpu.concatenate %151, %152 in 1 : vector<16x63xf32>, vector<16x1xf32> -> vector<16x64xf32>
    %154 = vector.extract_strided_slice %126 {offsets = [5, 0], sizes = [1, 64], strides = [1, 1]} : vector<9x64xf32> to vector<1x64xf32>
    %155 = vector.broadcast %154 : vector<1x64xf32> to vector<16x64xf32>
    %156 = arith.mulf %153, %155 : vector<16x64xf32>
    %157 = vector.extract_strided_slice %125 {offsets = [0, 7], sizes = [16, 57], strides = [1, 1]} : vector<16x64xf32> to vector<16x57xf32>
    %158 = vector.extract_strided_slice %125 {offsets = [0, 0], sizes = [16, 7], strides = [1, 1]} : vector<16x64xf32> to vector<16x7xf32>
    %159 = tpu.concatenate %157, %158 in 1 : vector<16x57xf32>, vector<16x7xf32> -> vector<16x64xf32>
    %160 = vector.extract_strided_slice %126 {offsets = [6, 0], sizes = [1, 64], strides = [1, 1]} : vector<9x64xf32> to vector<1x64xf32>
    %161 = vector.broadcast %160 : vector<1x64xf32> to vector<16x64xf32>
    %162 = arith.mulf %159, %161 : vector<16x64xf32>
    %163 = vector.extract_strided_slice %125 {offsets = [0, 8], sizes = [16, 56], strides = [1, 1]} : vector<16x64xf32> to vector<16x56xf32>
    %164 = vector.extract_strided_slice %125 {offsets = [0, 0], sizes = [16, 8], strides = [1, 1]} : vector<16x64xf32> to vector<16x8xf32>
    %165 = tpu.concatenate %163, %164 in 1 : vector<16x56xf32>, vector<16x8xf32> -> vector<16x64xf32>
    %166 = vector.extract_strided_slice %126 {offsets = [7, 0], sizes = [1, 64], strides = [1, 1]} : vector<9x64xf32> to vector<1x64xf32>
    %167 = vector.broadcast %166 : vector<1x64xf32> to vector<16x64xf32>
    %168 = arith.mulf %165, %167 : vector<16x64xf32>
    %169 = vector.extract_strided_slice %125 {offsets = [0, 9], sizes = [16, 55], strides = [1, 1]} : vector<16x64xf32> to vector<16x55xf32>
    %170 = vector.extract_strided_slice %125 {offsets = [0, 0], sizes = [16, 9], strides = [1, 1]} : vector<16x64xf32> to vector<16x9xf32>
    %171 = tpu.concatenate %169, %170 in 1 : vector<16x55xf32>, vector<16x9xf32> -> vector<16x64xf32>
    %172 = vector.extract_strided_slice %126 {offsets = [8, 0], sizes = [1, 64], strides = [1, 1]} : vector<9x64xf32> to vector<1x64xf32>
    %173 = vector.broadcast %172 : vector<1x64xf32> to vector<16x64xf32>
    %174 = arith.mulf %171, %173 : vector<16x64xf32>
    %175 = tpu.concatenate %132, %138, %144, %150, %125, %156, %162, %168, %174 in 0 : vector<16x64xf32>, vector<16x64xf32>, vector<16x64xf32>, vector<16x64xf32>, vector<16x64xf32>, vector<16x64xf32>, vector<16x64xf32>, vector<16x64xf32>, vector<16x64xf32> -> vector<144x64xf32>
    %c0_22 = arith.constant 0 : index
    %c0_23 = arith.constant 0 : index
    %176 = vector.load %arg6[%c0_22, %c0_23] : memref<32x144xf32, #tpu.memory_space<vmem>>, vector<32x144xf32>
    %cst_24 = arith.constant dense<0.000000e+00> : vector<32x64xf32>
    %177 = tpu.matmul %176, %175, %cst_24 {dimension_numbers = #tpu.dot_dimension_numbers<[1], [0], [0], [1], [0, 0, 1, 1], [], []>} : vector<32x144xf32>, vector<144x64xf32>, vector<32x64xf32> -> vector<32x64xf32>
    %c0_25 = arith.constant 0 : index
    %c0_26 = arith.constant 0 : index
    %178 = vector.load %arg7[%c0_25, %c0_26] : memref<32x1xf32, #tpu.memory_space<vmem>>, vector<32x1xf32>
    %179 = vector.broadcast %178 : vector<32x1xf32> to vector<32x64xf32>
    %180 = arith.addf %177, %179 : vector<32x64xf32>
    %cst_27 = arith.constant 0.000000e+00 : f32
    %181 = vector.broadcast %cst_27 : f32 to vector<32x64xf32>
    %182 = arith.maximumf %180, %181 : vector<32x64xf32>
    %c0_28 = arith.constant 0 : index
    %c0_29 = arith.constant 0 : index
    %183 = vector.load %arg17[%c0_28, %c0_29] : memref<9x64xf32, #tpu.memory_space<vmem>>, vector<9x64xf32>
    %184 = vector.extract_strided_slice %182 {offsets = [0, 55], sizes = [32, 9], strides = [1, 1]} : vector<32x64xf32> to vector<32x9xf32>
    %185 = vector.extract_strided_slice %182 {offsets = [0, 0], sizes = [32, 55], strides = [1, 1]} : vector<32x64xf32> to vector<32x55xf32>
    %186 = tpu.concatenate %184, %185 in 1 : vector<32x9xf32>, vector<32x55xf32> -> vector<32x64xf32>
    %187 = vector.extract_strided_slice %183 {offsets = [0, 0], sizes = [1, 64], strides = [1, 1]} : vector<9x64xf32> to vector<1x64xf32>
    %188 = vector.broadcast %187 : vector<1x64xf32> to vector<32x64xf32>
    %189 = arith.mulf %186, %188 : vector<32x64xf32>
    %190 = vector.extract_strided_slice %182 {offsets = [0, 56], sizes = [32, 8], strides = [1, 1]} : vector<32x64xf32> to vector<32x8xf32>
    %191 = vector.extract_strided_slice %182 {offsets = [0, 0], sizes = [32, 56], strides = [1, 1]} : vector<32x64xf32> to vector<32x56xf32>
    %192 = tpu.concatenate %190, %191 in 1 : vector<32x8xf32>, vector<32x56xf32> -> vector<32x64xf32>
    %193 = vector.extract_strided_slice %183 {offsets = [1, 0], sizes = [1, 64], strides = [1, 1]} : vector<9x64xf32> to vector<1x64xf32>
    %194 = vector.broadcast %193 : vector<1x64xf32> to vector<32x64xf32>
    %195 = arith.mulf %192, %194 : vector<32x64xf32>
    %196 = vector.extract_strided_slice %182 {offsets = [0, 57], sizes = [32, 7], strides = [1, 1]} : vector<32x64xf32> to vector<32x7xf32>
    %197 = vector.extract_strided_slice %182 {offsets = [0, 0], sizes = [32, 57], strides = [1, 1]} : vector<32x64xf32> to vector<32x57xf32>
    %198 = tpu.concatenate %196, %197 in 1 : vector<32x7xf32>, vector<32x57xf32> -> vector<32x64xf32>
    %199 = vector.extract_strided_slice %183 {offsets = [2, 0], sizes = [1, 64], strides = [1, 1]} : vector<9x64xf32> to vector<1x64xf32>
    %200 = vector.broadcast %199 : vector<1x64xf32> to vector<32x64xf32>
    %201 = arith.mulf %198, %200 : vector<32x64xf32>
    %202 = vector.extract_strided_slice %182 {offsets = [0, 63], sizes = [32, 1], strides = [1, 1]} : vector<32x64xf32> to vector<32x1xf32>
    %203 = vector.extract_strided_slice %182 {offsets = [0, 0], sizes = [32, 63], strides = [1, 1]} : vector<32x64xf32> to vector<32x63xf32>
    %204 = tpu.concatenate %202, %203 in 1 : vector<32x1xf32>, vector<32x63xf32> -> vector<32x64xf32>
    %205 = vector.extract_strided_slice %183 {offsets = [3, 0], sizes = [1, 64], strides = [1, 1]} : vector<9x64xf32> to vector<1x64xf32>
    %206 = vector.broadcast %205 : vector<1x64xf32> to vector<32x64xf32>
    %207 = arith.mulf %204, %206 : vector<32x64xf32>
    %208 = vector.extract_strided_slice %182 {offsets = [0, 1], sizes = [32, 63], strides = [1, 1]} : vector<32x64xf32> to vector<32x63xf32>
    %209 = vector.extract_strided_slice %182 {offsets = [0, 0], sizes = [32, 1], strides = [1, 1]} : vector<32x64xf32> to vector<32x1xf32>
    %210 = tpu.concatenate %208, %209 in 1 : vector<32x63xf32>, vector<32x1xf32> -> vector<32x64xf32>
    %211 = vector.extract_strided_slice %183 {offsets = [5, 0], sizes = [1, 64], strides = [1, 1]} : vector<9x64xf32> to vector<1x64xf32>
    %212 = vector.broadcast %211 : vector<1x64xf32> to vector<32x64xf32>
    %213 = arith.mulf %210, %212 : vector<32x64xf32>
    %214 = vector.extract_strided_slice %182 {offsets = [0, 7], sizes = [32, 57], strides = [1, 1]} : vector<32x64xf32> to vector<32x57xf32>
    %215 = vector.extract_strided_slice %182 {offsets = [0, 0], sizes = [32, 7], strides = [1, 1]} : vector<32x64xf32> to vector<32x7xf32>
    %216 = tpu.concatenate %214, %215 in 1 : vector<32x57xf32>, vector<32x7xf32> -> vector<32x64xf32>
    %217 = vector.extract_strided_slice %183 {offsets = [6, 0], sizes = [1, 64], strides = [1, 1]} : vector<9x64xf32> to vector<1x64xf32>
    %218 = vector.broadcast %217 : vector<1x64xf32> to vector<32x64xf32>
    %219 = arith.mulf %216, %218 : vector<32x64xf32>
    %220 = vector.extract_strided_slice %182 {offsets = [0, 8], sizes = [32, 56], strides = [1, 1]} : vector<32x64xf32> to vector<32x56xf32>
    %221 = vector.extract_strided_slice %182 {offsets = [0, 0], sizes = [32, 8], strides = [1, 1]} : vector<32x64xf32> to vector<32x8xf32>
    %222 = tpu.concatenate %220, %221 in 1 : vector<32x56xf32>, vector<32x8xf32> -> vector<32x64xf32>
    %223 = vector.extract_strided_slice %183 {offsets = [7, 0], sizes = [1, 64], strides = [1, 1]} : vector<9x64xf32> to vector<1x64xf32>
    %224 = vector.broadcast %223 : vector<1x64xf32> to vector<32x64xf32>
    %225 = arith.mulf %222, %224 : vector<32x64xf32>
    %226 = vector.extract_strided_slice %182 {offsets = [0, 9], sizes = [32, 55], strides = [1, 1]} : vector<32x64xf32> to vector<32x55xf32>
    %227 = vector.extract_strided_slice %182 {offsets = [0, 0], sizes = [32, 9], strides = [1, 1]} : vector<32x64xf32> to vector<32x9xf32>
    %228 = tpu.concatenate %226, %227 in 1 : vector<32x55xf32>, vector<32x9xf32> -> vector<32x64xf32>
    %229 = vector.extract_strided_slice %183 {offsets = [8, 0], sizes = [1, 64], strides = [1, 1]} : vector<9x64xf32> to vector<1x64xf32>
    %230 = vector.broadcast %229 : vector<1x64xf32> to vector<32x64xf32>
    %231 = arith.mulf %228, %230 : vector<32x64xf32>
    %232 = tpu.concatenate %189, %195, %201, %207, %182, %213, %219, %225, %231 in 0 : vector<32x64xf32>, vector<32x64xf32>, vector<32x64xf32>, vector<32x64xf32>, vector<32x64xf32>, vector<32x64xf32>, vector<32x64xf32>, vector<32x64xf32>, vector<32x64xf32> -> vector<288x64xf32>
    %c0_30 = arith.constant 0 : index
    %c0_31 = arith.constant 0 : index
    %233 = vector.load %arg8[%c0_30, %c0_31] : memref<32x288xf32, #tpu.memory_space<vmem>>, vector<32x288xf32>
    %cst_32 = arith.constant dense<0.000000e+00> : vector<32x64xf32>
    %234 = tpu.matmul %233, %232, %cst_32 {dimension_numbers = #tpu.dot_dimension_numbers<[1], [0], [0], [1], [0, 0, 1, 1], [], []>} : vector<32x288xf32>, vector<288x64xf32>, vector<32x64xf32> -> vector<32x64xf32>
    %c0_33 = arith.constant 0 : index
    %c0_34 = arith.constant 0 : index
    %235 = vector.load %arg9[%c0_33, %c0_34] : memref<32x1xf32, #tpu.memory_space<vmem>>, vector<32x1xf32>
    %236 = vector.broadcast %235 : vector<32x1xf32> to vector<32x64xf32>
    %237 = arith.addf %234, %236 : vector<32x64xf32>
    %cst_35 = arith.constant 0.000000e+00 : f32
    %238 = vector.broadcast %cst_35 : f32 to vector<32x64xf32>
    %239 = arith.maximumf %237, %238 : vector<32x64xf32>
    %240 = vector.extract_strided_slice %239 {offsets = [0, 1], sizes = [32, 63], strides = [1, 1]} : vector<32x64xf32> to vector<32x63xf32>
    %241 = vector.extract_strided_slice %239 {offsets = [0, 0], sizes = [32, 1], strides = [1, 1]} : vector<32x64xf32> to vector<32x1xf32>
    %242 = tpu.concatenate %240, %241 in 1 : vector<32x63xf32>, vector<32x1xf32> -> vector<32x64xf32>
    %243 = arith.maximumf %239, %242 : vector<32x64xf32>
    %244 = vector.extract_strided_slice %243 {offsets = [0, 8], sizes = [32, 56], strides = [1, 1]} : vector<32x64xf32> to vector<32x56xf32>
    %245 = vector.extract_strided_slice %243 {offsets = [0, 0], sizes = [32, 8], strides = [1, 1]} : vector<32x64xf32> to vector<32x8xf32>
    %246 = tpu.concatenate %244, %245 in 1 : vector<32x56xf32>, vector<32x8xf32> -> vector<32x64xf32>
    %247 = arith.maximumf %243, %246 : vector<32x64xf32>
    %c0_36 = arith.constant 0 : index
    %c0_37 = arith.constant 0 : index
    %248 = vector.load %arg19[%c0_36, %c0_37] : memref<64x16xf32, #tpu.memory_space<vmem>>, vector<64x16xf32>
    %cst_38 = arith.constant dense<0.000000e+00> : vector<32x16xf32>
    %249 = tpu.matmul %247, %248, %cst_38 {dimension_numbers = #tpu.dot_dimension_numbers<[1], [0], [0], [1], [0, 0, 1, 1], [], []>} : vector<32x64xf32>, vector<64x16xf32>, vector<32x16xf32> -> vector<32x16xf32>
    %c0_39 = arith.constant 0 : index
    %c0_40 = arith.constant 0 : index
    %250 = vector.load %arg20[%c0_39, %c0_40] : memref<16x64xf32, #tpu.memory_space<vmem>>, vector<16x64xf32>
    %cst_41 = arith.constant dense<0.000000e+00> : vector<32x64xf32>
    %251 = tpu.matmul %249, %250, %cst_41 {dimension_numbers = #tpu.dot_dimension_numbers<[1], [0], [0], [1], [0, 0, 1, 1], [], []>} : vector<32x16xf32>, vector<16x64xf32>, vector<32x64xf32> -> vector<32x64xf32>
    %252 = tpu.concatenate %251, %239 in 0 : vector<32x64xf32>, vector<32x64xf32> -> vector<64x64xf32>
    %c0_42 = arith.constant 0 : index
    %c0_43 = arith.constant 0 : index
    %253 = vector.load %arg17[%c0_42, %c0_43] : memref<9x64xf32, #tpu.memory_space<vmem>>, vector<9x64xf32>
    %254 = vector.extract_strided_slice %252 {offsets = [0, 55], sizes = [64, 9], strides = [1, 1]} : vector<64x64xf32> to vector<64x9xf32>
    %255 = vector.extract_strided_slice %252 {offsets = [0, 0], sizes = [64, 55], strides = [1, 1]} : vector<64x64xf32> to vector<64x55xf32>
    %256 = tpu.concatenate %254, %255 in 1 : vector<64x9xf32>, vector<64x55xf32> -> vector<64x64xf32>
    %257 = vector.extract_strided_slice %253 {offsets = [0, 0], sizes = [1, 64], strides = [1, 1]} : vector<9x64xf32> to vector<1x64xf32>
    %258 = vector.broadcast %257 : vector<1x64xf32> to vector<64x64xf32>
    %259 = arith.mulf %256, %258 : vector<64x64xf32>
    %260 = vector.extract_strided_slice %252 {offsets = [0, 56], sizes = [64, 8], strides = [1, 1]} : vector<64x64xf32> to vector<64x8xf32>
    %261 = vector.extract_strided_slice %252 {offsets = [0, 0], sizes = [64, 56], strides = [1, 1]} : vector<64x64xf32> to vector<64x56xf32>
    %262 = tpu.concatenate %260, %261 in 1 : vector<64x8xf32>, vector<64x56xf32> -> vector<64x64xf32>
    %263 = vector.extract_strided_slice %253 {offsets = [1, 0], sizes = [1, 64], strides = [1, 1]} : vector<9x64xf32> to vector<1x64xf32>
    %264 = vector.broadcast %263 : vector<1x64xf32> to vector<64x64xf32>
    %265 = arith.mulf %262, %264 : vector<64x64xf32>
    %266 = vector.extract_strided_slice %252 {offsets = [0, 57], sizes = [64, 7], strides = [1, 1]} : vector<64x64xf32> to vector<64x7xf32>
    %267 = vector.extract_strided_slice %252 {offsets = [0, 0], sizes = [64, 57], strides = [1, 1]} : vector<64x64xf32> to vector<64x57xf32>
    %268 = tpu.concatenate %266, %267 in 1 : vector<64x7xf32>, vector<64x57xf32> -> vector<64x64xf32>
    %269 = vector.extract_strided_slice %253 {offsets = [2, 0], sizes = [1, 64], strides = [1, 1]} : vector<9x64xf32> to vector<1x64xf32>
    %270 = vector.broadcast %269 : vector<1x64xf32> to vector<64x64xf32>
    %271 = arith.mulf %268, %270 : vector<64x64xf32>
    %272 = vector.extract_strided_slice %252 {offsets = [0, 63], sizes = [64, 1], strides = [1, 1]} : vector<64x64xf32> to vector<64x1xf32>
    %273 = vector.extract_strided_slice %252 {offsets = [0, 0], sizes = [64, 63], strides = [1, 1]} : vector<64x64xf32> to vector<64x63xf32>
    %274 = tpu.concatenate %272, %273 in 1 : vector<64x1xf32>, vector<64x63xf32> -> vector<64x64xf32>
    %275 = vector.extract_strided_slice %253 {offsets = [3, 0], sizes = [1, 64], strides = [1, 1]} : vector<9x64xf32> to vector<1x64xf32>
    %276 = vector.broadcast %275 : vector<1x64xf32> to vector<64x64xf32>
    %277 = arith.mulf %274, %276 : vector<64x64xf32>
    %278 = vector.extract_strided_slice %252 {offsets = [0, 1], sizes = [64, 63], strides = [1, 1]} : vector<64x64xf32> to vector<64x63xf32>
    %279 = vector.extract_strided_slice %252 {offsets = [0, 0], sizes = [64, 1], strides = [1, 1]} : vector<64x64xf32> to vector<64x1xf32>
    %280 = tpu.concatenate %278, %279 in 1 : vector<64x63xf32>, vector<64x1xf32> -> vector<64x64xf32>
    %281 = vector.extract_strided_slice %253 {offsets = [5, 0], sizes = [1, 64], strides = [1, 1]} : vector<9x64xf32> to vector<1x64xf32>
    %282 = vector.broadcast %281 : vector<1x64xf32> to vector<64x64xf32>
    %283 = arith.mulf %280, %282 : vector<64x64xf32>
    %284 = vector.extract_strided_slice %252 {offsets = [0, 7], sizes = [64, 57], strides = [1, 1]} : vector<64x64xf32> to vector<64x57xf32>
    %285 = vector.extract_strided_slice %252 {offsets = [0, 0], sizes = [64, 7], strides = [1, 1]} : vector<64x64xf32> to vector<64x7xf32>
    %286 = tpu.concatenate %284, %285 in 1 : vector<64x57xf32>, vector<64x7xf32> -> vector<64x64xf32>
    %287 = vector.extract_strided_slice %253 {offsets = [6, 0], sizes = [1, 64], strides = [1, 1]} : vector<9x64xf32> to vector<1x64xf32>
    %288 = vector.broadcast %287 : vector<1x64xf32> to vector<64x64xf32>
    %289 = arith.mulf %286, %288 : vector<64x64xf32>
    %290 = vector.extract_strided_slice %252 {offsets = [0, 8], sizes = [64, 56], strides = [1, 1]} : vector<64x64xf32> to vector<64x56xf32>
    %291 = vector.extract_strided_slice %252 {offsets = [0, 0], sizes = [64, 8], strides = [1, 1]} : vector<64x64xf32> to vector<64x8xf32>
    %292 = tpu.concatenate %290, %291 in 1 : vector<64x56xf32>, vector<64x8xf32> -> vector<64x64xf32>
    %293 = vector.extract_strided_slice %253 {offsets = [7, 0], sizes = [1, 64], strides = [1, 1]} : vector<9x64xf32> to vector<1x64xf32>
    %294 = vector.broadcast %293 : vector<1x64xf32> to vector<64x64xf32>
    %295 = arith.mulf %292, %294 : vector<64x64xf32>
    %296 = vector.extract_strided_slice %252 {offsets = [0, 9], sizes = [64, 55], strides = [1, 1]} : vector<64x64xf32> to vector<64x55xf32>
    %297 = vector.extract_strided_slice %252 {offsets = [0, 0], sizes = [64, 9], strides = [1, 1]} : vector<64x64xf32> to vector<64x9xf32>
    %298 = tpu.concatenate %296, %297 in 1 : vector<64x55xf32>, vector<64x9xf32> -> vector<64x64xf32>
    %299 = vector.extract_strided_slice %253 {offsets = [8, 0], sizes = [1, 64], strides = [1, 1]} : vector<9x64xf32> to vector<1x64xf32>
    %300 = vector.broadcast %299 : vector<1x64xf32> to vector<64x64xf32>
    %301 = arith.mulf %298, %300 : vector<64x64xf32>
    %302 = tpu.concatenate %259, %265, %271, %277, %252, %283, %289, %295, %301 in 0 : vector<64x64xf32>, vector<64x64xf32>, vector<64x64xf32>, vector<64x64xf32>, vector<64x64xf32>, vector<64x64xf32>, vector<64x64xf32>, vector<64x64xf32>, vector<64x64xf32> -> vector<576x64xf32>
    %c0_44 = arith.constant 0 : index
    %c0_45 = arith.constant 0 : index
    %303 = vector.load %arg10[%c0_44, %c0_45] : memref<32x576xf32, #tpu.memory_space<vmem>>, vector<32x576xf32>
    %cst_46 = arith.constant dense<0.000000e+00> : vector<32x64xf32>
    %304 = tpu.matmul %303, %302, %cst_46 {dimension_numbers = #tpu.dot_dimension_numbers<[1], [0], [0], [1], [0, 0, 1, 1], [], []>} : vector<32x576xf32>, vector<576x64xf32>, vector<32x64xf32> -> vector<32x64xf32>
    %c0_47 = arith.constant 0 : index
    %c0_48 = arith.constant 0 : index
    %305 = vector.load %arg11[%c0_47, %c0_48] : memref<32x1xf32, #tpu.memory_space<vmem>>, vector<32x1xf32>
    %306 = vector.broadcast %305 : vector<32x1xf32> to vector<32x64xf32>
    %307 = arith.addf %304, %306 : vector<32x64xf32>
    %cst_49 = arith.constant 0.000000e+00 : f32
    %308 = vector.broadcast %cst_49 : f32 to vector<32x64xf32>
    %309 = arith.maximumf %307, %308 : vector<32x64xf32>
    %c0_50 = arith.constant 0 : index
    %c0_51 = arith.constant 0 : index
    %310 = vector.load %arg21[%c0_50, %c0_51] : memref<64x256xf32, #tpu.memory_space<vmem>>, vector<64x256xf32>
    %cst_52 = arith.constant dense<0.000000e+00> : vector<32x256xf32>
    %311 = tpu.matmul %309, %310, %cst_52 {dimension_numbers = #tpu.dot_dimension_numbers<[1], [0], [0], [1], [0, 0, 1, 1], [], []>} : vector<32x64xf32>, vector<64x256xf32>, vector<32x256xf32> -> vector<32x256xf32>
    %312 = tpu.concatenate %311, %115 in 0 : vector<32x256xf32>, vector<16x256xf32> -> vector<48x256xf32>
    %c0_53 = arith.constant 0 : index
    %c0_54 = arith.constant 0 : index
    %313 = vector.load %arg16[%c0_53, %c0_54] : memref<9x256xf32, #tpu.memory_space<vmem>>, vector<9x256xf32>
    %314 = vector.extract_strided_slice %312 {offsets = [0, 239], sizes = [48, 17], strides = [1, 1]} : vector<48x256xf32> to vector<48x17xf32>
    %315 = vector.extract_strided_slice %312 {offsets = [0, 0], sizes = [48, 239], strides = [1, 1]} : vector<48x256xf32> to vector<48x239xf32>
    %316 = tpu.concatenate %314, %315 in 1 : vector<48x17xf32>, vector<48x239xf32> -> vector<48x256xf32>
    %317 = vector.extract_strided_slice %313 {offsets = [0, 0], sizes = [1, 256], strides = [1, 1]} : vector<9x256xf32> to vector<1x256xf32>
    %318 = vector.broadcast %317 : vector<1x256xf32> to vector<48x256xf32>
    %319 = arith.mulf %316, %318 : vector<48x256xf32>
    %320 = vector.extract_strided_slice %312 {offsets = [0, 240], sizes = [48, 16], strides = [1, 1]} : vector<48x256xf32> to vector<48x16xf32>
    %321 = vector.extract_strided_slice %312 {offsets = [0, 0], sizes = [48, 240], strides = [1, 1]} : vector<48x256xf32> to vector<48x240xf32>
    %322 = tpu.concatenate %320, %321 in 1 : vector<48x16xf32>, vector<48x240xf32> -> vector<48x256xf32>
    %323 = vector.extract_strided_slice %313 {offsets = [1, 0], sizes = [1, 256], strides = [1, 1]} : vector<9x256xf32> to vector<1x256xf32>
    %324 = vector.broadcast %323 : vector<1x256xf32> to vector<48x256xf32>
    %325 = arith.mulf %322, %324 : vector<48x256xf32>
    %326 = vector.extract_strided_slice %312 {offsets = [0, 241], sizes = [48, 15], strides = [1, 1]} : vector<48x256xf32> to vector<48x15xf32>
    %327 = vector.extract_strided_slice %312 {offsets = [0, 0], sizes = [48, 241], strides = [1, 1]} : vector<48x256xf32> to vector<48x241xf32>
    %328 = tpu.concatenate %326, %327 in 1 : vector<48x15xf32>, vector<48x241xf32> -> vector<48x256xf32>
    %329 = vector.extract_strided_slice %313 {offsets = [2, 0], sizes = [1, 256], strides = [1, 1]} : vector<9x256xf32> to vector<1x256xf32>
    %330 = vector.broadcast %329 : vector<1x256xf32> to vector<48x256xf32>
    %331 = arith.mulf %328, %330 : vector<48x256xf32>
    %332 = vector.extract_strided_slice %312 {offsets = [0, 255], sizes = [48, 1], strides = [1, 1]} : vector<48x256xf32> to vector<48x1xf32>
    %333 = vector.extract_strided_slice %312 {offsets = [0, 0], sizes = [48, 255], strides = [1, 1]} : vector<48x256xf32> to vector<48x255xf32>
    %334 = tpu.concatenate %332, %333 in 1 : vector<48x1xf32>, vector<48x255xf32> -> vector<48x256xf32>
    %335 = vector.extract_strided_slice %313 {offsets = [3, 0], sizes = [1, 256], strides = [1, 1]} : vector<9x256xf32> to vector<1x256xf32>
    %336 = vector.broadcast %335 : vector<1x256xf32> to vector<48x256xf32>
    %337 = arith.mulf %334, %336 : vector<48x256xf32>
    %338 = vector.extract_strided_slice %312 {offsets = [0, 1], sizes = [48, 255], strides = [1, 1]} : vector<48x256xf32> to vector<48x255xf32>
    %339 = vector.extract_strided_slice %312 {offsets = [0, 0], sizes = [48, 1], strides = [1, 1]} : vector<48x256xf32> to vector<48x1xf32>
    %340 = tpu.concatenate %338, %339 in 1 : vector<48x255xf32>, vector<48x1xf32> -> vector<48x256xf32>
    %341 = vector.extract_strided_slice %313 {offsets = [5, 0], sizes = [1, 256], strides = [1, 1]} : vector<9x256xf32> to vector<1x256xf32>
    %342 = vector.broadcast %341 : vector<1x256xf32> to vector<48x256xf32>
    %343 = arith.mulf %340, %342 : vector<48x256xf32>
    %344 = vector.extract_strided_slice %312 {offsets = [0, 15], sizes = [48, 241], strides = [1, 1]} : vector<48x256xf32> to vector<48x241xf32>
    %345 = vector.extract_strided_slice %312 {offsets = [0, 0], sizes = [48, 15], strides = [1, 1]} : vector<48x256xf32> to vector<48x15xf32>
    %346 = tpu.concatenate %344, %345 in 1 : vector<48x241xf32>, vector<48x15xf32> -> vector<48x256xf32>
    %347 = vector.extract_strided_slice %313 {offsets = [6, 0], sizes = [1, 256], strides = [1, 1]} : vector<9x256xf32> to vector<1x256xf32>
    %348 = vector.broadcast %347 : vector<1x256xf32> to vector<48x256xf32>
    %349 = arith.mulf %346, %348 : vector<48x256xf32>
    %350 = vector.extract_strided_slice %312 {offsets = [0, 16], sizes = [48, 240], strides = [1, 1]} : vector<48x256xf32> to vector<48x240xf32>
    %351 = vector.extract_strided_slice %312 {offsets = [0, 0], sizes = [48, 16], strides = [1, 1]} : vector<48x256xf32> to vector<48x16xf32>
    %352 = tpu.concatenate %350, %351 in 1 : vector<48x240xf32>, vector<48x16xf32> -> vector<48x256xf32>
    %353 = vector.extract_strided_slice %313 {offsets = [7, 0], sizes = [1, 256], strides = [1, 1]} : vector<9x256xf32> to vector<1x256xf32>
    %354 = vector.broadcast %353 : vector<1x256xf32> to vector<48x256xf32>
    %355 = arith.mulf %352, %354 : vector<48x256xf32>
    %356 = vector.extract_strided_slice %312 {offsets = [0, 17], sizes = [48, 239], strides = [1, 1]} : vector<48x256xf32> to vector<48x239xf32>
    %357 = vector.extract_strided_slice %312 {offsets = [0, 0], sizes = [48, 17], strides = [1, 1]} : vector<48x256xf32> to vector<48x17xf32>
    %358 = tpu.concatenate %356, %357 in 1 : vector<48x239xf32>, vector<48x17xf32> -> vector<48x256xf32>
    %359 = vector.extract_strided_slice %313 {offsets = [8, 0], sizes = [1, 256], strides = [1, 1]} : vector<9x256xf32> to vector<1x256xf32>
    %360 = vector.broadcast %359 : vector<1x256xf32> to vector<48x256xf32>
    %361 = arith.mulf %358, %360 : vector<48x256xf32>
    %362 = tpu.concatenate %319, %325, %331, %337, %312, %343, %349, %355, %361 in 0 : vector<48x256xf32>, vector<48x256xf32>, vector<48x256xf32>, vector<48x256xf32>, vector<48x256xf32>, vector<48x256xf32>, vector<48x256xf32>, vector<48x256xf32>, vector<48x256xf32> -> vector<432x256xf32>
    %c0_55 = arith.constant 0 : index
    %c0_56 = arith.constant 0 : index
    %363 = vector.load %arg12[%c0_55, %c0_56] : memref<16x432xf32, #tpu.memory_space<vmem>>, vector<16x432xf32>
    %cst_57 = arith.constant dense<0.000000e+00> : vector<16x256xf32>
    %364 = tpu.matmul %363, %362, %cst_57 {dimension_numbers = #tpu.dot_dimension_numbers<[1], [0], [0], [1], [0, 0, 1, 1], [], []>} : vector<16x432xf32>, vector<432x256xf32>, vector<16x256xf32> -> vector<16x256xf32>
    %c0_58 = arith.constant 0 : index
    %c0_59 = arith.constant 0 : index
    %365 = vector.load %arg13[%c0_58, %c0_59] : memref<16x1xf32, #tpu.memory_space<vmem>>, vector<16x1xf32>
    %366 = vector.broadcast %365 : vector<16x1xf32> to vector<16x256xf32>
    %367 = arith.addf %364, %366 : vector<16x256xf32>
    %cst_60 = arith.constant 0.000000e+00 : f32
    %368 = vector.broadcast %cst_60 : f32 to vector<16x256xf32>
    %369 = arith.maximumf %367, %368 : vector<16x256xf32>
    %c0_61 = arith.constant 0 : index
    %c0_62 = arith.constant 0 : index
    %370 = vector.load %arg14[%c0_61, %c0_62] : memref<5x16xf32, #tpu.memory_space<vmem>>, vector<5x16xf32>
    %cst_63 = arith.constant dense<0.000000e+00> : vector<5x256xf32>
    %371 = tpu.matmul %370, %369, %cst_63 {dimension_numbers = #tpu.dot_dimension_numbers<[1], [0], [0], [1], [0, 0, 1, 1], [], []>} : vector<5x16xf32>, vector<16x256xf32>, vector<5x256xf32> -> vector<5x256xf32>
    %c0_64 = arith.constant 0 : index
    %c0_65 = arith.constant 0 : index
    %372 = vector.load %arg15[%c0_64, %c0_65] : memref<5x1xf32, #tpu.memory_space<vmem>>, vector<5x1xf32>
    %373 = vector.broadcast %372 : vector<5x1xf32> to vector<5x256xf32>
    %374 = arith.addf %371, %373 : vector<5x256xf32>
    %c0_66 = arith.constant 0 : index
    %c0_67 = arith.constant 0 : index
    %c0_68 = arith.constant 0 : index
    %375 = vector.load %arg22[%c0_66, %c0_67, %c0_68] : memref<1x5x256xf32, #tpu.memory_space<vmem>>, vector<1x5x256xf32>
    %376 = vector.shape_cast %375 : vector<1x5x256xf32> to vector<5x256xf32>
    %377 = vector.shape_cast %374 : vector<5x256xf32> to vector<1x5x256xf32>
    tpu.vector_store %arg22[%c0_66, %c0_67, %c0_68], %377 {strides = array<i32>} : memref<1x5x256xf32, #tpu.memory_space<vmem>>, vector<1x5x256xf32>,
    return
  }
  func.func @transform_0(%arg0: i32) -> (i32, i32, i32) {
    %c0_i32 = arith.constant 0 : i32
    %c0_i32_0 = arith.constant 0 : i32
    %c0_i32_1 = arith.constant 0 : i32
    return %arg0, %c0_i32, %c0_i32_0 : i32, i32, i32
  }
  func.func @transform_1(%arg0: i32) -> (i32, i32) {
    %c0_i32 = arith.constant 0 : i32
    %c0_i32_0 = arith.constant 0 : i32
    %c0_i32_1 = arith.constant 0 : i32
    return %c0_i32, %c0_i32_0 : i32, i32
  }
  func.func @transform_2(%arg0: i32) -> (i32, i32) {
    %c0_i32 = arith.constant 0 : i32
    %c0_i32_0 = arith.constant 0 : i32
    %c0_i32_1 = arith.constant 0 : i32
    return %c0_i32, %c0_i32_0 : i32, i32
  }
  func.func @transform_3(%arg0: i32) -> (i32, i32) {
    %c0_i32 = arith.constant 0 : i32
    %c0_i32_0 = arith.constant 0 : i32
    %c0_i32_1 = arith.constant 0 : i32
    return %c0_i32, %c0_i32_0 : i32, i32
  }
  func.func @transform_4(%arg0: i32) -> (i32, i32) {
    %c0_i32 = arith.constant 0 : i32
    %c0_i32_0 = arith.constant 0 : i32
    %c0_i32_1 = arith.constant 0 : i32
    return %c0_i32, %c0_i32_0 : i32, i32
  }
  func.func @transform_5(%arg0: i32) -> (i32, i32) {
    %c0_i32 = arith.constant 0 : i32
    %c0_i32_0 = arith.constant 0 : i32
    %c0_i32_1 = arith.constant 0 : i32
    return %c0_i32, %c0_i32_0 : i32, i32
  }
  func.func @transform_6(%arg0: i32) -> (i32, i32) {
    %c0_i32 = arith.constant 0 : i32
    %c0_i32_0 = arith.constant 0 : i32
    %c0_i32_1 = arith.constant 0 : i32
    return %c0_i32, %c0_i32_0 : i32, i32
  }
  func.func @transform_7(%arg0: i32) -> (i32, i32) {
    %c0_i32 = arith.constant 0 : i32
    %c0_i32_0 = arith.constant 0 : i32
    %c0_i32_1 = arith.constant 0 : i32
    return %c0_i32, %c0_i32_0 : i32, i32
  }
  func.func @transform_8(%arg0: i32) -> (i32, i32) {
    %c0_i32 = arith.constant 0 : i32
    %c0_i32_0 = arith.constant 0 : i32
    %c0_i32_1 = arith.constant 0 : i32
    return %c0_i32, %c0_i32_0 : i32, i32
  }
  func.func @transform_9(%arg0: i32) -> (i32, i32) {
    %c0_i32 = arith.constant 0 : i32
    %c0_i32_0 = arith.constant 0 : i32
    %c0_i32_1 = arith.constant 0 : i32
    return %c0_i32, %c0_i32_0 : i32, i32
  }
  func.func @transform_10(%arg0: i32) -> (i32, i32) {
    %c0_i32 = arith.constant 0 : i32
    %c0_i32_0 = arith.constant 0 : i32
    %c0_i32_1 = arith.constant 0 : i32
    return %c0_i32, %c0_i32_0 : i32, i32
  }
  func.func @transform_11(%arg0: i32) -> (i32, i32) {
    %c0_i32 = arith.constant 0 : i32
    %c0_i32_0 = arith.constant 0 : i32
    %c0_i32_1 = arith.constant 0 : i32
    return %c0_i32, %c0_i32_0 : i32, i32
  }
  func.func @transform_12(%arg0: i32) -> (i32, i32) {
    %c0_i32 = arith.constant 0 : i32
    %c0_i32_0 = arith.constant 0 : i32
    %c0_i32_1 = arith.constant 0 : i32
    return %c0_i32, %c0_i32_0 : i32, i32
  }
  func.func @transform_13(%arg0: i32) -> (i32, i32) {
    %c0_i32 = arith.constant 0 : i32
    %c0_i32_0 = arith.constant 0 : i32
    %c0_i32_1 = arith.constant 0 : i32
    return %c0_i32, %c0_i32_0 : i32, i32
  }
  func.func @transform_14(%arg0: i32) -> (i32, i32) {
    %c0_i32 = arith.constant 0 : i32
    %c0_i32_0 = arith.constant 0 : i32
    %c0_i32_1 = arith.constant 0 : i32
    return %c0_i32, %c0_i32_0 : i32, i32
  }
  func.func @transform_15(%arg0: i32) -> (i32, i32) {
    %c0_i32 = arith.constant 0 : i32
    %c0_i32_0 = arith.constant 0 : i32
    %c0_i32_1 = arith.constant 0 : i32
    return %c0_i32, %c0_i32_0 : i32, i32
  }
  func.func @transform_16(%arg0: i32) -> (i32, i32) {
    %c0_i32 = arith.constant 0 : i32
    %c0_i32_0 = arith.constant 0 : i32
    %c0_i32_1 = arith.constant 0 : i32
    return %c0_i32, %c0_i32_0 : i32, i32
  }
  func.func @transform_17(%arg0: i32) -> (i32, i32) {
    %c0_i32 = arith.constant 0 : i32
    %c0_i32_0 = arith.constant 0 : i32
    %c0_i32_1 = arith.constant 0 : i32
    return %c0_i32, %c0_i32_0 : i32, i32
  }
  func.func @transform_18(%arg0: i32) -> (i32, i32) {
    %c0_i32 = arith.constant 0 : i32
    %c0_i32_0 = arith.constant 0 : i32
    %c0_i32_1 = arith.constant 0 : i32
    return %c0_i32, %c0_i32_0 : i32, i32
  }
  func.func @transform_19(%arg0: i32) -> (i32, i32) {
    %c0_i32 = arith.constant 0 : i32
    %c0_i32_0 = arith.constant 0 : i32
    %c0_i32_1 = arith.constant 0 : i32
    return %c0_i32, %c0_i32_0 : i32, i32
  }
  func.func @transform_20(%arg0: i32) -> (i32, i32) {
    %c0_i32 = arith.constant 0 : i32
    %c0_i32_0 = arith.constant 0 : i32
    %c0_i32_1 = arith.constant 0 : i32
    return %c0_i32, %c0_i32_0 : i32, i32
  }
  func.func @transform_21(%arg0: i32) -> (i32, i32, i32) {
    %c0_i32 = arith.constant 0 : i32
    %c0_i32_0 = arith.constant 0 : i32
    %c0_i32_1 = arith.constant 0 : i32
    return %arg0, %c0_i32, %c0_i32_0 : i32, i32, i32
  }
}

</mosaic_0001>

<llo_original>
// kernel: nnet_forward.1
$region0: #{nnet_forward.1}
  #allocation0 [shape = 'u32[]', space=smem, size = 0x4, offset = 0x4, fixed_abs, tag = 'smem constant byte address 0x4 - core index']
  #allocation1 [shape = 'u32[144,128]{1,0:T(1,128)}', space=vmem, size = 0x12000, scoped, tag = 'internal scratch']
  %s0 = inlined_call_operand.vmem [shape: f32[2,4,256], index: 0, kind: input, shape index: {}]
  %s1 = inlined_call_operand.vmem [shape: f32[16,36], index: 1, kind: input, shape index: {}]
  %s2 = inlined_call_operand.vmem [shape: f32[16,1], index: 2, kind: input, shape index: {}]
  %s3 = inlined_call_operand.vmem [shape: f32[16,144], index: 3, kind: input, shape index: {}]
  %s4 = inlined_call_operand.vmem [shape: f32[16,1], index: 4, kind: input, shape index: {}]
  %s5 = inlined_call_operand.vmem [shape: f32[32,144], index: 5, kind: input, shape index: {}]
  %s6 = inlined_call_operand.vmem [shape: f32[32,1], index: 6, kind: input, shape index: {}]
  %s7 = inlined_call_operand.vmem [shape: f32[32,288], index: 7, kind: input, shape index: {}]
  %s8 = inlined_call_operand.vmem [shape: f32[32,1], index: 8, kind: input, shape index: {}]
  %s9 = inlined_call_operand.vmem [shape: f32[32,576], index: 9, kind: input, shape index: {}]
  %s10 = inlined_call_operand.vmem [shape: f32[32,1], index: 10, kind: input, shape index: {}]
  %s11 = inlined_call_operand.vmem [shape: f32[16,432], index: 11, kind: input, shape index: {}]
  %s12 = inlined_call_operand.vmem [shape: f32[16,1], index: 12, kind: input, shape index: {}]
  %s13 = inlined_call_operand.vmem [shape: f32[5,16], index: 13, kind: input, shape index: {}]
  %s14 = inlined_call_operand.vmem [shape: f32[5,1], index: 14, kind: input, shape index: {}]
  %s15 = inlined_call_operand.vmem [shape: f32[9,256], index: 15, kind: input, shape index: {}]
  %s16 = inlined_call_operand.vmem [shape: f32[9,64], index: 16, kind: input, shape index: {}]
  %s17 = inlined_call_operand.vmem [shape: f32[256,64], index: 17, kind: input, shape index: {}]
  %s18 = inlined_call_operand.vmem [shape: f32[64,16], index: 18, kind: input, shape index: {}]
  %s19 = inlined_call_operand.vmem [shape: f32[16,64], index: 19, kind: input, shape index: {}]
  %s20 = inlined_call_operand.vmem [shape: f32[64,256], index: 20, kind: input, shape index: {}]
  %s21 = inlined_call_operand.vmem [shape: f32[2,5,256], index: 21, kind: output, shape index: {}]
  %s22 = sld [smem:[#allocation0]]
  $region117: #{nnet_forward.1} parent=0
    _
  %s24 = ssub.s32 1, %s22
  %s25 = scalar_select 0, %s24, %s22
  loop: start=0, step=1, limit=4
  $region2: #{nnet_forward.1} parent=0 // loop_pre_header
    _
  $region3: #{nnet_forward.1} parent=0 // loop_header
    %s27 = sphi 0, %s31
    %p28 = scmp.ge.s32.totalorder %s27, 4
    %s37 = sphi 0, %s39
    %s40 = sphi 0, %s37
    %s41 = sphi 0, %s40
    %s57 = sphi 0, %s41
    %s61 = sphi 0, %s61
    %s63 = sphi 0, %s61
    %s64 = sphi 0, %s63
    %s78 = sphi 0, %s64
    %s82 = sphi 0, %s82
    %s84 = sphi 0, %s82
    %s85 = sphi 0, %s84
    %s99 = sphi 0, %s85
    %s103 = sphi 0, %s103
    %s105 = sphi 0, %s103
    %s106 = sphi 0, %s105
    %s120 = sphi 0, %s106
    %s124 = sphi 0, %s124
    %s126 = sphi 0, %s124
    %s127 = sphi 0, %s126
    %s141 = sphi 0, %s127
    %s145 = sphi 0, %s145
    %s147 = sphi 0, %s145
    %s148 = sphi 0, %s147
    %s162 = sphi 0, %s148
    %s166 = sphi 0, %s166
    %s168 = sphi 0, %s166
    %s169 = sphi 0, %s168
    %s183 = sphi 0, %s169
    %s187 = sphi 0, %s187
    %s189 = sphi 0, %s187
    %s190 = sphi 0, %s189
    %s204 = sphi 0, %s190
    %s208 = sphi 0, %s208
    %s210 = sphi 0, %s208
    %s211 = sphi 0, %s210
    %s225 = sphi 0, %s211
    %s229 = sphi 0, %s229
    %s231 = sphi 0, %s229
    %s232 = sphi 0, %s231
    %s246 = sphi 0, %s232
    %s250 = sphi 0, %s250
    %s252 = sphi 0, %s250
    %s253 = sphi 0, %s252
    %s267 = sphi 0, %s253
    %s271 = sphi 0, %s271
    %s273 = sphi 0, %s271
    %s274 = sphi 0, %s273
    %s288 = sphi 0, %s274
    %s292 = sphi 0, %s292
    %s294 = sphi 0, %s292
    %s295 = sphi 0, %s294
    %s309 = sphi 0, %s295
    %s313 = sphi 0, %s313
    %s315 = sphi 0, %s313
    %s316 = sphi 0, %s315
    %s330 = sphi 0, %s316
    %s334 = sphi 0, %s334
    %s336 = sphi 0, %s334
    %s337 = sphi 0, %s336
    %s351 = sphi 0, %s337
    %s355 = sphi 0, %s355
    %s357 = sphi 0, %s355
    %s358 = sphi 0, %s357
    %s372 = sphi 0, %s358
    %s376 = sphi 0, %s376
    %s378 = sphi 0, %s376
    %s379 = sphi 0, %s378
    %s393 = sphi 0, %s379
    %s397 = sphi 0, %s397
    %s399 = sphi 0, %s397
    %s400 = sphi 0, %s399
    %s414 = sphi 0, %s400
    %s418 = sphi 0, %s418
    %s420 = sphi 0, %s418
    %s421 = sphi 0, %s420
    %s435 = sphi 0, %s421
    %s439 = sphi 0, %s439
    %s441 = sphi 0, %s439
    %s442 = sphi 0, %s441
    %s456 = sphi 0, %s442
    %s460 = sphi 0, %s460
    %s462 = sphi 0, %s460
    %s463 = sphi 0, %s462
    %s477 = sphi 0, %s463
    %s483 = sphi 0, %s485
    %s486 = sphi 0, %s483
    %s487 = sphi 0, %s486
    %s503 = sphi 0, %s487
  $region4: #{nnet_forward.1} parent=0 // loop_header_branch
    %30 = sbr.rel (%p28) target = $region8
  $region5: #{nnet_forward.1} parent=0 // loop_body
    %s32 = ssub.s32 %s27, 1
    %s33 = ssub.s32 %s27, 2
    %s34 = sadd.s32 %s27, 1
    %s35 = ssub.s32 %s27, %s34
    %p36 = scmp.eq.s32.totalorder %s35, 0
    %s38 = sadd.s32 %s37, 1
    %s39 = scalar_select %p36, %s37, %s38
    %p42 = pneg %p36
    %p43 = scmp.eq.s32.totalorder %s27, 1
    %p44 = por %p42, %p43
    %p45 = scmp.ne.s32.totalorder %s37, %s40
    %p46 = scmp.eq.s32.totalorder %s27, 0
    %p47 = por %p45, %p46
    %p48 = scmp.ne.s32.totalorder %s37, %s40
    %p49 = scmp.eq.s32.totalorder %s32, 1
    %p50 = por %p48, %p49
    %p51 = scmp.ne.s32.totalorder %s40, %s41
    %p52 = scmp.eq.s32.totalorder %s32, 0
    %p53 = por %p51, %p52
    %p54 = scmp.ne.s32.totalorder %s40, %s41
    %p55 = scmp.eq.s32.totalorder %s33, 1
    %p56 = por %p54, %p55
    %p58 = scmp.ne.s32.totalorder %s41, %s57
    %p59 = scmp.eq.s32.totalorder %s33, 0
    %p60 = por %p58, %p59
    %s62 = sadd.s32 %s61, 1
    %p65 = scmp.eq.s32.totalorder %s27, 1
    %p66 = scmp.ne.s32.totalorder %s61, %s63
    %p67 = scmp.eq.s32.totalorder %s27, 0
    %p68 = por %p66, %p67
    %p69 = scmp.ne.s32.totalorder %s61, %s63
    %p70 = scmp.eq.s32.totalorder %s32, 1
    %p71 = por %p69, %p70
    %p72 = scmp.ne.s32.totalorder %s63, %s64
    %p73 = scmp.eq.s32.totalorder %s32, 0
    %p74 = por %p72, %p73
    %p75 = scmp.ne.s32.totalorder %s63, %s64
    %p76 = scmp.eq.s32.totalorder %s33, 1
    %p77 = por %p75, %p76
    %p79 = scmp.ne.s32.totalorder %s64, %s78
    %p80 = scmp.eq.s32.totalorder %s33, 0
    %p81 = por %p79, %p80
    %s83 = sadd.s32 %s82, 1
    %p86 = scmp.eq.s32.totalorder %s27, 1
    %p87 = scmp.ne.s32.totalorder %s82, %s84
    %p88 = scmp.eq.s32.totalorder %s27, 0
    %p89 = por %p87, %p88
    %p90 = scmp.ne.s32.totalorder %s82, %s84
    %p91 = scmp.eq.s32.totalorder %s32, 1
    %p92 = por %p90, %p91
    %p93 = scmp.ne.s32.totalorder %s84, %s85
    %p94 = scmp.eq.s32.totalorder %s32, 0
    %p95 = por %p93, %p94
    %p96 = scmp.ne.s32.totalorder %s84, %s85
    %p97 = scmp.eq.s32.totalorder %s33, 1
    %p98 = por %p96, %p97
    %p100 = scmp.ne.s32.totalorder %s85, %s99
    %p101 = scmp.eq.s32.totalorder %s33, 0
    %p102 = por %p100, %p101
    %s104 = sadd.s32 %s103, 1
    %p107 = scmp.eq.s32.totalorder %s27, 1
    %p108 = scmp.ne.s32.totalorder %s103, %s105
    %p109 = scmp.eq.s32.totalorder %s27, 0
    %p110 = por %p108, %p109
    %p111 = scmp.ne.s32.totalorder %s103, %s105
    %p112 = scmp.eq.s32.totalorder %s32, 1
    %p113 = por %p111, %p112
    %p114 = scmp.ne.s32.totalorder %s105, %s106
    %p115 = scmp.eq.s32.totalorder %s32, 0
    %p116 = por %p114, %p115
    %p117 = scmp.ne.s32.totalorder %s105, %s106
    %p118 = scmp.eq.s32.totalorder %s33, 1
    %p119 = por %p117, %p118
    %p121 = scmp.ne.s32.totalorder %s106, %s120
    %p122 = scmp.eq.s32.totalorder %s33, 0
    %p123 = por %p121, %p122
    %s125 = sadd.s32 %s124, 1
    %p128 = scmp.eq.s32.totalorder %s27, 1
    %p129 = scmp.ne.s32.totalorder %s124, %s126
    %p130 = scmp.eq.s32.totalorder %s27, 0
    %p131 = por %p129, %p130
    %p132 = scmp.ne.s32.totalorder %s124, %s126
    %p133 = scmp.eq.s32.totalorder %s32, 1
    %p134 = por %p132, %p133
    %p135 = scmp.ne.s32.totalorder %s126, %s127
    %p136 = scmp.eq.s32.totalorder %s32, 0
    %p137 = por %p135, %p136
    %p138 = scmp.ne.s32.totalorder %s126, %s127
    %p139 = scmp.eq.s32.totalorder %s33, 1
    %p140 = por %p138, %p139
    %p142 = scmp.ne.s32.totalorder %s127, %s141
    %p143 = scmp.eq.s32.totalorder %s33, 0
    %p144 = por %p142, %p143
    %s146 = sadd.s32 %s145, 1
    %p149 = scmp.eq.s32.totalorder %s27, 1
    %p150 = scmp.ne.s32.totalorder %s145, %s147
    %p151 = scmp.eq.s32.totalorder %s27, 0
    %p152 = por %p150, %p151
    %p153 = scmp.ne.s32.totalorder %s145, %s147
    %p154 = scmp.eq.s32.totalorder %s32, 1
    %p155 = por %p153, %p154
    %p156 = scmp.ne.s32.totalorder %s147, %s148
    %p157 = scmp.eq.s32.totalorder %s32, 0
    %p158 = por %p156, %p157
    %p159 = scmp.ne.s32.totalorder %s147, %s148
    %p160 = scmp.eq.s32.totalorder %s33, 1
    %p161 = por %p159, %p160
    %p163 = scmp.ne.s32.totalorder %s148, %s162
    %p164 = scmp.eq.s32.totalorder %s33, 0
    %p165 = por %p163, %p164
    %s167 = sadd.s32 %s166, 1
    %p170 = scmp.eq.s32.totalorder %s27, 1
    %p171 = scmp.ne.s32.totalorder %s166, %s168
    %p172 = scmp.eq.s32.totalorder %s27, 0
    %p173 = por %p171, %p172
    %p174 = scmp.ne.s32.totalorder %s166, %s168
    %p175 = scmp.eq.s32.totalorder %s32, 1
    %p176 = por %p174, %p175
    %p177 = scmp.ne.s32.totalorder %s168, %s169
    %p178 = scmp.eq.s32.totalorder %s32, 0
    %p179 = por %p177, %p178
    %p180 = scmp.ne.s32.totalorder %s168, %s169
    %p181 = scmp.eq.s32.totalorder %s33, 1
    %p182 = por %p180, %p181
    %p184 = scmp.ne.s32.totalorder %s169, %s183
    %p185 = scmp.eq.s32.totalorder %s33, 0
    %p186 = por %p184, %p185
    %s188 = sadd.s32 %s187, 1
    %p191 = scmp.eq.s32.totalorder %s27, 1
    %p192 = scmp.ne.s32.totalorder %s187, %s189
    %p193 = scmp.eq.s32.totalorder %s27, 0
    %p194 = por %p192, %p193
    %p195 = scmp.ne.s32.totalorder %s187, %s189
    %p196 = scmp.eq.s32.totalorder %s32, 1
    %p197 = por %p195, %p196
    %p198 = scmp.ne.s32.totalorder %s189, %s190
    %p199 = scmp.eq.s32.totalorder %s32, 0
    %p200 = por %p198, %p199
    %p201 = scmp.ne.s32.totalorder %s189, %s190
    %p202 = scmp.eq.s32.totalorder %s33, 1
    %p203 = por %p201, %p202
    %p205 = scmp.ne.s32.totalorder %s190, %s204
    %p206 = scmp.eq.s32.totalorder %s33, 0
    %p207 = por %p205, %p206
    %s209 = sadd.s32 %s208, 1
    %p212 = scmp.eq.s32.totalorder %s27, 1
    %p213 = scmp.ne.s32.totalorder %s208, %s210
    %p214 = scmp.eq.s32.totalorder %s27, 0
    %p215 = por %p213, %p214
    %p216 = scmp.ne.s32.totalorder %s208, %s210
    %p217 = scmp.eq.s32.totalorder %s32, 1
    %p218 = por %p216, %p217
    %p219 = scmp.ne.s32.totalorder %s210, %s211
    %p220 = scmp.eq.s32.totalorder %s32, 0
    %p221 = por %p219, %p220
    %p222 = scmp.ne.s32.totalorder %s210, %s211
    %p223 = scmp.eq.s32.totalorder %s33, 1
    %p224 = por %p222, %p223
    %p226 = scmp.ne.s32.totalorder %s211, %s225
    %p227 = scmp.eq.s32.totalorder %s33, 0
    %p228 = por %p226, %p227
    %s230 = sadd.s32 %s229, 1
    %p233 = scmp.eq.s32.totalorder %s27, 1
    %p234 = scmp.ne.s32.totalorder %s229, %s231
    %p235 = scmp.eq.s32.totalorder %s27, 0
    %p236 = por %p234, %p235
    %p237 = scmp.ne.s32.totalorder %s229, %s231
    %p238 = scmp.eq.s32.totalorder %s32, 1
    %p239 = por %p237, %p238
    %p240 = scmp.ne.s32.totalorder %s231, %s232
    %p241 = scmp.eq.s32.totalorder %s32, 0
    %p242 = por %p240, %p241
    %p243 = scmp.ne.s32.totalorder %s231, %s232
    %p244 = scmp.eq.s32.totalorder %s33, 1
    %p245 = por %p243, %p244
    %p247 = scmp.ne.s32.totalorder %s232, %s246
    %p248 = scmp.eq.s32.totalorder %s33, 0
    %p249 = por %p247, %p248
    %s251 = sadd.s32 %s250, 1
    %p254 = scmp.eq.s32.totalorder %s27, 1
    %p255 = scmp.ne.s32.totalorder %s250, %s252
    %p256 = scmp.eq.s32.totalorder %s27, 0
    %p257 = por %p255, %p256
    %p258 = scmp.ne.s32.totalorder %s250, %s252
    %p259 = scmp.eq.s32.totalorder %s32, 1
    %p260 = por %p258, %p259
    %p261 = scmp.ne.s32.totalorder %s252, %s253
    %p262 = scmp.eq.s32.totalorder %s32, 0
    %p263 = por %p261, %p262
    %p264 = scmp.ne.s32.totalorder %s252, %s253
    %p265 = scmp.eq.s32.totalorder %s33, 1
    %p266 = por %p264, %p265
    %p268 = scmp.ne.s32.totalorder %s253, %s267
    %p269 = scmp.eq.s32.totalorder %s33, 0
    %p270 = por %p268, %p269
    %s272 = sadd.s32 %s271, 1
    %p275 = scmp.eq.s32.totalorder %s27, 1
    %p276 = scmp.ne.s32.totalorder %s271, %s273
    %p277 = scmp.eq.s32.totalorder %s27, 0
    %p278 = por %p276, %p277
    %p279 = scmp.ne.s32.totalorder %s271, %s273
    %p280 = scmp.eq.s32.totalorder %s32, 1
    %p281 = por %p279, %p280
    %p282 = scmp.ne.s32.totalorder %s273, %s274
    %p283 = scmp.eq.s32.totalorder %s32, 0
    %p284 = por %p282, %p283
    %p285 = scmp.ne.s32.totalorder %s273, %s274
    %p286 = scmp.eq.s32.totalorder %s33, 1
    %p287 = por %p285, %p286
    %p289 = scmp.ne.s32.totalorder %s274, %s288
    %p290 = scmp.eq.s32.totalorder %s33, 0
    %p291 = por %p289, %p290
    %s293 = sadd.s32 %s292, 1
    %p296 = scmp.eq.s32.totalorder %s27, 1
    %p297 = scmp.ne.s32.totalorder %s292, %s294
    %p298 = scmp.eq.s32.totalorder %s27, 0
    %p299 = por %p297, %p298
    %p300 = scmp.ne.s32.totalorder %s292, %s294
    %p301 = scmp.eq.s32.totalorder %s32, 1
    %p302 = por %p300, %p301
    %p303 = scmp.ne.s32.totalorder %s294, %s295
    %p304 = scmp.eq.s32.totalorder %s32, 0
    %p305 = por %p303, %p304
    %p306 = scmp.ne.s32.totalorder %s294, %s295
    %p307 = scmp.eq.s32.totalorder %s33, 1
    %p308 = por %p306, %p307
    %p310 = scmp.ne.s32.totalorder %s295, %s309
    %p311 = scmp.eq.s32.totalorder %s33, 0
    %p312 = por %p310, %p311
    %s314 = sadd.s32 %s313, 1
    %p317 = scmp.eq.s32.totalorder %s27, 1
    %p318 = scmp.ne.s32.totalorder %s313, %s315
    %p319 = scmp.eq.s32.totalorder %s27, 0
    %p320 = por %p318, %p319
    %p321 = scmp.ne.s32.totalorder %s313, %s315
    %p322 = scmp.eq.s32.totalorder %s32, 1
    %p323 = por %p321, %p322
    %p324 = scmp.ne.s32.totalorder %s315, %s316
    %p325 = scmp.eq.s32.totalorder %s32, 0
    %p326 = por %p324, %p325
    %p327 = scmp.ne.s32.totalorder %s315, %s316
    %p328 = scmp.eq.s32.totalorder %s33, 1
    %p329 = por %p327, %p328
    %p331 = scmp.ne.s32.totalorder %s316, %s330
    %p332 = scmp.eq.s32.totalorder %s33, 0
    %p333 = por %p331, %p332
    %s335 = sadd.s32 %s334, 1
    %p338 = scmp.eq.s32.totalorder %s27, 1
    %p339 = scmp.ne.s32.totalorder %s334, %s336
    %p340 = scmp.eq.s32.totalorder %s27, 0
    %p341 = por %p339, %p340
    %p342 = scmp.ne.s32.totalorder %s334, %s336
    %p343 = scmp.eq.s32.totalorder %s32, 1
    %p344 = por %p342, %p343
    %p345 = scmp.ne.s32.totalorder %s336, %s337
    %p346 = scmp.eq.s32.totalorder %s32, 0
    %p347 = por %p345, %p346
    %p348 = scmp.ne.s32.totalorder %s336, %s337
    %p349 = scmp.eq.s32.totalorder %s33, 1
    %p350 = por %p348, %p349
    %p352 = scmp.ne.s32.totalorder %s337, %s351
    %p353 = scmp.eq.s32.totalorder %s33, 0
    %p354 = por %p352, %p353
    %s356 = sadd.s32 %s355, 1
    %p359 = scmp.eq.s32.totalorder %s27, 1
    %p360 = scmp.ne.s32.totalorder %s355, %s357
    %p361 = scmp.eq.s32.totalorder %s27, 0
    %p362 = por %p360, %p361
    %p363 = scmp.ne.s32.totalorder %s355, %s357
    %p364 = scmp.eq.s32.totalorder %s32, 1
    %p365 = por %p363, %p364
    %p366 = scmp.ne.s32.totalorder %s357, %s358
    %p367 = scmp.eq.s32.totalorder %s32, 0
    %p368 = por %p366, %p367
    %p369 = scmp.ne.s32.totalorder %s357, %s358
    %p370 = scmp.eq.s32.totalorder %s33, 1
    %p371 = por %p369, %p370
    %p373 = scmp.ne.s32.totalorder %s358, %s372
    %p374 = scmp.eq.s32.totalorder %s33, 0
    %p375 = por %p373, %p374
    %s377 = sadd.s32 %s376, 1
    %p380 = scmp.eq.s32.totalorder %s27, 1
    %p381 = scmp.ne.s32.totalorder %s376, %s378
    %p382 = scmp.eq.s32.totalorder %s27, 0
    %p383 = por %p381, %p382
    %p384 = scmp.ne.s32.totalorder %s376, %s378
    %p385 = scmp.eq.s32.totalorder %s32, 1
    %p386 = por %p384, %p385
    %p387 = scmp.ne.s32.totalorder %s378, %s379
    %p388 = scmp.eq.s32.totalorder %s32, 0
    %p389 = por %p387, %p388
    %p390 = scmp.ne.s32.totalorder %s378, %s379
    %p391 = scmp.eq.s32.totalorder %s33, 1
    %p392 = por %p390, %p391
    %p394 = scmp.ne.s32.totalorder %s379, %s393
    %p395 = scmp.eq.s32.totalorder %s33, 0
    %p396 = por %p394, %p395
    %s398 = sadd.s32 %s397, 1
    %p401 = scmp.eq.s32.totalorder %s27, 1
    %p402 = scmp.ne.s32.totalorder %s397, %s399
    %p403 = scmp.eq.s32.totalorder %s27, 0
    %p404 = por %p402, %p403
    %p405 = scmp.ne.s32.totalorder %s397, %s399
    %p406 = scmp.eq.s32.totalorder %s32, 1
    %p407 = por %p405, %p406
    %p408 = scmp.ne.s32.totalorder %s399, %s400
    %p409 = scmp.eq.s32.totalorder %s32, 0
    %p410 = por %p408, %p409
    %p411 = scmp.ne.s32.totalorder %s399, %s400
    %p412 = scmp.eq.s32.totalorder %s33, 1
    %p413 = por %p411, %p412
    %p415 = scmp.ne.s32.totalorder %s400, %s414
    %p416 = scmp.eq.s32.totalorder %s33, 0
    %p417 = por %p415, %p416
    %s419 = sadd.s32 %s418, 1
    %p422 = scmp.eq.s32.totalorder %s27, 1
    %p423 = scmp.ne.s32.totalorder %s418, %s420
    %p424 = scmp.eq.s32.totalorder %s27, 0
    %p425 = por %p423, %p424
    %p426 = scmp.ne.s32.totalorder %s418, %s420
    %p427 = scmp.eq.s32.totalorder %s32, 1
    %p428 = por %p426, %p427
    %p429 = scmp.ne.s32.totalorder %s420, %s421
    %p430 = scmp.eq.s32.totalorder %s32, 0
    %p431 = por %p429, %p430
    %p432 = scmp.ne.s32.totalorder %s420, %s421
    %p433 = scmp.eq.s32.totalorder %s33, 1
    %p434 = por %p432, %p433
    %p436 = scmp.ne.s32.totalorder %s421, %s435
    %p437 = scmp.eq.s32.totalorder %s33, 0
    %p438 = por %p436, %p437
    %s440 = sadd.s32 %s439, 1
    %p443 = scmp.eq.s32.totalorder %s27, 1
    %p444 = scmp.ne.s32.totalorder %s439, %s441
    %p445 = scmp.eq.s32.totalorder %s27, 0
    %p446 = por %p444, %p445
    %p447 = scmp.ne.s32.totalorder %s439, %s441
    %p448 = scmp.eq.s32.totalorder %s32, 1
    %p449 = por %p447, %p448
    %p450 = scmp.ne.s32.totalorder %s441, %s442
    %p451 = scmp.eq.s32.totalorder %s32, 0
    %p452 = por %p450, %p451
    %p453 = scmp.ne.s32.totalorder %s441, %s442
    %p454 = scmp.eq.s32.totalorder %s33, 1
    %p455 = por %p453, %p454
    %p457 = scmp.ne.s32.totalorder %s442, %s456
    %p458 = scmp.eq.s32.totalorder %s33, 0
    %p459 = por %p457, %p458
    %s461 = sadd.s32 %s460, 1
    %p464 = scmp.eq.s32.totalorder %s27, 1
    %p465 = scmp.ne.s32.totalorder %s460, %s462
    %p466 = scmp.eq.s32.totalorder %s27, 0
    %p467 = por %p465, %p466
    %p468 = scmp.ne.s32.totalorder %s460, %s462
    %p469 = scmp.eq.s32.totalorder %s32, 1
    %p470 = por %p468, %p469
    %p471 = scmp.ne.s32.totalorder %s462, %s463
    %p472 = scmp.eq.s32.totalorder %s32, 0
    %p473 = por %p471, %p472
    %p474 = scmp.ne.s32.totalorder %s462, %s463
    %p475 = scmp.eq.s32.totalorder %s33, 1
    %p476 = por %p474, %p475
    %p478 = scmp.ne.s32.totalorder %s463, %s477
    %p479 = scmp.eq.s32.totalorder %s33, 0
    %p480 = por %p478, %p479
    %s481 = ssub.s32 %s27, %s34
    %p482 = scmp.eq.s32.totalorder %s481, 0
    %s484 = sadd.s32 %s483, 1
    %s485 = scalar_select %p482, %s483, %s484
    %p488 = pneg %p482
    %p489 = scmp.eq.s32.totalorder %s27, 1
    %p490 = por %p488, %p489
    %p491 = scmp.ne.s32.totalorder %s483, %s486
    %p492 = scmp.eq.s32.totalorder %s27, 0
    %p493 = por %p491, %p492
    %p494 = scmp.ne.s32.totalorder %s483, %s486
    %p495 = scmp.eq.s32.totalorder %s32, 1
    %p496 = por %p494, %p495
    %p497 = scmp.ne.s32.totalorder %s486, %s487
    %p498 = scmp.eq.s32.totalorder %s32, 0
    %p499 = por %p497, %p498
    %p500 = scmp.ne.s32.totalorder %s486, %s487
    %p501 = scmp.eq.s32.totalorder %s33, 1
    %p502 = por %p500, %p501
    %p504 = scmp.ne.s32.totalorder %s487, %s503
    %p505 = scmp.eq.s32.totalorder %s33, 0
    %p506 = por %p504, %p505
    %p507 = scmp.le.s32.totalorder 1, %s27
    %p508 = scmp.lt.s32.totalorder %s27, 3
    %p509 = pnand %p507, %p508
    %p510 = pneg %p509
    // Predicated region
    $region9: #{nnet_forward.1} parent=5 // pred_check
      _
    $region10: #{nnet_forward.1} parent=5 // pred_check_branch
      %512 = sbr.rel (%p509) target = $region12
    $region11: #{nnet_forward.1} parent=5 // pred_region
      %s513 = ssub.s32 %s27, 1
      // Predicated region
      $region13: #{nnet_forward.1} parent=11 // pred_check
        %p514 = pneg %p74
      $region14: #{nnet_forward.1} parent=11 // pred_check_branch
        %516 = sbr.rel (%p514) target = $region16
      $region15: #{nnet_forward.1} parent=11 // pred_region
        _
      $region16: #{nnet_forward.1} parent=11 // pred_fallthru
        _
      // Predicated region
      $region17: #{nnet_forward.1} parent=11 // pred_check
        %p517 = pneg %p95
      $region18: #{nnet_forward.1} parent=11 // pred_check_branch
        %519 = sbr.rel (%p517) target = $region20
      $region19: #{nnet_forward.1} parent=11 // pred_region
        _
      $region20: #{nnet_forward.1} parent=11 // pred_fallthru
        _
      // Predicated region
      $region21: #{nnet_forward.1} parent=11 // pred_check
        %p520 = pneg %p116
      $region22: #{nnet_forward.1} parent=11 // pred_check_branch
        %522 = sbr.rel (%p520) target = $region24
      $region23: #{nnet_forward.1} parent=11 // pred_region
        _
      $region24: #{nnet_forward.1} parent=11 // pred_fallthru
        _
      // Predicated region
      $region25: #{nnet_forward.1} parent=11 // pred_check
        %p523 = pneg %p137
      $region26: #{nnet_forward.1} parent=11 // pred_check_branch
        %525 = sbr.rel (%p523) target = $region28
      $region27: #{nnet_forward.1} parent=11 // pred_region
        _
      $region28: #{nnet_forward.1} parent=11 // pred_fallthru
        _
      // Predicated region
      $region29: #{nnet_forward.1} parent=11 // pred_check
        %p526 = pneg %p158
      $region30: #{nnet_forward.1} parent=11 // pred_check_branch
        %528 = sbr.rel (%p526) target = $region32
      $region31: #{nnet_forward.1} parent=11 // pred_region
        _
      $region32: #{nnet_forward.1} parent=11 // pred_fallthru
        _
      // Predicated region
      $region33: #{nnet_forward.1} parent=11 // pred_check
        %p529 = pneg %p179
      $region34: #{nnet_forward.1} parent=11 // pred_check_branch
        %531 = sbr.rel (%p529) target = $region36
      $region35: #{nnet_forward.1} parent=11 // pred_region
        _
      $region36: #{nnet_forward.1} parent=11 // pred_fallthru
        _
      // Predicated region
      $region37: #{nnet_forward.1} parent=11 // pred_check
        %p532 = pneg %p200
      $region38: #{nnet_forward.1} parent=11 // pred_check_branch
        %534 = sbr.rel (%p532) target = $region40
      $region39: #{nnet_forward.1} parent=11 // pred_region
        _
      $region40: #{nnet_forward.1} parent=11 // pred_fallthru
        _
      // Predicated region
      $region41: #{nnet_forward.1} parent=11 // pred_check
        %p535 = pneg %p221
      $region42: #{nnet_forward.1} parent=11 // pred_check_branch
        %537 = sbr.rel (%p535) target = $region44
      $region43: #{nnet_forward.1} parent=11 // pred_region
        _
      $region44: #{nnet_forward.1} parent=11 // pred_fallthru
        _
      // Predicated region
      $region45: #{nnet_forward.1} parent=11 // pred_check
        %p538 = pneg %p242
      $region46: #{nnet_forward.1} parent=11 // pred_check_branch
        %540 = sbr.rel (%p538) target = $region48
      $region47: #{nnet_forward.1} parent=11 // pred_region
        _
      $region48: #{nnet_forward.1} parent=11 // pred_fallthru
        _
      // Predicated region
      $region49: #{nnet_forward.1} parent=11 // pred_check
        %p541 = pneg %p263
      $region50: #{nnet_forward.1} parent=11 // pred_check_branch
        %543 = sbr.rel (%p541) target = $region52
      $region51: #{nnet_forward.1} parent=11 // pred_region
        _
      $region52: #{nnet_forward.1} parent=11 // pred_fallthru
        _
      // Predicated region
      $region53: #{nnet_forward.1} parent=11 // pred_check
        %p544 = pneg %p284
      $region54: #{nnet_forward.1} parent=11 // pred_check_branch
        %546 = sbr.rel (%p544) target = $region56
      $region55: #{nnet_forward.1} parent=11 // pred_region
        _
      $region56: #{nnet_forward.1} parent=11 // pred_fallthru
        _
      // Predicated region
      $region57: #{nnet_forward.1} parent=11 // pred_check
        %p547 = pneg %p305
      $region58: #{nnet_forward.1} parent=11 // pred_check_branch
        %549 = sbr.rel (%p547) target = $region60
      $region59: #{nnet_forward.1} parent=11 // pred_region
        _
      $region60: #{nnet_forward.1} parent=11 // pred_fallthru
        _
      // Predicated region
      $region61: #{nnet_forward.1} parent=11 // pred_check
        %p550 = pneg %p326
      $region62: #{nnet_forward.1} parent=11 // pred_check_branch
        %552 = sbr.rel (%p550) target = $region64
      $region63: #{nnet_forward.1} parent=11 // pred_region
        _
      $region64: #{nnet_forward.1} parent=11 // pred_fallthru
        _
      // Predicated region
      $region65: #{nnet_forward.1} parent=11 // pred_check
        %p553 = pneg %p347
      $region66: #{nnet_forward.1} parent=11 // pred_check_branch
        %555 = sbr.rel (%p553) target = $region68
      $region67: #{nnet_forward.1} parent=11 // pred_region
        _
      $region68: #{nnet_forward.1} parent=11 // pred_fallthru
        _
      // Predicated region
      $region69: #{nnet_forward.1} parent=11 // pred_check
        %p556 = pneg %p368
      $region70: #{nnet_forward.1} parent=11 // pred_check_branch
        %558 = sbr.rel (%p556) target = $region72
      $region71: #{nnet_forward.1} parent=11 // pred_region
        _
      $region72: #{nnet_forward.1} parent=11 // pred_fallthru
        _
      // Predicated region
      $region73: #{nnet_forward.1} parent=11 // pred_check
        %p559 = pneg %p389
      $region74: #{nnet_forward.1} parent=11 // pred_check_branch
        %561 = sbr.rel (%p559) target = $region76
      $region75: #{nnet_forward.1} parent=11 // pred_region
        _
      $region76: #{nnet_forward.1} parent=11 // pred_fallthru
        _
      // Predicated region
      $region77: #{nnet_forward.1} parent=11 // pred_check
        %p562 = pneg %p410
      $region78: #{nnet_forward.1} parent=11 // pred_check_branch
        %564 = sbr.rel (%p562) target = $region80
      $region79: #{nnet_forward.1} parent=11 // pred_region
        _
      $region80: #{nnet_forward.1} parent=11 // pred_fallthru
        _
      // Predicated region
      $region81: #{nnet_forward.1} parent=11 // pred_check
        %p565 = pneg %p431
      $region82: #{nnet_forward.1} parent=11 // pred_check_branch
        %567 = sbr.rel (%p565) target = $region84
      $region83: #{nnet_forward.1} parent=11 // pred_region
        _
      $region84: #{nnet_forward.1} parent=11 // pred_fallthru
        _
      // Predicated region
      $region85: #{nnet_forward.1} parent=11 // pred_check
        %p568 = pneg %p452
      $region86: #{nnet_forward.1} parent=11 // pred_check_branch
        %570 = sbr.rel (%p568) target = $region88
      $region87: #{nnet_forward.1} parent=11 // pred_region
        _
      $region88: #{nnet_forward.1} parent=11 // pred_fallthru
        _
      // Predicated region
      $region89: #{nnet_forward.1} parent=11 // pred_check
        %p571 = pneg %p473
      $region90: #{nnet_forward.1} parent=11 // pred_check_branch
        %573 = sbr.rel (%p571) target = $region92
      $region91: #{nnet_forward.1} parent=11 // pred_region
        _
      $region92: #{nnet_forward.1} parent=11 // pred_fallthru
        _
    $region12: #{nnet_forward.1} parent=5 // pred_fallthru
      _
    %p574 = scmp.lt.s32.totalorder %s27, 2
    // Predicated region
    $region93: #{nnet_forward.1} parent=5 // pred_check
      %p575 = pneg %p574
    $region94: #{nnet_forward.1} parent=5 // pred_check_branch
      %577 = sbr.rel (%p575) target = $region96
    $region95: #{nnet_forward.1} parent=5 // pred_region
      // Predicated region
      $region97: #{nnet_forward.1} parent=95 // pred_check
        %p578 = pneg %p47
      $region98: #{nnet_forward.1} parent=95 // pred_check_branch
        %580 = sbr.rel (%p578) target = $region100
      $region99: #{nnet_forward.1} parent=95 // pred_region
        %p581 = scmp.lt.s32.totalorder %s27, 1
        %s582 = scalar_select %p581, %s27, 1
        %s583 = smul.addr %s582, 2
        %s584 = smul.addr %s583, 4
        %s585 = scalar_lea.vmem %s0, %s584
      $region100: #{nnet_forward.1} parent=95 // pred_fallthru
        _
    $region96: #{nnet_forward.1} parent=5 // pred_fallthru
      _
    %p586 = scmp.le.s32.totalorder 1, %s27
    %p587 = scmp.lt.s32.totalorder %s27, 3
    %p588 = pnand %p586, %p587
    %p589 = pneg %p588
    // Predicated region
    $region101: #{nnet_forward.1} parent=5 // pred_check
      _
    $region102: #{nnet_forward.1} parent=5 // pred_check_branch
      %591 = sbr.rel (%p588) target = $region104
    $region103: #{nnet_forward.1} parent=5 // pred_region
      %s592 = ssub.s32 %s27, 1
      %p593 = scmp.lt.s32.totalorder %s32, 1
      %s594 = scalar_select %p593, %s32, 1
      %s595 = smul.addr %s594, 2
      %s596 = smul.addr %s595, 4
      %s597 = scalar_lea.vmem %s0, %s596
      %p598 = pneg %p53
      %p599 = pneg %p50
      %p600 = pneg %p74
      %p601 = pneg %p71
      %p602 = pneg %p95
      %p603 = pneg %p92
      %p604 = pneg %p116
      %p605 = pneg %p113
      %p606 = pneg %p137
      %p607 = pneg %p134
      %p608 = pneg %p158
      %p609 = pneg %p155
      %p610 = pneg %p179
      %p611 = pneg %p176
      %p612 = pneg %p200
      %p613 = pneg %p197
      %p614 = pneg %p221
      %p615 = pneg %p218
      %p616 = pneg %p242
      %p617 = pneg %p239
      %p618 = pneg %p263
      %p619 = pneg %p260
      %p620 = pneg %p284
      %p621 = pneg %p281
      %p622 = pneg %p305
      %p623 = pneg %p302
      %p624 = pneg %p326
      %p625 = pneg %p323
      %p626 = pneg %p347
      %p627 = pneg %p344
      %p628 = pneg %p368
      %p629 = pneg %p365
      %p630 = pneg %p389
      %p631 = pneg %p386
      %p632 = pneg %p410
      %p633 = pneg %p407
      %p634 = pneg %p431
      %p635 = pneg %p428
      %p636 = pneg %p452
      %p637 = pneg %p449
      %p638 = pneg %p473
      %p639 = pneg %p470
      %p640 = pneg %p499
      %p641 = pneg %p496
      %p642 = scmp.lt.s32.totalorder %s32, 1
      %s643 = scalar_select %p642, %s32, 1
      %s644 = smul.addr %s643, 2
      %s645 = smul.addr %s644, 8
      %s646 = scalar_lea.vmem %s21, %s645
      %p647 = scmp.lt.s32.totalorder %s32, 1
      %s648 = scalar_select %p647, %s32, 1
      %s649 = smul.addr %s648, 2
      %s650 = smul.addr %s649, 4
      %s651 = scalar_lea.vmem %s0, %s650
      %p652 = scmp.lt.s32.totalorder %s32, 1
      %s653 = scalar_select %p652, %s32, 1
      %s654 = smul.addr %s653, 2
      %s655 = smul.addr %s654, 8
      %s656 = scalar_lea.vmem %s21, %s655
      %v657 = vld [vmem:[%s651] sm:$0xff]
      %v658 = vld [vmem:[%s15] sm:$0xff]
      %v659 = vld [vmem:[%s15 + $0x8] sm:$0xff]
      %v660 = vld [vmem:[%s15 + $0x10] sm:$0x1]
      %v661 = vld [vmem:[%s15 + $0x18] sm:$0x1]
      %v663 = vcombine.high %v657, %v657
      %664 = vrot.lane.b32.xlu0 %v663, 17
      %v665 = vpop.permute.xlu0 %664
      %667 = vrot.lane.b32.xlu0 %v657, 17
      %v668 = vpop.permute.xlu0 %667
      %vm669 = vcmask 138240
      %v670 = vsel %vm669, %v668, %v665
      %v673 = vsel %vm669, %v665, %v668
      %v674 = vlaneseq
      %v675 = vshrl.u32 %v674, 7
      %v676 = vsub.s32 0, %v675
      %v677 = vrot.slane %v658, %v676
      %v678 = vlaneseq
      %v679 = vshrl.u32 %v678, 7
      %v680 = vsub.s32 0, %v679
      %v681 = vrot.slane %v659, %v680
      %v682 = vmul.f32 %v673, %v677
      %v683 = vmul.f32 %v670, %v681
      %684 = vrot.lane.b32.xlu0 %v663, 16
      %v685 = vpop.permute.xlu0 %684
      %687 = vrot.lane.b32.xlu0 %v657, 16
      %v688 = vpop.permute.xlu0 %687
      %vm689 = vcmask 130048
      %v690 = vsel %vm689, %v688, %v685
      %v693 = vsel %vm689, %v685, %v688
      %v694 = vlaneseq
      %v695 = vshrl.u32 %v694, 7
      %v696 = vsub.s32 1, %v695
      %v697 = vrot.slane %v658, %v696
      %v698 = vlaneseq
      %v699 = vshrl.u32 %v698, 7
      %v700 = vsub.s32 1, %v699
      %v701 = vrot.slane %v659, %v700
      %v702 = vmul.f32 %v693, %v697
      %v703 = vmul.f32 %v690, %v701
      %704 = vrot.lane.b32.xlu0 %v663, 15
      %v705 = vpop.permute.xlu0 %704
      %707 = vrot.lane.b32.xlu0 %v657, 15
      %v708 = vpop.permute.xlu0 %707
      %vm709 = vcmask 121856
      %v710 = vsel %vm709, %v708, %v705
      %v713 = vsel %vm709, %v705, %v708
      %v714 = vlaneseq
      %v715 = vshrl.u32 %v714, 7
      %v716 = vsub.s32 2, %v715
      %v717 = vrot.slane %v658, %v716
      %v718 = vlaneseq
      %v719 = vshrl.u32 %v718, 7
      %v720 = vsub.s32 2, %v719
      %v721 = vrot.slane %v659, %v720
      %v722 = vmul.f32 %v713, %v717
      %v723 = vmul.f32 %v710, %v721
      %724 = vrot.lane.b32.xlu0 %v663, 1
      %v725 = vpop.permute.xlu0 %724
      %727 = vrot.lane.b32.xlu0 %v657, 1
      %v728 = vpop.permute.xlu0 %727
      %vm729 = vcmask 7168
      %v730 = vsel %vm729, %v728, %v725
      %v733 = vsel %vm729, %v725, %v728
      %v734 = vlaneseq
      %v735 = vshrl.u32 %v734, 7
      %v736 = vsub.s32 3, %v735
      %v737 = vrot.slane %v658, %v736
      %v738 = vlaneseq
      %v739 = vshrl.u32 %v738, 7
      %v740 = vsub.s32 3, %v739
      %v741 = vrot.slane %v659, %v740
      %v742 = vmul.f32 %v733, %v737
      %v743 = vmul.f32 %v730, %v741
      %744 = vrot.lane.b32.xlu0 %v657, 127
      %v745 = vpop.permute.xlu0 %744
      %746 = vrot.lane.b32.xlu0 %v663, 127
      %v747 = vpop.permute.xlu0 %746
      %vm748 = vcmask 1039360
      %v749 = vsel %vm748, %v745, %v747
      %v753 = vsel %vm748, %v747, %v745
      %v754 = vlaneseq
      %v755 = vshrl.u32 %v754, 7
      %v756 = vsub.s32 5, %v755
      %v757 = vrot.slane %v658, %v756
      %v758 = vlaneseq
      %v759 = vshrl.u32 %v758, 7
      %v760 = vsub.s32 5, %v759
      %v761 = vrot.slane %v659, %v760
      %v762 = vmul.f32 %v749, %v757
      %v763 = vmul.f32 %v753, %v761
      %764 = vrot.lane.b32.xlu0 %v657, 113
      %v765 = vpop.permute.xlu0 %764
      %766 = vrot.lane.b32.xlu0 %v663, 113
      %v767 = vpop.permute.xlu0 %766
      %vm768 = vcmask 924672
      %v769 = vsel %vm768, %v765, %v767
      %v773 = vsel %vm768, %v767, %v765
      %v774 = vlaneseq
      %v775 = vshrl.u32 %v774, 7
      %v776 = vsub.s32 6, %v775
      %v777 = vrot.slane %v658, %v776
      %v778 = vlaneseq
      %v779 = vshrl.u32 %v778, 7
      %v780 = vsub.s32 6, %v779
      %v781 = vrot.slane %v659, %v780
      %v782 = vmul.f32 %v769, %v777
      %v783 = vmul.f32 %v773, %v781
      %784 = vrot.lane.b32.xlu0 %v657, 112
      %v785 = vpop.permute.xlu0 %784
      %786 = vrot.lane.b32.xlu0 %v663, 112
      %v787 = vpop.permute.xlu0 %786
      %vm788 = vcmask 916480
      %v789 = vsel %vm788, %v785, %v787
      %v793 = vsel %vm788, %v787, %v785
      %v794 = vlaneseq
      %v795 = vshrl.u32 %v794, 7
      %v796 = vsub.s32 7, %v795
      %v797 = vrot.slane %v658, %v796
      %v798 = vlaneseq
      %v799 = vshrl.u32 %v798, 7
      %v800 = vsub.s32 7, %v799
      %v801 = vrot.slane %v659, %v800
      %v802 = vmul.f32 %v789, %v797
      %v803 = vmul.f32 %v793, %v801
      %804 = vrot.lane.b32.xlu0 %v657, 111
      %v805 = vpop.permute.xlu0 %804
      %806 = vrot.lane.b32.xlu0 %v663, 111
      %v807 = vpop.permute.xlu0 %806
      %vm808 = vcmask 908288
      %v809 = vsel %vm808, %v805, %v807
      %v813 = vsel %vm808, %v807, %v805
      %v814 = vlaneseq
      %v815 = vshrl.u32 %v814, 7
      %v816 = vsub.s32 0, %v815
      %v817 = vrot.slane %v660, %v816
      %v818 = vlaneseq
      %v819 = vshrl.u32 %v818, 7
      %v820 = vsub.s32 0, %v819
      %v821 = vrot.slane %v661, %v820
      %v822 = vmul.f32 %v809, %v817
      %v823 = vmul.f32 %v813, %v821
      %v826 = vrot.slane %v702, 4
      %v827 = vrot.slane %v703, 4
      %v832 = vrot.slane %v742, 4
      %v833 = vrot.slane %v743, 4
      %v839 = vrot.slane %v762, 4
      %v840 = vrot.slane %v763, 4
      %v845 = vrot.slane %v802, 4
      %v846 = vrot.slane %v803, 4
      %vm849 = vcmask 1043456
      %v850 = vsel %vm849, %v682, %v826
      %v851 = vsel %vm849, %v683, %v827
      %v852 = vsel %vm849, %v722, %v832
      %v853 = vsel %vm849, %v723, %v833
      %v854 = vsel %vm849, %v657, %v839
      %v855 = vsel %vm849, %v663, %v840
      %v856 = vsel %vm849, %v782, %v845
      %v857 = vsel %vm849, %v783, %v846
      %v858 = vld [vmem:[%s1] sm:$0xff]
      %v859 = vld [vmem:[%s1 + $0x8] sm:$0xff]
      %v860 = vld [vmem:[%s2] sm:$0xff]
      %v861 = vld [vmem:[%s2 + $0x8] sm:$0xff]
      %863 = vset.pattern.permute.xlu0 0
      %864 = vperm.xlu0 %863, %v860
      %v865 = vpop.permute.xlu0 %864
      %868 = vset.pattern.permute.xlu0 0
      %869 = vperm.xlu0 %868, %v861
      %v870 = vpop.permute.xlu0 %869
      %vm872 = vcmask 293888
      %v874 = vsel %vm872, %v858, 0
      %v877 = vsel %vm872, %v859, 0
      %v880 = vsel %vm849, %v822, 0
      %v883 = vsel %vm849, %v823, 0
      %885 = vmatprep.subr.mxu0 0.0
      %886 = vmatpush1.msra.mxu0 0.0
      %887 = vmatprep.subr.mxu0 0.0
      %888 = vmatpush1.msra.mxu0 0.0
      %889 = vmatprep.subr.mxu0 0.0
      %890 = vmatpush1.msra.mxu0 0.0
      %891 = vmatprep.subr.mxu0 0.0
      %892 = vmatpush1.msra.mxu0 0.0
      %893 = vmatprep.subr.mxu0 0.0
      %894 = vmatpush1.msra.mxu0 0.0
      %895 = vmatprep.subr.mxu0 0.0
      %896 = vmatpush1.msra.mxu0 0.0
      %897 = vmatprep.subr.mxu0 0.0
      %898 = vmatpush1.msra.mxu0 0.0
      %899 = vmatprep.subr.mxu0 0.0
      %900 = vmatpush1.msra.mxu0 0.0
      %901 = vmatprep.subr.mxu0 0.0
      %902 = vmatpush1.msra.mxu0 0.0
      %903 = vmatprep.subr.mxu0 0.0
      %904 = vmatpush1.msra.mxu0 0.0
      %905 = vmatprep.subr.mxu0 0.0
      %906 = vmatpush1.msra.mxu0 0.0
      %907 = vmatprep.subr.mxu0 %v883
      %908 = vmatpush1.msra.mxu0 %v880
      %909 = vmatprep.subr.mxu0 %v857
      %910 = vmatpush1.msra.mxu0 %v856
      %911 = vmatprep.subr.mxu0 %v855
      %912 = vmatpush1.msra.mxu0 %v854
      %913 = vmatprep.subr.mxu0 %v853
      %914 = vmatpush1.msra.mxu0 %v852
      %915 = vmatprep.subr.mxu0 %v851
      %916 = vmatpush1.msra.mxu0 %v850
      %917 = vmatprep.subr.mxu0 0.0
      %918 = vmatpush2.msra.mxu0 0.0
      %919 = vmatprep.subr.mxu0 0.0
      %920 = vmatpush2.msra.mxu0 0.0
      %921 = vmatprep.subr.mxu0 0.0
      %922 = vmatpush2.msra.mxu0 0.0
      %923 = vmatprep.subr.mxu0 0.0
      %924 = vmatpush2.msra.mxu0 0.0
      %925 = vmatprep.subr.mxu0 0.0
      %926 = vmatpush2.msra.mxu0 0.0
      %927 = vmatprep.subr.mxu0 0.0
      %928 = vmatpush2.msra.mxu0 0.0
      %929 = vmatprep.subr.mxu0 0.0
      %930 = vmatpush2.msra.mxu0 0.0
      %931 = vmatprep.subr.mxu0 0.0
      %932 = vmatpush2.msra.mxu0 0.0
      %933 = vmatprep.subr.mxu0 0.0
      %934 = vmatpush2.msra.mxu0 0.0
      %935 = vmatprep.subr.mxu0 0.0
      %936 = vmatpush2.msra.mxu0 0.0
      %937 = vmatprep.subr.mxu0 0.0
      %938 = vmatpush2.msra.mxu0 0.0
      %939 = vmatprep.subr.mxu0 0.0
      %940 = vmatpush2.msra.mxu0 0.0
      %941 = vmatprep.subr.mxu0 0.0
      %942 = vmatpush2.msra.mxu0 0.0
      %943 = vmatprep.subr.mxu0 0.0
      %944 = vmatpush2.msra.mxu0 0.0
      %945 = vmatprep.subr.mxu0 0.0
      %946 = vmatpush2.msra.mxu0 0.0
      %947 = vmatprep.subr.mxu0 0.0
      %948 = vmatpush2.msra.mxu0 0.0
      %949 = vmatprep.mubr.f32.mxu0 0.0
      %950 = vmatmul.mubr.f32.gmra.mxu0 %v874
      %v951 = vpop.f32.mrf.mxu0
      %v952 = vadd.f32 %v865, %v951
      %v953 = vpop.f32.mrf.mxu0
      %v954 = vadd.f32 %v865, %v953
      %955 = vmatprep.mubr.f32.mxu0 0.0
      %956 = vmatmul.mubr.f32.gmra.mxu0 %v877
      %v957 = vpop.f32.mrf.mxu0
      %v958 = vadd.f32 %v870, %v957
      %v959 = vpop.f32.mrf.mxu0
      %v960 = vadd.f32 %v870, %v959
      %961 = vdwg.mxu0
      %v962 = vmax.f32 %v952, 0.0
      %v963 = vmax.f32 %v954, 0.0
      %v964 = vmax.f32 %v958, 0.0
      %v965 = vmax.f32 %v960, 0.0
      %968 = vrot.lane.b32.xlu0 %v963, 17
      %v969 = vpop.permute.xlu0 %968
      %970 = vrot.lane.b32.xlu0 %v965, 17
      %v971 = vpop.permute.xlu0 %970
      %976 = vrot.lane.b32.xlu0 %v962, 17
      %v977 = vpop.permute.xlu0 %976
      %978 = vrot.lane.b32.xlu0 %v964, 17
      %v979 = vpop.permute.xlu0 %978
      %v980 = vsel %vm669, %v977, %v969
      %v981 = vsel %vm669, %v979, %v971
      %v986 = vsel %vm669, %v969, %v977
      %v987 = vsel %vm669, %v971, %v979
      %v988 = vmul.f32 %v986, %v677
      %v989 = vmul.f32 %v980, %v681
      %v990 = vmul.f32 %v987, %v677
      %v991 = vmul.f32 %v981, %v681
      %992 = vrot.lane.b32.xlu0 %v963, 16
      %v993 = vpop.permute.xlu0 %992
      %994 = vrot.lane.b32.xlu0 %v965, 16
      %v995 = vpop.permute.xlu0 %994
      %998 = vrot.lane.b32.xlu0 %v962, 16
      %v999 = vpop.permute.xlu0 %998
      %1000 = vrot.lane.b32.xlu0 %v964, 16
      %v1001 = vpop.permute.xlu0 %1000
      %v1002 = vsel %vm689, %v999, %v993
      %v1003 = vsel %vm689, %v1001, %v995
      %v1008 = vsel %vm689, %v993, %v999
      %v1009 = vsel %vm689, %v995, %v1001
      %v1010 = vmul.f32 %v1008, %v697
      %v1011 = vmul.f32 %v1002, %v701
      %v1012 = vmul.f32 %v1009, %v697
      %v1013 = vmul.f32 %v1003, %v701
      %1014 = vrot.lane.b32.xlu0 %v963, 15
      %v1015 = vpop.permute.xlu0 %1014
      %1016 = vrot.lane.b32.xlu0 %v965, 15
      %v1017 = vpop.permute.xlu0 %1016
      %1020 = vrot.lane.b32.xlu0 %v962, 15
      %v1021 = vpop.permute.xlu0 %1020
      %1022 = vrot.lane.b32.xlu0 %v964, 15
      %v1023 = vpop.permute.xlu0 %1022
      %v1024 = vsel %vm709, %v1021, %v1015
      %v1025 = vsel %vm709, %v1023, %v1017
      %v1030 = vsel %vm709, %v1015, %v1021
      %v1031 = vsel %vm709, %v1017, %v1023
      %v1032 = vmul.f32 %v1030, %v717
      %v1033 = vmul.f32 %v1024, %v721
      %v1034 = vmul.f32 %v1031, %v717
      %v1035 = vmul.f32 %v1025, %v721
      %1036 = vrot.lane.b32.xlu0 %v963, 1
      %v1037 = vpop.permute.xlu0 %1036
      %1038 = vrot.lane.b32.xlu0 %v965, 1
      %v1039 = vpop.permute.xlu0 %1038
      %1042 = vrot.lane.b32.xlu0 %v962, 1
      %v1043 = vpop.permute.xlu0 %1042
      %1044 = vrot.lane.b32.xlu0 %v964, 1
      %v1045 = vpop.permute.xlu0 %1044
      %v1046 = vsel %vm729, %v1043, %v1037
      %v1047 = vsel %vm729, %v1045, %v1039
      %v1052 = vsel %vm729, %v1037, %v1043
      %v1053 = vsel %vm729, %v1039, %v1045
      %v1054 = vmul.f32 %v1052, %v737
      %v1055 = vmul.f32 %v1046, %v741
      %v1056 = vmul.f32 %v1053, %v737
      %v1057 = vmul.f32 %v1047, %v741
      %1058 = vrot.lane.b32.xlu0 %v962, 127
      %v1059 = vpop.permute.xlu0 %1058
      %1060 = vrot.lane.b32.xlu0 %v963, 127
      %v1061 = vpop.permute.xlu0 %1060
      %1062 = vrot.lane.b32.xlu0 %v964, 127
      %v1063 = vpop.permute.xlu0 %1062
      %1064 = vrot.lane.b32.xlu0 %v965, 127
      %v1065 = vpop.permute.xlu0 %1064
      %v1066 = vsel %vm748, %v1059, %v1061
      %v1067 = vsel %vm748, %v1063, %v1065
      %v1074 = vsel %vm748, %v1061, %v1059
      %v1075 = vsel %vm748, %v1065, %v1063
      %v1076 = vmul.f32 %v1066, %v757
      %v1077 = vmul.f32 %v1074, %v761
      %v1078 = vmul.f32 %v1067, %v757
      %v1079 = vmul.f32 %v1075, %v761
      %1080 = vrot.lane.b32.xlu0 %v962, 113
      %v1081 = vpop.permute.xlu0 %1080
      %1082 = vrot.lane.b32.xlu0 %v963, 113
      %v1083 = vpop.permute.xlu0 %1082
      %1084 = vrot.lane.b32.xlu0 %v964, 113
      %v1085 = vpop.permute.xlu0 %1084
      %1086 = vrot.lane.b32.xlu0 %v965, 113
      %v1087 = vpop.permute.xlu0 %1086
      %v1088 = vsel %vm768, %v1081, %v1083
      %v1089 = vsel %vm768, %v1085, %v1087
      %v1096 = vsel %vm768, %v1083, %v1081
      %v1097 = vsel %vm768, %v1087, %v1085
      %v1098 = vmul.f32 %v1088, %v777
      %v1099 = vmul.f32 %v1096, %v781
      %v1100 = vmul.f32 %v1089, %v777
      %v1101 = vmul.f32 %v1097, %v781
      %1102 = vrot.lane.b32.xlu0 %v962, 112
      %v1103 = vpop.permute.xlu0 %1102
      %1104 = vrot.lane.b32.xlu0 %v963, 112
      %v1105 = vpop.permute.xlu0 %1104
      %1106 = vrot.lane.b32.xlu0 %v964, 112
      %v1107 = vpop.permute.xlu0 %1106
      %1108 = vrot.lane.b32.xlu0 %v965, 112
      %v1109 = vpop.permute.xlu0 %1108
      %v1110 = vsel %vm788, %v1103, %v1105
      %v1111 = vsel %vm788, %v1107, %v1109
      %v1118 = vsel %vm788, %v1105, %v1103
      %v1119 = vsel %vm788, %v1109, %v1107
      %v1120 = vmul.f32 %v1110, %v797
      %v1121 = vmul.f32 %v1118, %v801
      %v1122 = vmul.f32 %v1111, %v797
      %v1123 = vmul.f32 %v1119, %v801
      %1124 = vrot.lane.b32.xlu0 %v962, 111
      %v1125 = vpop.permute.xlu0 %1124
      %1126 = vrot.lane.b32.xlu0 %v963, 111
      %v1127 = vpop.permute.xlu0 %1126
      %1128 = vrot.lane.b32.xlu0 %v964, 111
      %v1129 = vpop.permute.xlu0 %1128
      %1130 = vrot.lane.b32.xlu0 %v965, 111
      %v1131 = vpop.permute.xlu0 %1130
      %v1132 = vsel %vm808, %v1125, %v1127
      %v1133 = vsel %vm808, %v1129, %v1131
      %v1140 = vsel %vm808, %v1127, %v1125
      %v1141 = vsel %vm808, %v1131, %v1129
      %v1142 = vmul.f32 %v1132, %v817
      %v1143 = vmul.f32 %v1140, %v821
      %v1144 = vmul.f32 %v1133, %v817
      %v1145 = vmul.f32 %v1141, %v821
      %v1146 = vld [vmem:[%s3] sm:$0xff]
      %v1147 = vld [vmem:[%s3 + $0x8] sm:$0xff]
      %v1148 = vld [vmem:[%s3 + $0x10] sm:$0xff]
      %v1149 = vld [vmem:[%s3 + $0x18] sm:$0xff]
      %v1150 = vld [vmem:[%s4] sm:$0xff]
      %v1151 = vld [vmem:[%s4 + $0x8] sm:$0xff]
      %1153 = vset.pattern.permute.xlu0 0
      %1154 = vperm.xlu0 %1153, %v1150
      %v1155 = vpop.permute.xlu0 %1154
      %1158 = vset.pattern.permute.xlu0 0
      %1159 = vperm.xlu0 %1158, %v1151
      %v1160 = vpop.permute.xlu0 %1159
      %v1163 = vsel %vm689, %v1147, 0
      %v1166 = vsel %vm689, %v1149, 0
      %1168 = vmatprep.subr.mxu0 %v1123
      %1169 = vmatpush1.msra.mxu0 %v1122
      %1170 = vmatprep.subr.mxu0 %v1121
      %1171 = vmatpush1.msra.mxu0 %v1120
      %1172 = vmatprep.subr.mxu0 %v1101
      %1173 = vmatpush1.msra.mxu0 %v1100
      %1174 = vmatprep.subr.mxu0 %v1099
      %1175 = vmatpush1.msra.mxu0 %v1098
      %1176 = vmatprep.subr.mxu0 %v1079
      %1177 = vmatpush1.msra.mxu0 %v1078
      %1178 = vmatprep.subr.mxu0 %v1077
      %1179 = vmatpush1.msra.mxu0 %v1076
      %1180 = vmatprep.subr.mxu0 %v965
      %1181 = vmatpush1.msra.mxu0 %v964
      %1182 = vmatprep.subr.mxu0 %v963
      %1183 = vmatpush1.msra.mxu0 %v962
      %1184 = vmatprep.subr.mxu0 %v1057
      %1185 = vmatpush1.msra.mxu0 %v1056
      %1186 = vmatprep.subr.mxu0 %v1055
      %1187 = vmatpush1.msra.mxu0 %v1054
      %1188 = vmatprep.subr.mxu0 %v1035
      %1189 = vmatpush1.msra.mxu0 %v1034
      %1190 = vmatprep.subr.mxu0 %v1033
      %1191 = vmatpush1.msra.mxu0 %v1032
      %1192 = vmatprep.subr.mxu0 %v1013
      %1193 = vmatpush1.msra.mxu0 %v1012
      %1194 = vmatprep.subr.mxu0 %v1011
      %1195 = vmatpush1.msra.mxu0 %v1010
      %1196 = vmatprep.subr.mxu0 %v991
      %1197 = vmatpush1.msra.mxu0 %v990
      %1198 = vmatprep.subr.mxu0 %v989
      %1199 = vmatpush1.msra.mxu0 %v988
      %1200 = vmatprep.subr.mxu0 0.0
      %1201 = vmatpush2.msra.mxu0 0.0
      %1202 = vmatprep.subr.mxu0 0.0
      %1203 = vmatpush2.msra.mxu0 0.0
      %1204 = vmatprep.subr.mxu0 0.0
      %1205 = vmatpush2.msra.mxu0 0.0
      %1206 = vmatprep.subr.mxu0 0.0
      %1207 = vmatpush2.msra.mxu0 0.0
      %1208 = vmatprep.subr.mxu0 0.0
      %1209 = vmatpush2.msra.mxu0 0.0
      %1210 = vmatprep.subr.mxu0 0.0
      %1211 = vmatpush2.msra.mxu0 0.0
      %1212 = vmatprep.subr.mxu0 0.0
      %1213 = vmatpush2.msra.mxu0 0.0
      %1214 = vmatprep.subr.mxu0 0.0
      %1215 = vmatpush2.msra.mxu0 0.0
      %1216 = vmatprep.subr.mxu0 0.0
      %1217 = vmatpush2.msra.mxu0 0.0
      %1218 = vmatprep.subr.mxu0 0.0
      %1219 = vmatpush2.msra.mxu0 0.0
      %1220 = vmatprep.subr.mxu0 0.0
      %1221 = vmatpush2.msra.mxu0 0.0
      %1222 = vmatprep.subr.mxu0 0.0
      %1223 = vmatpush2.msra.mxu0 0.0
      %1224 = vmatprep.subr.mxu0 0.0
      %1225 = vmatpush2.msra.mxu0 0.0
      %1226 = vmatprep.subr.mxu0 0.0
      %1227 = vmatpush2.msra.mxu0 0.0
      %1228 = vmatprep.subr.mxu0 %v1145
      %1229 = vmatpush2.msra.mxu0 %v1144
      %1230 = vmatprep.subr.mxu0 %v1143
      %1231 = vmatpush2.msra.mxu0 %v1142
      %1232 = vmatprep.mubr.f32.mxu0 %v1163
      %1233 = vmatmul.mubr.f32.gmra.mxu0 %v1146
      %v1234 = vpop.f32.mrf.mxu0
      %v1235 = vadd.f32 %v1155, %v1234
      %v1236 = vpop.f32.mrf.mxu0
      %v1237 = vadd.f32 %v1155, %v1236
      %1238 = vmatprep.mubr.f32.mxu0 %v1166
      %1239 = vmatmul.mubr.f32.gmra.mxu0 %v1148
      %v1240 = vpop.f32.mrf.mxu0
      %v1241 = vadd.f32 %v1160, %v1240
      %v1242 = vpop.f32.mrf.mxu0
      %v1243 = vadd.f32 %v1160, %v1242
      %1244 = vdwg.mxu0
      %v1245 = vmax.f32 %v1235, 0.0
      %v1246 = vmax.f32 %v1237, 0.0
      %v1247 = vmax.f32 %v1241, 0.0
      %v1248 = vmax.f32 %v1243, 0.0
      %1253 = vrot.lane.b32.xlu0 %v1245, 127
      %v1254 = vpop.permute.xlu0 %1253
      %1255 = vrot.lane.b32.xlu0 %v1246, 127
      %v1256 = vpop.permute.xlu0 %1255
      %1257 = vrot.lane.b32.xlu0 %v1247, 127
      %v1258 = vpop.permute.xlu0 %1257
      %1259 = vrot.lane.b32.xlu0 %v1248, 127
      %v1260 = vpop.permute.xlu0 %1259
      %v1261 = vsel %vm748, %v1254, %v1256
      %v1262 = vsel %vm748, %v1258, %v1260
      %v1269 = vsel %vm748, %v1256, %v1254
      %v1270 = vsel %vm748, %v1260, %v1258
      %v1271 = vmax.f32 %v1245, %v1261
      %v1272 = vmax.f32 %v1246, %v1269
      %v1273 = vmax.f32 %v1247, %v1262
      %v1274 = vmax.f32 %v1248, %v1270
      %1279 = vrot.lane.b32.xlu0 %v1271, 112
      %v1280 = vpop.permute.xlu0 %1279
      %1281 = vrot.lane.b32.xlu0 %v1272, 112
      %v1282 = vpop.permute.xlu0 %1281
      %1283 = vrot.lane.b32.xlu0 %v1273, 112
      %v1284 = vpop.permute.xlu0 %1283
      %1285 = vrot.lane.b32.xlu0 %v1274, 112
      %v1286 = vpop.permute.xlu0 %1285
      %v1287 = vsel %vm788, %v1280, %v1282
      %v1288 = vsel %vm788, %v1284, %v1286
      %v1295 = vsel %vm788, %v1282, %v1280
      %v1296 = vsel %vm788, %v1286, %v1284
      %v1297 = vmax.f32 %v1271, %v1287
      %v1298 = vmax.f32 %v1272, %v1295
      %v1299 = vmax.f32 %v1273, %v1288
      %v1300 = vmax.f32 %v1274, %v1296
      %v1301 = vld [vmem:[%s17] sm:$0xff]
      %v1302 = vld [vmem:[%s17 + $0x8] sm:$0xff]
      %v1303 = vld [vmem:[%s17 + $0x10] sm:$0xff]
      %v1304 = vld [vmem:[%s17 + $0x18] sm:$0xff]
      %v1305 = vld [vmem:[%s17 + $0x20] sm:$0xff]
      %v1306 = vld [vmem:[%s17 + $0x28] sm:$0xff]
      %v1307 = vld [vmem:[%s17 + $0x30] sm:$0xff]
      %v1308 = vld [vmem:[%s17 + $0x38] sm:$0xff]
      %v1309 = vld [vmem:[%s17 + $0x40] sm:$0xff]
      %v1310 = vld [vmem:[%s17 + $0x48] sm:$0xff]
      %v1311 = vld [vmem:[%s17 + $0x50] sm:$0xff]
      %v1312 = vld [vmem:[%s17 + $0x58] sm:$0xff]
      %v1313 = vld [vmem:[%s17 + $0x60] sm:$0xff]
      %v1314 = vld [vmem:[%s17 + $0x68] sm:$0xff]
      %v1315 = vld [vmem:[%s17 + $0x70] sm:$0xff]
      %v1316 = vld [vmem:[%s17 + $0x78] sm:$0xff]
      %v1317 = vld [vmem:[%s17 + $0x80] sm:$0xff]
      %v1318 = vld [vmem:[%s17 + $0x88] sm:$0xff]
      %v1319 = vld [vmem:[%s17 + $0x90] sm:$0xff]
      %v1320 = vld [vmem:[%s17 + $0x98] sm:$0xff]
      %v1321 = vld [vmem:[%s17 + $0xa0] sm:$0xff]
      %v1322 = vld [vmem:[%s17 + $0xa8] sm:$0xff]
      %v1323 = vld [vmem:[%s17 + $0xb0] sm:$0xff]
      %v1324 = vld [vmem:[%s17 + $0xb8] sm:$0xff]
      %v1325 = vld [vmem:[%s17 + $0xc0] sm:$0xff]
      %v1326 = vld [vmem:[%s17 + $0xc8] sm:$0xff]
      %v1327 = vld [vmem:[%s17 + $0xd0] sm:$0xff]
      %v1328 = vld [vmem:[%s17 + $0xd8] sm:$0xff]
      %v1329 = vld [vmem:[%s17 + $0xe0] sm:$0xff]
      %v1330 = vld [vmem:[%s17 + $0xe8] sm:$0xff]
      %v1331 = vld [vmem:[%s17 + $0xf0] sm:$0xff]
      %v1332 = vld [vmem:[%s17 + $0xf8] sm:$0xff]
      %1333 = vmatprep.subr.mxu0 0.0
      %1334 = vmatpush1.msra.mxu0 %v1316
      %1335 = vmatprep.subr.mxu0 0.0
      %1336 = vmatpush1.msra.mxu0 %v1315
      %1337 = vmatprep.subr.mxu0 0.0
      %1338 = vmatpush1.msra.mxu0 %v1314
      %1339 = vmatprep.subr.mxu0 0.0
      %1340 = vmatpush1.msra.mxu0 %v1313
      %1341 = vmatprep.subr.mxu0 0.0
      %1342 = vmatpush1.msra.mxu0 %v1312
      %1343 = vmatprep.subr.mxu0 0.0
      %1344 = vmatpush1.msra.mxu0 %v1311
      %1345 = vmatprep.subr.mxu0 0.0
      %1346 = vmatpush1.msra.mxu0 %v1310
      %1347 = vmatprep.subr.mxu0 0.0
      %1348 = vmatpush1.msra.mxu0 %v1309
      %1349 = vmatprep.subr.mxu0 0.0
      %1350 = vmatpush1.msra.mxu0 %v1308
      %1351 = vmatprep.subr.mxu0 0.0
      %1352 = vmatpush1.msra.mxu0 %v1307
      %1353 = vmatprep.subr.mxu0 0.0
      %1354 = vmatpush1.msra.mxu0 %v1306
      %1355 = vmatprep.subr.mxu0 0.0
      %1356 = vmatpush1.msra.mxu0 %v1305
      %1357 = vmatprep.subr.mxu0 0.0
      %1358 = vmatpush1.msra.mxu0 %v1304
      %1359 = vmatprep.subr.mxu0 0.0
      %1360 = vmatpush1.msra.mxu0 %v1303
      %1361 = vmatprep.subr.mxu0 0.0
      %1362 = vmatpush1.msra.mxu0 %v1302
      %1363 = vmatprep.subr.mxu0 0.0
      %1364 = vmatpush1.msra.mxu0 %v1301
      %1365 = vmatprep.subr.mxu0 0.0
      %1366 = vmatpush2.msra.mxu0 %v1332
      %1367 = vmatprep.subr.mxu0 0.0
      %1368 = vmatpush2.msra.mxu0 %v1331
      %1369 = vmatprep.subr.mxu0 0.0
      %1370 = vmatpush2.msra.mxu0 %v1330
      %1371 = vmatprep.subr.mxu0 0.0
      %1372 = vmatpush2.msra.mxu0 %v1329
      %1373 = vmatprep.subr.mxu0 0.0
      %1374 = vmatpush2.msra.mxu0 %v1328
      %1375 = vmatprep.subr.mxu0 0.0
      %1376 = vmatpush2.msra.mxu0 %v1327
      %1377 = vmatprep.subr.mxu0 0.0
      %1378 = vmatpush2.msra.mxu0 %v1326
      %1379 = vmatprep.subr.mxu0 0.0
      %1380 = vmatpush2.msra.mxu0 %v1325
      %1381 = vmatprep.subr.mxu0 0.0
      %1382 = vmatpush2.msra.mxu0 %v1324
      %1383 = vmatprep.subr.mxu0 0.0
      %1384 = vmatpush2.msra.mxu0 %v1323
      %1385 = vmatprep.subr.mxu0 0.0
      %1386 = vmatpush2.msra.mxu0 %v1322
      %1387 = vmatprep.subr.mxu0 0.0
      %1388 = vmatpush2.msra.mxu0 %v1321
      %1389 = vmatprep.subr.mxu0 0.0
      %1390 = vmatpush2.msra.mxu0 %v1320
      %1391 = vmatprep.subr.mxu0 0.0
      %1392 = vmatpush2.msra.mxu0 %v1319
      %1393 = vmatprep.subr.mxu0 0.0
      %1394 = vmatpush2.msra.mxu0 %v1318
      %1395 = vmatprep.subr.mxu0 0.0
      %1396 = vmatpush2.msra.mxu0 %v1317
      %1397 = vmatprep.mubr.f32.mxu0 %v1298
      %1398 = vmatmul.mubr.f32.gmra.mxu0 %v1297
      %v1399 = vpop.f32.mrf.mxu0
      %v1400 = vadd.f32 0.0, %v1399
      %v1401 = vpop.f32.mrf.mxu0
      %1402 = vmatprep.mubr.f32.mxu0 %v1300
      %1403 = vmatmul.mubr.f32.gmra.mxu0 %v1299
      %v1404 = vpop.f32.mrf.mxu0
      %v1405 = vadd.f32 0.0, %v1404
      %v1406 = vpop.f32.mrf.mxu0
      %1407 = vdwg.mxu0
      %v1408 = vld [vmem:[%s16] sm:$0xff]
      %v1409 = vld [vmem:[%s16 + $0x8] sm:$0x1]
      %1412 = vrot.lane.b32.xlu0 %v1400, 73
      %v1413 = vpop.permute.xlu0 %1412
      %1414 = vrot.lane.b32.xlu0 %v1405, 73
      %v1415 = vpop.permute.xlu0 %1414
      %1418 = vrot.lane.b32.xlu0 %v1400, 9
      %v1419 = vpop.permute.xlu0 %1418
      %1420 = vrot.lane.b32.xlu0 %v1405, 9
      %v1421 = vpop.permute.xlu0 %1420
      %vm1424 = vcmask 72704
      %v1425 = vsel %vm1424, %v1413, %v1419
      %v1426 = vsel %vm1424, %v1415, %v1421
      %v1427 = vlaneseq
      %v1428 = vshrl.u32 %v1427, 7
      %v1429 = vsub.s32 0, %v1428
      %v1430 = vrot.slane %v1408, %v1429
      %v1431 = vmul.f32 %v1425, %v1430
      %v1432 = vmul.f32 %v1426, %v1430
      %1433 = vrot.lane.b32.xlu0 %v1400, 72
      %v1434 = vpop.permute.xlu0 %1433
      %1435 = vrot.lane.b32.xlu0 %v1405, 72
      %v1436 = vpop.permute.xlu0 %1435
      %1439 = vrot.lane.b32.xlu0 %v1400, 8
      %v1440 = vpop.permute.xlu0 %1439
      %1441 = vrot.lane.b32.xlu0 %v1405, 8
      %v1442 = vpop.permute.xlu0 %1441
      %vm1445 = vcmask 64512
      %v1446 = vsel %vm1445, %v1434, %v1440
      %v1447 = vsel %vm1445, %v1436, %v1442
      %v1448 = vlaneseq
      %v1449 = vshrl.u32 %v1448, 7
      %v1450 = vsub.s32 1, %v1449
      %v1451 = vrot.slane %v1408, %v1450
      %v1452 = vmul.f32 %v1446, %v1451
      %v1453 = vmul.f32 %v1447, %v1451
      %1454 = vrot.lane.b32.xlu0 %v1400, 71
      %v1455 = vpop.permute.xlu0 %1454
      %1456 = vrot.lane.b32.xlu0 %v1405, 71
      %v1457 = vpop.permute.xlu0 %1456
      %1460 = vrot.lane.b32.xlu0 %v1400, 7
      %v1461 = vpop.permute.xlu0 %1460
      %1462 = vrot.lane.b32.xlu0 %v1405, 7
      %v1463 = vpop.permute.xlu0 %1462
      %vm1466 = vcmask 56320
      %v1467 = vsel %vm1466, %v1455, %v1461
      %v1468 = vsel %vm1466, %v1457, %v1463
      %v1469 = vlaneseq
      %v1470 = vshrl.u32 %v1469, 7
      %v1471 = vsub.s32 2, %v1470
      %v1472 = vrot.slane %v1408, %v1471
      %v1473 = vmul.f32 %v1467, %v1472
      %v1474 = vmul.f32 %v1468, %v1472
      %1475 = vrot.lane.b32.xlu0 %v1400, 65
      %v1476 = vpop.permute.xlu0 %1475
      %1477 = vrot.lane.b32.xlu0 %v1405, 65
      %v1478 = vpop.permute.xlu0 %1477
      %1481 = vrot.lane.b32.xlu0 %v1400, 1
      %v1482 = vpop.permute.xlu0 %1481
      %1483 = vrot.lane.b32.xlu0 %v1405, 1
      %v1484 = vpop.permute.xlu0 %1483
      %v1487 = vsel %vm729, %v1476, %v1482
      %v1488 = vsel %vm729, %v1478, %v1484
      %v1489 = vlaneseq
      %v1490 = vshrl.u32 %v1489, 7
      %v1491 = vsub.s32 3, %v1490
      %v1492 = vrot.slane %v1408, %v1491
      %v1493 = vmul.f32 %v1487, %v1492
      %v1494 = vmul.f32 %v1488, %v1492
      %1495 = vrot.lane.b32.xlu0 %v1400, 127
      %v1496 = vpop.permute.xlu0 %1495
      %1497 = vrot.lane.b32.xlu0 %v1405, 127
      %v1498 = vpop.permute.xlu0 %1497
      %1501 = vrot.lane.b32.xlu0 %v1400, 63
      %v1502 = vpop.permute.xlu0 %1501
      %1503 = vrot.lane.b32.xlu0 %v1405, 63
      %v1504 = vpop.permute.xlu0 %1503
      %vm1507 = vcmask 515072
      %v1508 = vsel %vm1507, %v1496, %v1502
      %v1509 = vsel %vm1507, %v1498, %v1504
      %v1510 = vlaneseq
      %v1511 = vshrl.u32 %v1510, 7
      %v1512 = vsub.s32 5, %v1511
      %v1513 = vrot.slane %v1408, %v1512
      %v1514 = vmul.f32 %v1508, %v1513
      %v1515 = vmul.f32 %v1509, %v1513
      %1516 = vrot.lane.b32.xlu0 %v1400, 121
      %v1517 = vpop.permute.xlu0 %1516
      %1518 = vrot.lane.b32.xlu0 %v1405, 121
      %v1519 = vpop.permute.xlu0 %1518
      %1522 = vrot.lane.b32.xlu0 %v1400, 57
      %v1523 = vpop.permute.xlu0 %1522
      %1524 = vrot.lane.b32.xlu0 %v1405, 57
      %v1525 = vpop.permute.xlu0 %1524
      %vm1528 = vcmask 465920
      %v1529 = vsel %vm1528, %v1517, %v1523
      %v1530 = vsel %vm1528, %v1519, %v1525
      %v1531 = vlaneseq
      %v1532 = vshrl.u32 %v1531, 7
      %v1533 = vsub.s32 6, %v1532
      %v1534 = vrot.slane %v1408, %v1533
      %v1535 = vmul.f32 %v1529, %v1534
      %v1536 = vmul.f32 %v1530, %v1534
      %1537 = vrot.lane.b32.xlu0 %v1400, 120
      %v1538 = vpop.permute.xlu0 %1537
      %1539 = vrot.lane.b32.xlu0 %v1405, 120
      %v1540 = vpop.permute.xlu0 %1539
      %1543 = vrot.lane.b32.xlu0 %v1400, 56
      %v1544 = vpop.permute.xlu0 %1543
      %1545 = vrot.lane.b32.xlu0 %v1405, 56
      %v1546 = vpop.permute.xlu0 %1545
      %vm1549 = vcmask 457728
      %v1550 = vsel %vm1549, %v1538, %v1544
      %v1551 = vsel %vm1549, %v1540, %v1546
      %v1552 = vlaneseq
      %v1553 = vshrl.u32 %v1552, 7
      %v1554 = vsub.s32 7, %v1553
      %v1555 = vrot.slane %v1408, %v1554
      %v1556 = vmul.f32 %v1550, %v1555
      %v1557 = vmul.f32 %v1551, %v1555
      %1558 = vrot.lane.b32.xlu0 %v1400, 119
      %v1559 = vpop.permute.xlu0 %1558
      %1560 = vrot.lane.b32.xlu0 %v1405, 119
      %v1561 = vpop.permute.xlu0 %1560
      %1564 = vrot.lane.b32.xlu0 %v1400, 55
      %v1565 = vpop.permute.xlu0 %1564
      %1566 = vrot.lane.b32.xlu0 %v1405, 55
      %v1567 = vpop.permute.xlu0 %1566
      %vm1570 = vcmask 449536
      %v1571 = vsel %vm1570, %v1559, %v1565
      %v1572 = vsel %vm1570, %v1561, %v1567
      %v1573 = vlaneseq
      %v1574 = vshrl.u32 %v1573, 7
      %v1575 = vsub.s32 0, %v1574
      %v1576 = vrot.slane %v1409, %v1575
      %v1577 = vmul.f32 %v1571, %v1576
      %v1578 = vmul.f32 %v1572, %v1576
      %v1579 = vld [vmem:[%s5] sm:$0xff]
      %v1580 = vld [vmem:[%s5 + $0x8] sm:$0xff]
      %v1581 = vld [vmem:[%s5 + $0x10] sm:$0xff]
      %v1582 = vld [vmem:[%s5 + $0x18] sm:$0xff]
      %v1583 = vld [vmem:[%s5 + $0x20] sm:$0xff]
      %v1584 = vld [vmem:[%s5 + $0x28] sm:$0xff]
      %v1585 = vld [vmem:[%s5 + $0x30] sm:$0xff]
      %v1586 = vld [vmem:[%s5 + $0x38] sm:$0xff]
      %v1587 = vld [vmem:[%s6] sm:$0xff]
      %v1588 = vld [vmem:[%s6 + $0x8] sm:$0xff]
      %v1589 = vld [vmem:[%s6 + $0x10] sm:$0xff]
      %v1590 = vld [vmem:[%s6 + $0x18] sm:$0xff]
      %1592 = vset.pattern.permute.xlu0 0
      %1593 = vperm.xlu0 %1592, %v1587
      %v1594 = vpop.permute.xlu0 %1593
      %1597 = vset.pattern.permute.xlu0 0
      %1598 = vperm.xlu0 %1597, %v1588
      %v1599 = vpop.permute.xlu0 %1598
      %1602 = vset.pattern.permute.xlu0 0
      %1603 = vperm.xlu0 %1602, %v1589
      %v1604 = vpop.permute.xlu0 %1603
      %1607 = vset.pattern.permute.xlu0 0
      %1608 = vperm.xlu0 %1607, %v1590
      %v1609 = vpop.permute.xlu0 %1608
      %v1612 = vsel %vm689, %v1580, 0
      %v1615 = vsel %vm689, %v1582, 0
      %v1618 = vsel %vm689, %v1584, 0
      %v1621 = vsel %vm689, %v1586, 0
      %1623 = vmatprep.subr.mxu0 0.0
      %1624 = vmatpush1.msra.mxu0 %v1557
      %1625 = vmatprep.subr.mxu0 0.0
      %1626 = vmatpush1.msra.mxu0 %v1556
      %1627 = vmatprep.subr.mxu0 0.0
      %1628 = vmatpush1.msra.mxu0 %v1536
      %1629 = vmatprep.subr.mxu0 0.0
      %1630 = vmatpush1.msra.mxu0 %v1535
      %1631 = vmatprep.subr.mxu0 0.0
      %1632 = vmatpush1.msra.mxu0 %v1515
      %1633 = vmatprep.subr.mxu0 0.0
      %1634 = vmatpush1.msra.mxu0 %v1514
      %1635 = vmatprep.subr.mxu0 0.0
      %1636 = vmatpush1.msra.mxu0 %v1405
      %1637 = vmatprep.subr.mxu0 0.0
      %1638 = vmatpush1.msra.mxu0 %v1400
      %1639 = vmatprep.subr.mxu0 0.0
      %1640 = vmatpush1.msra.mxu0 %v1494
      %1641 = vmatprep.subr.mxu0 0.0
      %1642 = vmatpush1.msra.mxu0 %v1493
      %1643 = vmatprep.subr.mxu0 0.0
      %1644 = vmatpush1.msra.mxu0 %v1474
      %1645 = vmatprep.subr.mxu0 0.0
      %1646 = vmatpush1.msra.mxu0 %v1473
      %1647 = vmatprep.subr.mxu0 0.0
      %1648 = vmatpush1.msra.mxu0 %v1453
      %1649 = vmatprep.subr.mxu0 0.0
      %1650 = vmatpush1.msra.mxu0 %v1452
      %1651 = vmatprep.subr.mxu0 0.0
      %1652 = vmatpush1.msra.mxu0 %v1432
      %1653 = vmatprep.subr.mxu0 0.0
      %1654 = vmatpush1.msra.mxu0 %v1431
      %1655 = vmatprep.subr.mxu0 0.0
      %1656 = vmatpush2.msra.mxu0 0.0
      %1657 = vmatprep.subr.mxu0 0.0
      %1658 = vmatpush2.msra.mxu0 0.0
      %1659 = vmatprep.subr.mxu0 0.0
      %1660 = vmatpush2.msra.mxu0 0.0
      %1661 = vmatprep.subr.mxu0 0.0
      %1662 = vmatpush2.msra.mxu0 0.0
      %1663 = vmatprep.subr.mxu0 0.0
      %1664 = vmatpush2.msra.mxu0 0.0
      %1665 = vmatprep.subr.mxu0 0.0
      %1666 = vmatpush2.msra.mxu0 0.0
      %1667 = vmatprep.subr.mxu0 0.0
      %1668 = vmatpush2.msra.mxu0 0.0
      %1669 = vmatprep.subr.mxu0 0.0
      %1670 = vmatpush2.msra.mxu0 0.0
      %1671 = vmatprep.subr.mxu0 0.0
      %1672 = vmatpush2.msra.mxu0 0.0
      %1673 = vmatprep.subr.mxu0 0.0
      %1674 = vmatpush2.msra.mxu0 0.0
      %1675 = vmatprep.subr.mxu0 0.0
      %1676 = vmatpush2.msra.mxu0 0.0
      %1677 = vmatprep.subr.mxu0 0.0
      %1678 = vmatpush2.msra.mxu0 0.0
      %1679 = vmatprep.subr.mxu0 0.0
      %1680 = vmatpush2.msra.mxu0 0.0
      %1681 = vmatprep.subr.mxu0 0.0
      %1682 = vmatpush2.msra.mxu0 0.0
      %1683 = vmatprep.subr.mxu0 0.0
      %1684 = vmatpush2.msra.mxu0 %v1578
      %1685 = vmatprep.subr.mxu0 0.0
      %1686 = vmatpush2.msra.mxu0 %v1577
      %1687 = vmatprep.mubr.f32.mxu0 %v1612
      %1688 = vmatmul.mubr.f32.gmra.mxu0 %v1579
      %v1689 = vpop.f32.mrf.mxu0
      %v1690 = vadd.f32 %v1594, %v1689
      %v1691 = vpop.f32.mrf.mxu0
      %1692 = vmatprep.mubr.f32.mxu0 %v1615
      %1693 = vmatmul.mubr.f32.gmra.mxu0 %v1581
      %v1694 = vpop.f32.mrf.mxu0
      %v1695 = vadd.f32 %v1599, %v1694
      %v1696 = vpop.f32.mrf.mxu0
      %1697 = vmatprep.mubr.f32.mxu0 %v1618
      %1698 = vmatmul.mubr.f32.gmra.mxu0 %v1583
      %v1699 = vpop.f32.mrf.mxu0
      %v1700 = vadd.f32 %v1604, %v1699
      %v1701 = vpop.f32.mrf.mxu0
      %1702 = vmatprep.mubr.f32.mxu0 %v1621
      %1703 = vmatmul.mubr.f32.gmra.mxu0 %v1585
      %v1704 = vpop.f32.mrf.mxu0
      %v1705 = vadd.f32 %v1609, %v1704
      %v1706 = vpop.f32.mrf.mxu0
      %1707 = vdwg.mxu0
      %v1708 = vmax.f32 %v1690, 0.0
      %v1709 = vmax.f32 %v1695, 0.0
      %v1710 = vmax.f32 %v1700, 0.0
      %v1711 = vmax.f32 %v1705, 0.0
      %1716 = vrot.lane.b32.xlu0 %v1708, 73
      %v1717 = vpop.permute.xlu0 %1716
      %1718 = vrot.lane.b32.xlu0 %v1709, 73
      %v1719 = vpop.permute.xlu0 %1718
      %1720 = vrot.lane.b32.xlu0 %v1710, 73
      %v1721 = vpop.permute.xlu0 %1720
      %1722 = vrot.lane.b32.xlu0 %v1711, 73
      %v1723 = vpop.permute.xlu0 %1722
      %1728 = vrot.lane.b32.xlu0 %v1708, 9
      %v1729 = vpop.permute.xlu0 %1728
      %1730 = vrot.lane.b32.xlu0 %v1709, 9
      %v1731 = vpop.permute.xlu0 %1730
      %1732 = vrot.lane.b32.xlu0 %v1710, 9
      %v1733 = vpop.permute.xlu0 %1732
      %1734 = vrot.lane.b32.xlu0 %v1711, 9
      %v1735 = vpop.permute.xlu0 %1734
      %v1740 = vsel %vm1424, %v1717, %v1729
      %v1741 = vsel %vm1424, %v1719, %v1731
      %v1742 = vsel %vm1424, %v1721, %v1733
      %v1743 = vsel %vm1424, %v1723, %v1735
      %v1744 = vmul.f32 %v1740, %v1430
      %v1745 = vmul.f32 %v1741, %v1430
      %v1746 = vmul.f32 %v1742, %v1430
      %v1747 = vmul.f32 %v1743, %v1430
      %1748 = vrot.lane.b32.xlu0 %v1708, 72
      %v1749 = vpop.permute.xlu0 %1748
      %1750 = vrot.lane.b32.xlu0 %v1709, 72
      %v1751 = vpop.permute.xlu0 %1750
      %1752 = vrot.lane.b32.xlu0 %v1710, 72
      %v1753 = vpop.permute.xlu0 %1752
      %1754 = vrot.lane.b32.xlu0 %v1711, 72
      %v1755 = vpop.permute.xlu0 %1754
      %1760 = vrot.lane.b32.xlu0 %v1708, 8
      %v1761 = vpop.permute.xlu0 %1760
      %1762 = vrot.lane.b32.xlu0 %v1709, 8
      %v1763 = vpop.permute.xlu0 %1762
      %1764 = vrot.lane.b32.xlu0 %v1710, 8
      %v1765 = vpop.permute.xlu0 %1764
      %1766 = vrot.lane.b32.xlu0 %v1711, 8
      %v1767 = vpop.permute.xlu0 %1766
      %v1772 = vsel %vm1445, %v1749, %v1761
      %v1773 = vsel %vm1445, %v1751, %v1763
      %v1774 = vsel %vm1445, %v1753, %v1765
      %v1775 = vsel %vm1445, %v1755, %v1767
      %v1776 = vmul.f32 %v1772, %v1451
      %v1777 = vmul.f32 %v1773, %v1451
      %v1778 = vmul.f32 %v1774, %v1451
      %v1779 = vmul.f32 %v1775, %v1451
      %1780 = vrot.lane.b32.xlu0 %v1708, 71
      %v1781 = vpop.permute.xlu0 %1780
      %1782 = vrot.lane.b32.xlu0 %v1709, 71
      %v1783 = vpop.permute.xlu0 %1782
      %1784 = vrot.lane.b32.xlu0 %v1710, 71
      %v1785 = vpop.permute.xlu0 %1784
      %1786 = vrot.lane.b32.xlu0 %v1711, 71
      %v1787 = vpop.permute.xlu0 %1786
      %1792 = vrot.lane.b32.xlu0 %v1708, 7
      %v1793 = vpop.permute.xlu0 %1792
      %1794 = vrot.lane.b32.xlu0 %v1709, 7
      %v1795 = vpop.permute.xlu0 %1794
      %1796 = vrot.lane.b32.xlu0 %v1710, 7
      %v1797 = vpop.permute.xlu0 %1796
      %1798 = vrot.lane.b32.xlu0 %v1711, 7
      %v1799 = vpop.permute.xlu0 %1798
      %v1804 = vsel %vm1466, %v1781, %v1793
      %v1805 = vsel %vm1466, %v1783, %v1795
      %v1806 = vsel %vm1466, %v1785, %v1797
      %v1807 = vsel %vm1466, %v1787, %v1799
      %v1808 = vmul.f32 %v1804, %v1472
      %v1809 = vmul.f32 %v1805, %v1472
      %v1810 = vmul.f32 %v1806, %v1472
      %v1811 = vmul.f32 %v1807, %v1472
      %1812 = vrot.lane.b32.xlu0 %v1708, 65
      %v1813 = vpop.permute.xlu0 %1812
      %1814 = vrot.lane.b32.xlu0 %v1709, 65
      %v1815 = vpop.permute.xlu0 %1814
      %1816 = vrot.lane.b32.xlu0 %v1710, 65
      %v1817 = vpop.permute.xlu0 %1816
      %1818 = vrot.lane.b32.xlu0 %v1711, 65
      %v1819 = vpop.permute.xlu0 %1818
      %1824 = vrot.lane.b32.xlu0 %v1708, 1
      %v1825 = vpop.permute.xlu0 %1824
      %1826 = vrot.lane.b32.xlu0 %v1709, 1
      %v1827 = vpop.permute.xlu0 %1826
      %1828 = vrot.lane.b32.xlu0 %v1710, 1
      %v1829 = vpop.permute.xlu0 %1828
      %1830 = vrot.lane.b32.xlu0 %v1711, 1
      %v1831 = vpop.permute.xlu0 %1830
      %v1836 = vsel %vm729, %v1813, %v1825
      %v1837 = vsel %vm729, %v1815, %v1827
      %v1838 = vsel %vm729, %v1817, %v1829
      %v1839 = vsel %vm729, %v1819, %v1831
      %v1840 = vmul.f32 %v1836, %v1492
      %v1841 = vmul.f32 %v1837, %v1492
      %v1842 = vmul.f32 %v1838, %v1492
      %v1843 = vmul.f32 %v1839, %v1492
      %1844 = vrot.lane.b32.xlu0 %v1708, 127
      %v1845 = vpop.permute.xlu0 %1844
      %1846 = vrot.lane.b32.xlu0 %v1709, 127
      %v1847 = vpop.permute.xlu0 %1846
      %1848 = vrot.lane.b32.xlu0 %v1710, 127
      %v1849 = vpop.permute.xlu0 %1848
      %1850 = vrot.lane.b32.xlu0 %v1711, 127
      %v1851 = vpop.permute.xlu0 %1850
      %1856 = vrot.lane.b32.xlu0 %v1708, 63
      %v1857 = vpop.permute.xlu0 %1856
      %1858 = vrot.lane.b32.xlu0 %v1709, 63
      %v1859 = vpop.permute.xlu0 %1858
      %1860 = vrot.lane.b32.xlu0 %v1710, 63
      %v1861 = vpop.permute.xlu0 %1860
      %1862 = vrot.lane.b32.xlu0 %v1711, 63
      %v1863 = vpop.permute.xlu0 %1862
      %v1868 = vsel %vm1507, %v1845, %v1857
      %v1869 = vsel %vm1507, %v1847, %v1859
      %v1870 = vsel %vm1507, %v1849, %v1861
      %v1871 = vsel %vm1507, %v1851, %v1863
      %v1872 = vmul.f32 %v1868, %v1513
      %v1873 = vmul.f32 %v1869, %v1513
      %v1874 = vmul.f32 %v1870, %v1513
      %v1875 = vmul.f32 %v1871, %v1513
      %1876 = vrot.lane.b32.xlu0 %v1708, 121
      %v1877 = vpop.permute.xlu0 %1876
      %1878 = vrot.lane.b32.xlu0 %v1709, 121
      %v1879 = vpop.permute.xlu0 %1878
      %1880 = vrot.lane.b32.xlu0 %v1710, 121
      %v1881 = vpop.permute.xlu0 %1880
      %1882 = vrot.lane.b32.xlu0 %v1711, 121
      %v1883 = vpop.permute.xlu0 %1882
      %1888 = vrot.lane.b32.xlu0 %v1708, 57
      %v1889 = vpop.permute.xlu0 %1888
      %1890 = vrot.lane.b32.xlu0 %v1709, 57
      %v1891 = vpop.permute.xlu0 %1890
      %1892 = vrot.lane.b32.xlu0 %v1710, 57
      %v1893 = vpop.permute.xlu0 %1892
      %1894 = vrot.lane.b32.xlu0 %v1711, 57
      %v1895 = vpop.permute.xlu0 %1894
      %v1900 = vsel %vm1528, %v1877, %v1889
      %v1901 = vsel %vm1528, %v1879, %v1891
      %v1902 = vsel %vm1528, %v1881, %v1893
      %v1903 = vsel %vm1528, %v1883, %v1895
      %v1904 = vmul.f32 %v1900, %v1534
      %v1905 = vmul.f32 %v1901, %v1534
      %v1906 = vmul.f32 %v1902, %v1534
      %v1907 = vmul.f32 %v1903, %v1534
      %1908 = vrot.lane.b32.xlu0 %v1708, 120
      %v1909 = vpop.permute.xlu0 %1908
      %1910 = vrot.lane.b32.xlu0 %v1709, 120
      %v1911 = vpop.permute.xlu0 %1910
      %1912 = vrot.lane.b32.xlu0 %v1710, 120
      %v1913 = vpop.permute.xlu0 %1912
      %1914 = vrot.lane.b32.xlu0 %v1711, 120
      %v1915 = vpop.permute.xlu0 %1914
      %1920 = vrot.lane.b32.xlu0 %v1708, 56
      %v1921 = vpop.permute.xlu0 %1920
      %1922 = vrot.lane.b32.xlu0 %v1709, 56
      %v1923 = vpop.permute.xlu0 %1922
      %1924 = vrot.lane.b32.xlu0 %v1710, 56
      %v1925 = vpop.permute.xlu0 %1924
      %1926 = vrot.lane.b32.xlu0 %v1711, 56
      %v1927 = vpop.permute.xlu0 %1926
      %v1932 = vsel %vm1549, %v1909, %v1921
      %v1933 = vsel %vm1549, %v1911, %v1923
      %v1934 = vsel %vm1549, %v1913, %v1925
      %v1935 = vsel %vm1549, %v1915, %v1927
      %v1936 = vmul.f32 %v1932, %v1555
      %v1937 = vmul.f32 %v1933, %v1555
      %v1938 = vmul.f32 %v1934, %v1555
      %v1939 = vmul.f32 %v1935, %v1555
      %1940 = vrot.lane.b32.xlu0 %v1708, 119
      %v1941 = vpop.permute.xlu0 %1940
      %1942 = vrot.lane.b32.xlu0 %v1709, 119
      %v1943 = vpop.permute.xlu0 %1942
      %1944 = vrot.lane.b32.xlu0 %v1710, 119
      %v1945 = vpop.permute.xlu0 %1944
      %1946 = vrot.lane.b32.xlu0 %v1711, 119
      %v1947 = vpop.permute.xlu0 %1946
      %1952 = vrot.lane.b32.xlu0 %v1708, 55
      %v1953 = vpop.permute.xlu0 %1952
      %1954 = vrot.lane.b32.xlu0 %v1709, 55
      %v1955 = vpop.permute.xlu0 %1954
      %1956 = vrot.lane.b32.xlu0 %v1710, 55
      %v1957 = vpop.permute.xlu0 %1956
      %1958 = vrot.lane.b32.xlu0 %v1711, 55
      %v1959 = vpop.permute.xlu0 %1958
      %v1964 = vsel %vm1570, %v1941, %v1953
      %v1965 = vsel %vm1570, %v1943, %v1955
      %v1966 = vsel %vm1570, %v1945, %v1957
      %v1967 = vsel %vm1570, %v1947, %v1959
      %v1968 = vmul.f32 %v1964, %v1576
      %v1969 = vmul.f32 %v1965, %v1576
      %v1970 = vmul.f32 %v1966, %v1576
      %v1971 = vmul.f32 %v1967, %v1576
      %v1972 = vld [vmem:[%s7] sm:$0xff]
      %v1973 = vld [vmem:[%s7 + $0x8] sm:$0xff]
      %v1974 = vld [vmem:[%s7 + $0x10] sm:$0xff]
      %v1975 = vld [vmem:[%s7 + $0x18] sm:$0xff]
      %v1976 = vld [vmem:[%s7 + $0x20] sm:$0xff]
      %v1977 = vld [vmem:[%s7 + $0x28] sm:$0xff]
      %v1978 = vld [vmem:[%s7 + $0x30] sm:$0xff]
      %v1979 = vld [vmem:[%s7 + $0x38] sm:$0xff]
      %v1980 = vld [vmem:[%s7 + $0x40] sm:$0xff]
      %v1981 = vld [vmem:[%s7 + $0x48] sm:$0xff]
      %v1982 = vld [vmem:[%s7 + $0x50] sm:$0xff]
      %v1983 = vld [vmem:[%s7 + $0x58] sm:$0xff]
      %v1984 = vld [vmem:[%s8] sm:$0xff]
      %v1985 = vld [vmem:[%s8 + $0x8] sm:$0xff]
      %v1986 = vld [vmem:[%s8 + $0x10] sm:$0xff]
      %v1987 = vld [vmem:[%s8 + $0x18] sm:$0xff]
      %1989 = vset.pattern.permute.xlu0 0
      %1990 = vperm.xlu0 %1989, %v1984
      %v1991 = vpop.permute.xlu0 %1990
      %1994 = vset.pattern.permute.xlu0 0
      %1995 = vperm.xlu0 %1994, %v1985
      %v1996 = vpop.permute.xlu0 %1995
      %1999 = vset.pattern.permute.xlu0 0
      %2000 = vperm.xlu0 %1999, %v1986
      %v2001 = vpop.permute.xlu0 %2000
      %2004 = vset.pattern.permute.xlu0 0
      %2005 = vperm.xlu0 %2004, %v1987
      %v2006 = vpop.permute.xlu0 %2005
      %vm2008 = vcmask 261120
      %v2010 = vsel %vm2008, %v1974, 0
      %v2013 = vsel %vm2008, %v1977, 0
      %v2016 = vsel %vm2008, %v1980, 0
      %v2019 = vsel %vm2008, %v1983, 0
      %2021 = vmatprep.subr.mxu0 0.0
      %2022 = vmatpush1.msra.mxu0 %v1843
      %2023 = vmatprep.subr.mxu0 0.0
      %2024 = vmatpush1.msra.mxu0 %v1842
      %2025 = vmatprep.subr.mxu0 0.0
      %2026 = vmatpush1.msra.mxu0 %v1841
      %2027 = vmatprep.subr.mxu0 0.0
      %2028 = vmatpush1.msra.mxu0 %v1840
      %2029 = vmatprep.subr.mxu0 0.0
      %2030 = vmatpush1.msra.mxu0 %v1811
      %2031 = vmatprep.subr.mxu0 0.0
      %2032 = vmatpush1.msra.mxu0 %v1810
      %2033 = vmatprep.subr.mxu0 0.0
      %2034 = vmatpush1.msra.mxu0 %v1809
      %2035 = vmatprep.subr.mxu0 0.0
      %2036 = vmatpush1.msra.mxu0 %v1808
      %2037 = vmatprep.subr.mxu0 0.0
      %2038 = vmatpush1.msra.mxu0 %v1779
      %2039 = vmatprep.subr.mxu0 0.0
      %2040 = vmatpush1.msra.mxu0 %v1778
      %2041 = vmatprep.subr.mxu0 0.0
      %2042 = vmatpush1.msra.mxu0 %v1777
      %2043 = vmatprep.subr.mxu0 0.0
      %2044 = vmatpush1.msra.mxu0 %v1776
      %2045 = vmatprep.subr.mxu0 0.0
      %2046 = vmatpush1.msra.mxu0 %v1747
      %2047 = vmatprep.subr.mxu0 0.0
      %2048 = vmatpush1.msra.mxu0 %v1746
      %2049 = vmatprep.subr.mxu0 0.0
      %2050 = vmatpush1.msra.mxu0 %v1745
      %2051 = vmatprep.subr.mxu0 0.0
      %2052 = vmatpush1.msra.mxu0 %v1744
      %2053 = vmatprep.subr.mxu0 0.0
      %2054 = vmatpush2.msra.mxu0 %v1939
      %2055 = vmatprep.subr.mxu0 0.0
      %2056 = vmatpush2.msra.mxu0 %v1938
      %2057 = vmatprep.subr.mxu0 0.0
      %2058 = vmatpush2.msra.mxu0 %v1937
      %2059 = vmatprep.subr.mxu0 0.0
      %2060 = vmatpush2.msra.mxu0 %v1936
      %2061 = vmatprep.subr.mxu0 0.0
      %2062 = vmatpush2.msra.mxu0 %v1907
      %2063 = vmatprep.subr.mxu0 0.0
      %2064 = vmatpush2.msra.mxu0 %v1906
      %2065 = vmatprep.subr.mxu0 0.0
      %2066 = vmatpush2.msra.mxu0 %v1905
      %2067 = vmatprep.subr.mxu0 0.0
      %2068 = vmatpush2.msra.mxu0 %v1904
      %2069 = vmatprep.subr.mxu0 0.0
      %2070 = vmatpush2.msra.mxu0 %v1875
      %2071 = vmatprep.subr.mxu0 0.0
      %2072 = vmatpush2.msra.mxu0 %v1874
      %2073 = vmatprep.subr.mxu0 0.0
      %2074 = vmatpush2.msra.mxu0 %v1873
      %2075 = vmatprep.subr.mxu0 0.0
      %2076 = vmatpush2.msra.mxu0 %v1872
      %2077 = vmatprep.subr.mxu0 0.0
      %2078 = vmatpush2.msra.mxu0 %v1711
      %2079 = vmatprep.subr.mxu0 0.0
      %2080 = vmatpush2.msra.mxu0 %v1710
      %2081 = vmatprep.subr.mxu0 0.0
      %2082 = vmatpush2.msra.mxu0 %v1709
      %2083 = vmatprep.subr.mxu0 0.0
      %2084 = vmatpush2.msra.mxu0 %v1708
      %2085 = vmatprep.mubr.f32.mxu0 %v1973
      %2086 = vmatmul.mubr.f32.gmra.mxu0 %v1972
      %v2087 = vpop.f32.mrf.mxu0
      %v2088 = vadd.f32 %v1991, %v2087
      %v2089 = vpop.f32.mrf.mxu0
      %2090 = vmatprep.mubr.f32.mxu0 %v1976
      %2091 = vmatmul.mubr.f32.gmra.mxu0 %v1975
      %v2092 = vpop.f32.mrf.mxu0
      %v2093 = vadd.f32 %v1996, %v2092
      %v2094 = vpop.f32.mrf.mxu0
      %2095 = vmatprep.mubr.f32.mxu0 %v1979
      %2096 = vmatmul.mubr.f32.gmra.mxu0 %v1978
      %v2097 = vpop.f32.mrf.mxu0
      %v2098 = vadd.f32 %v2001, %v2097
      %v2099 = vpop.f32.mrf.mxu0
      %2100 = vmatprep.mubr.f32.mxu0 %v1982
      %2101 = vmatmul.mubr.f32.gmra.mxu0 %v1981
      %v2102 = vpop.f32.mrf.mxu0
      %v2103 = vadd.f32 %v2006, %v2102
      %v2104 = vpop.f32.mrf.mxu0
      %2105 = vdwg.mxu0
      %2106 = vmatprep.subr.mxu0 0.0
      %2107 = vmatpush1.msra.mxu0 0.0
      %2108 = vmatprep.subr.mxu0 0.0
      %2109 = vmatpush1.msra.mxu0 0.0
      %2110 = vmatprep.subr.mxu0 0.0
      %2111 = vmatpush1.msra.mxu0 0.0
      %2112 = vmatprep.subr.mxu0 0.0
      %2113 = vmatpush1.msra.mxu0 0.0
      %2114 = vmatprep.subr.mxu0 0.0
      %2115 = vmatpush1.msra.mxu0 0.0
      %2116 = vmatprep.subr.mxu0 0.0
      %2117 = vmatpush1.msra.mxu0 0.0
      %2118 = vmatprep.subr.mxu0 0.0
      %2119 = vmatpush1.msra.mxu0 0.0
      %2120 = vmatprep.subr.mxu0 0.0
      %2121 = vmatpush1.msra.mxu0 0.0
      %2122 = vmatprep.subr.mxu0 0.0
      %2123 = vmatpush1.msra.mxu0 0.0
      %2124 = vmatprep.subr.mxu0 0.0
      %2125 = vmatpush1.msra.mxu0 0.0
      %2126 = vmatprep.subr.mxu0 0.0
      %2127 = vmatpush1.msra.mxu0 0.0
      %2128 = vmatprep.subr.mxu0 0.0
      %2129 = vmatpush1.msra.mxu0 0.0
      %2130 = vmatprep.subr.mxu0 0.0
      %2131 = vmatpush1.msra.mxu0 %v1971
      %2132 = vmatprep.subr.mxu0 0.0
      %2133 = vmatpush1.msra.mxu0 %v1970
      %2134 = vmatprep.subr.mxu0 0.0
      %2135 = vmatpush1.msra.mxu0 %v1969
      %2136 = vmatprep.subr.mxu0 0.0
      %2137 = vmatpush1.msra.mxu0 %v1968
      %2138 = vmatprep.subr.mxu0 0.0
      %2139 = vmatpush2.msra.mxu0 0.0
      %2140 = vmatprep.subr.mxu0 0.0
      %2141 = vmatpush2.msra.mxu0 0.0
      %2142 = vmatprep.subr.mxu0 0.0
      %2143 = vmatpush2.msra.mxu0 0.0
      %2144 = vmatprep.subr.mxu0 0.0
      %2145 = vmatpush2.msra.mxu0 0.0
      %2146 = vmatprep.subr.mxu0 0.0
      %2147 = vmatpush2.msra.mxu0 0.0
      %2148 = vmatprep.subr.mxu0 0.0
      %2149 = vmatpush2.msra.mxu0 0.0
      %2150 = vmatprep.subr.mxu0 0.0
      %2151 = vmatpush2.msra.mxu0 0.0
      %2152 = vmatprep.subr.mxu0 0.0
      %2153 = vmatpush2.msra.mxu0 0.0
      %2154 = vmatprep.subr.mxu0 0.0
      %2155 = vmatpush2.msra.mxu0 0.0
      %2156 = vmatprep.subr.mxu0 0.0
      %2157 = vmatpush2.msra.mxu0 0.0
      %2158 = vmatprep.subr.mxu0 0.0
      %2159 = vmatpush2.msra.mxu0 0.0
      %2160 = vmatprep.subr.mxu0 0.0
      %2161 = vmatpush2.msra.mxu0 0.0
      %2162 = vmatprep.subr.mxu0 0.0
      %2163 = vmatpush2.msra.mxu0 0.0
      %2164 = vmatprep.subr.mxu0 0.0
      %2165 = vmatpush2.msra.mxu0 0.0
      %2166 = vmatprep.subr.mxu0 0.0
      %2167 = vmatpush2.msra.mxu0 0.0
      %2168 = vmatprep.subr.mxu0 0.0
      %2169 = vmatpush2.msra.mxu0 0.0
      %2170 = vmatprep.mubr.f32.mxu0 0.0
      %2171 = vmatmul.mubr.f32.gmra.mxu0 %v2010
      %v2172 = vpop.f32.mrf.mxu0
      %v2173 = vadd.f32 %v2088, %v2172
      %v2174 = vpop.f32.mrf.mxu0
      %2175 = vmatprep.mubr.f32.mxu0 0.0
      %2176 = vmatmul.mubr.f32.gmra.mxu0 %v2013
      %v2177 = vpop.f32.mrf.mxu0
      %v2178 = vadd.f32 %v2093, %v2177
      %v2179 = vpop.f32.mrf.mxu0
      %2180 = vmatprep.mubr.f32.mxu0 0.0
      %2181 = vmatmul.mubr.f32.gmra.mxu0 %v2016
      %v2182 = vpop.f32.mrf.mxu0
      %v2183 = vadd.f32 %v2098, %v2182
      %v2184 = vpop.f32.mrf.mxu0
      %2185 = vmatprep.mubr.f32.mxu0 0.0
      %2186 = vmatmul.mubr.f32.gmra.mxu0 %v2019
      %v2187 = vpop.f32.mrf.mxu0
      %v2188 = vadd.f32 %v2103, %v2187
      %v2189 = vpop.f32.mrf.mxu0
      %2190 = vdwg.mxu0
      %v2191 = vmax.f32 %v2173, 0.0
      %v2192 = vmax.f32 %v2178, 0.0
      %v2193 = vmax.f32 %v2183, 0.0
      %v2194 = vmax.f32 %v2188, 0.0
      %2199 = vrot.lane.b32.xlu0 %v2191, 127
      %v2200 = vpop.permute.xlu0 %2199
      %2201 = vrot.lane.b32.xlu0 %v2192, 127
      %v2202 = vpop.permute.xlu0 %2201
      %2203 = vrot.lane.b32.xlu0 %v2193, 127
      %v2204 = vpop.permute.xlu0 %2203
      %2205 = vrot.lane.b32.xlu0 %v2194, 127
      %v2206 = vpop.permute.xlu0 %2205
      %2211 = vrot.lane.b32.xlu0 %v2191, 63
      %v2212 = vpop.permute.xlu0 %2211
      %2213 = vrot.lane.b32.xlu0 %v2192, 63
      %v2214 = vpop.permute.xlu0 %2213
      %2215 = vrot.lane.b32.xlu0 %v2193, 63
      %v2216 = vpop.permute.xlu0 %2215
      %2217 = vrot.lane.b32.xlu0 %v2194, 63
      %v2218 = vpop.permute.xlu0 %2217
      %v2223 = vsel %vm1507, %v2200, %v2212
      %v2224 = vsel %vm1507, %v2202, %v2214
      %v2225 = vsel %vm1507, %v2204, %v2216
      %v2226 = vsel %vm1507, %v2206, %v2218
      %v2227 = vmax.f32 %v2191, %v2223
      %v2228 = vmax.f32 %v2192, %v2224
      %v2229 = vmax.f32 %v2193, %v2225
      %v2230 = vmax.f32 %v2194, %v2226
      %2235 = vrot.lane.b32.xlu0 %v2227, 120
      %v2236 = vpop.permute.xlu0 %2235
      %2237 = vrot.lane.b32.xlu0 %v2228, 120
      %v2238 = vpop.permute.xlu0 %2237
      %2239 = vrot.lane.b32.xlu0 %v2229, 120
      %v2240 = vpop.permute.xlu0 %2239
      %2241 = vrot.lane.b32.xlu0 %v2230, 120
      %v2242 = vpop.permute.xlu0 %2241
      %2247 = vrot.lane.b32.xlu0 %v2227, 56
      %v2248 = vpop.permute.xlu0 %2247
      %2249 = vrot.lane.b32.xlu0 %v2228, 56
      %v2250 = vpop.permute.xlu0 %2249
      %2251 = vrot.lane.b32.xlu0 %v2229, 56
      %v2252 = vpop.permute.xlu0 %2251
      %2253 = vrot.lane.b32.xlu0 %v2230, 56
      %v2254 = vpop.permute.xlu0 %2253
      %v2259 = vsel %vm1549, %v2236, %v2248
      %v2260 = vsel %vm1549, %v2238, %v2250
      %v2261 = vsel %vm1549, %v2240, %v2252
      %v2262 = vsel %vm1549, %v2242, %v2254
      %v2263 = vmax.f32 %v2227, %v2259
      %v2264 = vmax.f32 %v2228, %v2260
      %v2265 = vmax.f32 %v2229, %v2261
      %v2266 = vmax.f32 %v2230, %v2262
      %v2267 = vld [vmem:[%s18] sm:$0xff]
      %v2268 = vld [vmem:[%s18 + $0x8] sm:$0xff]
      %v2269 = vld [vmem:[%s18 + $0x10] sm:$0xff]
      %v2270 = vld [vmem:[%s18 + $0x18] sm:$0xff]
      %v2271 = vld [vmem:[%s18 + $0x20] sm:$0xff]
      %v2272 = vld [vmem:[%s18 + $0x28] sm:$0xff]
      %v2273 = vld [vmem:[%s18 + $0x30] sm:$0xff]
      %v2274 = vld [vmem:[%s18 + $0x38] sm:$0xff]
      %vm2275 = vcmask 523264
      %v2277 = vsel %vm2275, %v2263, 0
      %v2280 = vsel %vm2275, %v2264, 0
      %v2283 = vsel %vm2275, %v2265, 0
      %v2286 = vsel %vm2275, %v2266, 0
      %2288 = vmatprep.subr.mxu0 0.0
      %2289 = vmatpush1.msra.mxu0 0.0
      %2290 = vmatprep.subr.mxu0 0.0
      %2291 = vmatpush1.msra.mxu0 0.0
      %2292 = vmatprep.subr.mxu0 0.0
      %2293 = vmatpush1.msra.mxu0 0.0
      %2294 = vmatprep.subr.mxu0 0.0
      %2295 = vmatpush1.msra.mxu0 0.0
      %2296 = vmatprep.subr.mxu0 0.0
      %2297 = vmatpush1.msra.mxu0 0.0
      %2298 = vmatprep.subr.mxu0 0.0
      %2299 = vmatpush1.msra.mxu0 0.0
      %2300 = vmatprep.subr.mxu0 0.0
      %2301 = vmatpush1.msra.mxu0 0.0
      %2302 = vmatprep.subr.mxu0 0.0
      %2303 = vmatpush1.msra.mxu0 0.0
      %2304 = vmatprep.subr.mxu0 0.0
      %2305 = vmatpush1.msra.mxu0 %v2274
      %2306 = vmatprep.subr.mxu0 0.0
      %2307 = vmatpush1.msra.mxu0 %v2273
      %2308 = vmatprep.subr.mxu0 0.0
      %2309 = vmatpush1.msra.mxu0 %v2272
      %2310 = vmatprep.subr.mxu0 0.0
      %2311 = vmatpush1.msra.mxu0 %v2271
      %2312 = vmatprep.subr.mxu0 0.0
      %2313 = vmatpush1.msra.mxu0 %v2270
      %2314 = vmatprep.subr.mxu0 0.0
      %2315 = vmatpush1.msra.mxu0 %v2269
      %2316 = vmatprep.subr.mxu0 0.0
      %2317 = vmatpush1.msra.mxu0 %v2268
      %2318 = vmatprep.subr.mxu0 0.0
      %2319 = vmatpush1.msra.mxu0 %v2267
      %2320 = vmatprep.subr.mxu0 0.0
      %2321 = vmatpush2.msra.mxu0 0.0
      %2322 = vmatprep.subr.mxu0 0.0
      %2323 = vmatpush2.msra.mxu0 0.0
      %2324 = vmatprep.subr.mxu0 0.0
      %2325 = vmatpush2.msra.mxu0 0.0
      %2326 = vmatprep.subr.mxu0 0.0
      %2327 = vmatpush2.msra.mxu0 0.0
      %2328 = vmatprep.subr.mxu0 0.0
      %2329 = vmatpush2.msra.mxu0 0.0
      %2330 = vmatprep.subr.mxu0 0.0
      %2331 = vmatpush2.msra.mxu0 0.0
      %2332 = vmatprep.subr.mxu0 0.0
      %2333 = vmatpush2.msra.mxu0 0.0
      %2334 = vmatprep.subr.mxu0 0.0
      %2335 = vmatpush2.msra.mxu0 0.0
      %2336 = vmatprep.subr.mxu0 0.0
      %2337 = vmatpush2.msra.mxu0 0.0
      %2338 = vmatprep.subr.mxu0 0.0
      %2339 = vmatpush2.msra.mxu0 0.0
      %2340 = vmatprep.subr.mxu0 0.0
      %2341 = vmatpush2.msra.mxu0 0.0
      %2342 = vmatprep.subr.mxu0 0.0
      %2343 = vmatpush2.msra.mxu0 0.0
      %2344 = vmatprep.subr.mxu0 0.0
      %2345 = vmatpush2.msra.mxu0 0.0
      %2346 = vmatprep.subr.mxu0 0.0
      %2347 = vmatpush2.msra.mxu0 0.0
      %2348 = vmatprep.subr.mxu0 0.0
      %2349 = vmatpush2.msra.mxu0 0.0
      %2350 = vmatprep.subr.mxu0 0.0
      %2351 = vmatpush2.msra.mxu0 0.0
      %2352 = vmatprep.mubr.f32.mxu0 0.0
      %2353 = vmatmul.mubr.f32.gmra.mxu0 %v2277
      %v2354 = vpop.f32.mrf.mxu0
      %v2355 = vadd.f32 0.0, %v2354
      %v2356 = vpop.f32.mrf.mxu0
      %2357 = vmatprep.mubr.f32.mxu0 0.0
      %2358 = vmatmul.mubr.f32.gmra.mxu0 %v2280
      %v2359 = vpop.f32.mrf.mxu0
      %v2360 = vadd.f32 0.0, %v2359
      %v2361 = vpop.f32.mrf.mxu0
      %2362 = vmatprep.mubr.f32.mxu0 0.0
      %2363 = vmatmul.mubr.f32.gmra.mxu0 %v2283
      %v2364 = vpop.f32.mrf.mxu0
      %v2365 = vadd.f32 0.0, %v2364
      %v2366 = vpop.f32.mrf.mxu0
      %2367 = vmatprep.mubr.f32.mxu0 0.0
      %2368 = vmatmul.mubr.f32.gmra.mxu0 %v2286
      %v2369 = vpop.f32.mrf.mxu0
      %v2370 = vadd.f32 0.0, %v2369
      %v2371 = vpop.f32.mrf.mxu0
      %2372 = vdwg.mxu0
      %v2373 = vld [vmem:[%s19] sm:$0xff]
      %v2374 = vld [vmem:[%s19 + $0x8] sm:$0xff]
      %v2376 = vsel %vm689, %v2355, 0
      %v2379 = vsel %vm689, %v2360, 0
      %v2382 = vsel %vm689, %v2365, 0
      %v2385 = vsel %vm689, %v2370, 0
      %2387 = vmatprep.subr.mxu0 0.0
      %2388 = vmatpush1.msra.mxu0 0.0
      %2389 = vmatprep.subr.mxu0 0.0
      %2390 = vmatpush1.msra.mxu0 0.0
      %2391 = vmatprep.subr.mxu0 0.0
      %2392 = vmatpush1.msra.mxu0 0.0
      %2393 = vmatprep.subr.mxu0 0.0
      %2394 = vmatpush1.msra.mxu0 0.0
      %2395 = vmatprep.subr.mxu0 0.0
      %2396 = vmatpush1.msra.mxu0 0.0
      %2397 = vmatprep.subr.mxu0 0.0
      %2398 = vmatpush1.msra.mxu0 0.0
      %2399 = vmatprep.subr.mxu0 0.0
      %2400 = vmatpush1.msra.mxu0 0.0
      %2401 = vmatprep.subr.mxu0 0.0
      %2402 = vmatpush1.msra.mxu0 0.0
      %2403 = vmatprep.subr.mxu0 0.0
      %2404 = vmatpush1.msra.mxu0 0.0
      %2405 = vmatprep.subr.mxu0 0.0
      %2406 = vmatpush1.msra.mxu0 0.0
      %2407 = vmatprep.subr.mxu0 0.0
      %2408 = vmatpush1.msra.mxu0 0.0
      %2409 = vmatprep.subr.mxu0 0.0
      %2410 = vmatpush1.msra.mxu0 0.0
      %2411 = vmatprep.subr.mxu0 0.0
      %2412 = vmatpush1.msra.mxu0 0.0
      %2413 = vmatprep.subr.mxu0 0.0
      %2414 = vmatpush1.msra.mxu0 0.0
      %2415 = vmatprep.subr.mxu0 0.0
      %2416 = vmatpush1.msra.mxu0 %v2374
      %2417 = vmatprep.subr.mxu0 0.0
      %2418 = vmatpush1.msra.mxu0 %v2373
      %2419 = vmatprep.subr.mxu0 0.0
      %2420 = vmatpush2.msra.mxu0 0.0
      %2421 = vmatprep.subr.mxu0 0.0
      %2422 = vmatpush2.msra.mxu0 0.0
      %2423 = vmatprep.subr.mxu0 0.0
      %2424 = vmatpush2.msra.mxu0 0.0
      %2425 = vmatprep.subr.mxu0 0.0
      %2426 = vmatpush2.msra.mxu0 0.0
      %2427 = vmatprep.subr.mxu0 0.0
      %2428 = vmatpush2.msra.mxu0 0.0
      %2429 = vmatprep.subr.mxu0 0.0
      %2430 = vmatpush2.msra.mxu0 0.0
      %2431 = vmatprep.subr.mxu0 0.0
      %2432 = vmatpush2.msra.mxu0 0.0
      %2433 = vmatprep.subr.mxu0 0.0
      %2434 = vmatpush2.msra.mxu0 0.0
      %2435 = vmatprep.subr.mxu0 0.0
      %2436 = vmatpush2.msra.mxu0 0.0
      %2437 = vmatprep.subr.mxu0 0.0
      %2438 = vmatpush2.msra.mxu0 0.0
      %2439 = vmatprep.subr.mxu0 0.0
      %2440 = vmatpush2.msra.mxu0 0.0
      %2441 = vmatprep.subr.mxu0 0.0
      %2442 = vmatpush2.msra.mxu0 0.0
      %2443 = vmatprep.subr.mxu0 0.0
      %2444 = vmatpush2.msra.mxu0 0.0
      %2445 = vmatprep.subr.mxu0 0.0
      %2446 = vmatpush2.msra.mxu0 0.0
      %2447 = vmatprep.subr.mxu0 0.0
      %2448 = vmatpush2.msra.mxu0 0.0
      %2449 = vmatprep.subr.mxu0 0.0
      %2450 = vmatpush2.msra.mxu0 0.0
      %2451 = vmatprep.mubr.f32.mxu0 0.0
      %2452 = vmatmul.mubr.f32.gmra.mxu0 %v2376
      %v2453 = vpop.f32.mrf.mxu0
      %v2454 = vadd.f32 0.0, %v2453
      %v2455 = vpop.f32.mrf.mxu0
      %2456 = vmatprep.mubr.f32.mxu0 0.0
      %2457 = vmatmul.mubr.f32.gmra.mxu0 %v2379
      %v2458 = vpop.f32.mrf.mxu0
      %v2459 = vadd.f32 0.0, %v2458
      %v2460 = vpop.f32.mrf.mxu0
      %2461 = vmatprep.mubr.f32.mxu0 0.0
      %2462 = vmatmul.mubr.f32.gmra.mxu0 %v2382
      %v2463 = vpop.f32.mrf.mxu0
      %v2464 = vadd.f32 0.0, %v2463
      %v2465 = vpop.f32.mrf.mxu0
      %2466 = vmatprep.mubr.f32.mxu0 0.0
      %2467 = vmatmul.mubr.f32.gmra.mxu0 %v2385
      %v2468 = vpop.f32.mrf.mxu0
      %v2469 = vadd.f32 0.0, %v2468
      %v2470 = vpop.f32.mrf.mxu0
      %2471 = vdwg.mxu0
      %2476 = vrot.lane.b32.xlu0 %v2454, 73
      %v2477 = vpop.permute.xlu0 %2476
      %2478 = vrot.lane.b32.xlu0 %v2459, 73
      %v2479 = vpop.permute.xlu0 %2478
      %2480 = vrot.lane.b32.xlu0 %v2464, 73
      %v2481 = vpop.permute.xlu0 %2480
      %2482 = vrot.lane.b32.xlu0 %v2469, 73
      %v2483 = vpop.permute.xlu0 %2482
      %2484 = vrot.lane.b32.xlu0 %v2191, 73
      %v2485 = vpop.permute.xlu0 %2484
      %2486 = vrot.lane.b32.xlu0 %v2192, 73
      %v2487 = vpop.permute.xlu0 %2486
      %2488 = vrot.lane.b32.xlu0 %v2193, 73
      %v2489 = vpop.permute.xlu0 %2488
      %2490 = vrot.lane.b32.xlu0 %v2194, 73
      %v2491 = vpop.permute.xlu0 %2490
      %2500 = vrot.lane.b32.xlu0 %v2454, 9
      %v2501 = vpop.permute.xlu0 %2500
      %2502 = vrot.lane.b32.xlu0 %v2459, 9
      %v2503 = vpop.permute.xlu0 %2502
      %2504 = vrot.lane.b32.xlu0 %v2464, 9
      %v2505 = vpop.permute.xlu0 %2504
      %2506 = vrot.lane.b32.xlu0 %v2469, 9
      %v2507 = vpop.permute.xlu0 %2506
      %2508 = vrot.lane.b32.xlu0 %v2191, 9
      %v2509 = vpop.permute.xlu0 %2508
      %2510 = vrot.lane.b32.xlu0 %v2192, 9
      %v2511 = vpop.permute.xlu0 %2510
      %2512 = vrot.lane.b32.xlu0 %v2193, 9
      %v2513 = vpop.permute.xlu0 %2512
      %2514 = vrot.lane.b32.xlu0 %v2194, 9
      %v2515 = vpop.permute.xlu0 %2514
      %v2524 = vsel %vm1424, %v2477, %v2501
      %v2525 = vsel %vm1424, %v2479, %v2503
      %v2526 = vsel %vm1424, %v2481, %v2505
      %v2527 = vsel %vm1424, %v2483, %v2507
      %v2528 = vsel %vm1424, %v2485, %v2509
      %v2529 = vsel %vm1424, %v2487, %v2511
      %v2530 = vsel %vm1424, %v2489, %v2513
      %v2531 = vsel %vm1424, %v2491, %v2515
      %v2532 = vmul.f32 %v2524, %v1430
      %v2533 = vmul.f32 %v2525, %v1430
      %v2534 = vmul.f32 %v2526, %v1430
      %v2535 = vmul.f32 %v2527, %v1430
      %v2536 = vmul.f32 %v2528, %v1430
      %v2537 = vmul.f32 %v2529, %v1430
      %v2538 = vmul.f32 %v2530, %v1430
      %v2539 = vmul.f32 %v2531, %v1430
      %2540 = vrot.lane.b32.xlu0 %v2454, 72
      %v2541 = vpop.permute.xlu0 %2540
      %2542 = vrot.lane.b32.xlu0 %v2459, 72
      %v2543 = vpop.permute.xlu0 %2542
      %2544 = vrot.lane.b32.xlu0 %v2464, 72
      %v2545 = vpop.permute.xlu0 %2544
      %2546 = vrot.lane.b32.xlu0 %v2469, 72
      %v2547 = vpop.permute.xlu0 %2546
      %2548 = vrot.lane.b32.xlu0 %v2191, 72
      %v2549 = vpop.permute.xlu0 %2548
      %2550 = vrot.lane.b32.xlu0 %v2192, 72
      %v2551 = vpop.permute.xlu0 %2550
      %2552 = vrot.lane.b32.xlu0 %v2193, 72
      %v2553 = vpop.permute.xlu0 %2552
      %2554 = vrot.lane.b32.xlu0 %v2194, 72
      %v2555 = vpop.permute.xlu0 %2554
      %2564 = vrot.lane.b32.xlu0 %v2454, 8
      %v2565 = vpop.permute.xlu0 %2564
      %2566 = vrot.lane.b32.xlu0 %v2459, 8
      %v2567 = vpop.permute.xlu0 %2566
      %2568 = vrot.lane.b32.xlu0 %v2464, 8
      %v2569 = vpop.permute.xlu0 %2568
      %2570 = vrot.lane.b32.xlu0 %v2469, 8
      %v2571 = vpop.permute.xlu0 %2570
      %2572 = vrot.lane.b32.xlu0 %v2191, 8
      %v2573 = vpop.permute.xlu0 %2572
      %2574 = vrot.lane.b32.xlu0 %v2192, 8
      %v2575 = vpop.permute.xlu0 %2574
      %2576 = vrot.lane.b32.xlu0 %v2193, 8
      %v2577 = vpop.permute.xlu0 %2576
      %2578 = vrot.lane.b32.xlu0 %v2194, 8
      %v2579 = vpop.permute.xlu0 %2578
      %v2588 = vsel %vm1445, %v2541, %v2565
      %v2589 = vsel %vm1445, %v2543, %v2567
      %v2590 = vsel %vm1445, %v2545, %v2569
      %v2591 = vsel %vm1445, %v2547, %v2571
      %v2592 = vsel %vm1445, %v2549, %v2573
      %v2593 = vsel %vm1445, %v2551, %v2575
      %v2594 = vsel %vm1445, %v2553, %v2577
      %v2595 = vsel %vm1445, %v2555, %v2579
      %v2596 = vmul.f32 %v2588, %v1451
      %v2597 = vmul.f32 %v2589, %v1451
      %v2598 = vmul.f32 %v2590, %v1451
      %v2599 = vmul.f32 %v2591, %v1451
      %v2600 = vmul.f32 %v2592, %v1451
      %v2601 = vmul.f32 %v2593, %v1451
      %v2602 = vmul.f32 %v2594, %v1451
      %v2603 = vmul.f32 %v2595, %v1451
      %2604 = vrot.lane.b32.xlu0 %v2454, 71
      %v2605 = vpop.permute.xlu0 %2604
      %2606 = vrot.lane.b32.xlu0 %v2459, 71
      %v2607 = vpop.permute.xlu0 %2606
      %2608 = vrot.lane.b32.xlu0 %v2464, 71
      %v2609 = vpop.permute.xlu0 %2608
      %2610 = vrot.lane.b32.xlu0 %v2469, 71
      %v2611 = vpop.permute.xlu0 %2610
      %2612 = vrot.lane.b32.xlu0 %v2191, 71
      %v2613 = vpop.permute.xlu0 %2612
      %2614 = vrot.lane.b32.xlu0 %v2192, 71
      %v2615 = vpop.permute.xlu0 %2614
      %2616 = vrot.lane.b32.xlu0 %v2193, 71
      %v2617 = vpop.permute.xlu0 %2616
      %2618 = vrot.lane.b32.xlu0 %v2194, 71
      %v2619 = vpop.permute.xlu0 %2618
      %2628 = vrot.lane.b32.xlu0 %v2454, 7
      %v2629 = vpop.permute.xlu0 %2628
      %2630 = vrot.lane.b32.xlu0 %v2459, 7
      %v2631 = vpop.permute.xlu0 %2630
      %2632 = vrot.lane.b32.xlu0 %v2464, 7
      %v2633 = vpop.permute.xlu0 %2632
      %2634 = vrot.lane.b32.xlu0 %v2469, 7
      %v2635 = vpop.permute.xlu0 %2634
      %2636 = vrot.lane.b32.xlu0 %v2191, 7
      %v2637 = vpop.permute.xlu0 %2636
      %2638 = vrot.lane.b32.xlu0 %v2192, 7
      %v2639 = vpop.permute.xlu0 %2638
      %2640 = vrot.lane.b32.xlu0 %v2193, 7
      %v2641 = vpop.permute.xlu0 %2640
      %2642 = vrot.lane.b32.xlu0 %v2194, 7
      %v2643 = vpop.permute.xlu0 %2642
      %v2652 = vsel %vm1466, %v2605, %v2629
      %v2653 = vsel %vm1466, %v2607, %v2631
      %v2654 = vsel %vm1466, %v2609, %v2633
      %v2655 = vsel %vm1466, %v2611, %v2635
      %v2656 = vsel %vm1466, %v2613, %v2637
      %v2657 = vsel %vm1466, %v2615, %v2639
      %v2658 = vsel %vm1466, %v2617, %v2641
      %v2659 = vsel %vm1466, %v2619, %v2643
      %v2660 = vmul.f32 %v2652, %v1472
      %v2661 = vmul.f32 %v2653, %v1472
      %v2662 = vmul.f32 %v2654, %v1472
      %v2663 = vmul.f32 %v2655, %v1472
      %v2664 = vmul.f32 %v2656, %v1472
      %v2665 = vmul.f32 %v2657, %v1472
      %v2666 = vmul.f32 %v2658, %v1472
      %v2667 = vmul.f32 %v2659, %v1472
      %2668 = vrot.lane.b32.xlu0 %v2454, 65
      %v2669 = vpop.permute.xlu0 %2668
      %2670 = vrot.lane.b32.xlu0 %v2459, 65
      %v2671 = vpop.permute.xlu0 %2670
      %2672 = vrot.lane.b32.xlu0 %v2464, 65
      %v2673 = vpop.permute.xlu0 %2672
      %2674 = vrot.lane.b32.xlu0 %v2469, 65
      %v2675 = vpop.permute.xlu0 %2674
      %2676 = vrot.lane.b32.xlu0 %v2191, 65
      %v2677 = vpop.permute.xlu0 %2676
      %2678 = vrot.lane.b32.xlu0 %v2192, 65
      %v2679 = vpop.permute.xlu0 %2678
      %2680 = vrot.lane.b32.xlu0 %v2193, 65
      %v2681 = vpop.permute.xlu0 %2680
      %2682 = vrot.lane.b32.xlu0 %v2194, 65
      %v2683 = vpop.permute.xlu0 %2682
      %2692 = vrot.lane.b32.xlu0 %v2454, 1
      %v2693 = vpop.permute.xlu0 %2692
      %2694 = vrot.lane.b32.xlu0 %v2459, 1
      %v2695 = vpop.permute.xlu0 %2694
      %2696 = vrot.lane.b32.xlu0 %v2464, 1
      %v2697 = vpop.permute.xlu0 %2696
      %2698 = vrot.lane.b32.xlu0 %v2469, 1
      %v2699 = vpop.permute.xlu0 %2698
      %2700 = vrot.lane.b32.xlu0 %v2191, 1
      %v2701 = vpop.permute.xlu0 %2700
      %2702 = vrot.lane.b32.xlu0 %v2192, 1
      %v2703 = vpop.permute.xlu0 %2702
      %2704 = vrot.lane.b32.xlu0 %v2193, 1
      %v2705 = vpop.permute.xlu0 %2704
      %2706 = vrot.lane.b32.xlu0 %v2194, 1
      %v2707 = vpop.permute.xlu0 %2706
      %v2716 = vsel %vm729, %v2669, %v2693
      %v2717 = vsel %vm729, %v2671, %v2695
      %v2718 = vsel %vm729, %v2673, %v2697
      %v2719 = vsel %vm729, %v2675, %v2699
      %v2720 = vsel %vm729, %v2677, %v2701
      %v2721 = vsel %vm729, %v2679, %v2703
      %v2722 = vsel %vm729, %v2681, %v2705
      %v2723 = vsel %vm729, %v2683, %v2707
      %v2724 = vmul.f32 %v2716, %v1492
      %v2725 = vmul.f32 %v2717, %v1492
      %v2726 = vmul.f32 %v2718, %v1492
      %v2727 = vmul.f32 %v2719, %v1492
      %v2728 = vmul.f32 %v2720, %v1492
      %v2729 = vmul.f32 %v2721, %v1492
      %v2730 = vmul.f32 %v2722, %v1492
      %v2731 = vmul.f32 %v2723, %v1492
      %2732 = vrot.lane.b32.xlu0 %v2454, 127
      %v2733 = vpop.permute.xlu0 %2732
      %2734 = vrot.lane.b32.xlu0 %v2459, 127
      %v2735 = vpop.permute.xlu0 %2734
      %2736 = vrot.lane.b32.xlu0 %v2464, 127
      %v2737 = vpop.permute.xlu0 %2736
      %2738 = vrot.lane.b32.xlu0 %v2469, 127
      %v2739 = vpop.permute.xlu0 %2738
      %2744 = vrot.lane.b32.xlu0 %v2454, 63
      %v2745 = vpop.permute.xlu0 %2744
      %2746 = vrot.lane.b32.xlu0 %v2459, 63
      %v2747 = vpop.permute.xlu0 %2746
      %2748 = vrot.lane.b32.xlu0 %v2464, 63
      %v2749 = vpop.permute.xlu0 %2748
      %2750 = vrot.lane.b32.xlu0 %v2469, 63
      %v2751 = vpop.permute.xlu0 %2750
      %v2756 = vsel %vm1507, %v2733, %v2745
      %v2757 = vsel %vm1507, %v2735, %v2747
      %v2758 = vsel %vm1507, %v2737, %v2749
      %v2759 = vsel %vm1507, %v2739, %v2751
      %v2760 = vmul.f32 %v2756, %v1513
      %v2761 = vmul.f32 %v2757, %v1513
      %v2762 = vmul.f32 %v2758, %v1513
      %v2763 = vmul.f32 %v2759, %v1513
      %v2764 = vmul.f32 %v2223, %v1513
      %v2765 = vmul.f32 %v2224, %v1513
      %v2766 = vmul.f32 %v2225, %v1513
      %v2767 = vmul.f32 %v2226, %v1513
      %2768 = vrot.lane.b32.xlu0 %v2454, 121
      %v2769 = vpop.permute.xlu0 %2768
      %2770 = vrot.lane.b32.xlu0 %v2459, 121
      %v2771 = vpop.permute.xlu0 %2770
      %2772 = vrot.lane.b32.xlu0 %v2464, 121
      %v2773 = vpop.permute.xlu0 %2772
      %2774 = vrot.lane.b32.xlu0 %v2469, 121
      %v2775 = vpop.permute.xlu0 %2774
      %2776 = vrot.lane.b32.xlu0 %v2191, 121
      %v2777 = vpop.permute.xlu0 %2776
      %2778 = vrot.lane.b32.xlu0 %v2192, 121
      %v2779 = vpop.permute.xlu0 %2778
      %2780 = vrot.lane.b32.xlu0 %v2193, 121
      %v2781 = vpop.permute.xlu0 %2780
      %2782 = vrot.lane.b32.xlu0 %v2194, 121
      %v2783 = vpop.permute.xlu0 %2782
      %2792 = vrot.lane.b32.xlu0 %v2454, 57
      %v2793 = vpop.permute.xlu0 %2792
      %2794 = vrot.lane.b32.xlu0 %v2459, 57
      %v2795 = vpop.permute.xlu0 %2794
      %2796 = vrot.lane.b32.xlu0 %v2464, 57
      %v2797 = vpop.permute.xlu0 %2796
      %2798 = vrot.lane.b32.xlu0 %v2469, 57
      %v2799 = vpop.permute.xlu0 %2798
      %2800 = vrot.lane.b32.xlu0 %v2191, 57
      %v2801 = vpop.permute.xlu0 %2800
      %2802 = vrot.lane.b32.xlu0 %v2192, 57
      %v2803 = vpop.permute.xlu0 %2802
      %2804 = vrot.lane.b32.xlu0 %v2193, 57
      %v2805 = vpop.permute.xlu0 %2804
      %2806 = vrot.lane.b32.xlu0 %v2194, 57
      %v2807 = vpop.permute.xlu0 %2806
      %v2816 = vsel %vm1528, %v2769, %v2793
      %v2817 = vsel %vm1528, %v2771, %v2795
      %v2818 = vsel %vm1528, %v2773, %v2797
      %v2819 = vsel %vm1528, %v2775, %v2799
      %v2820 = vsel %vm1528, %v2777, %v2801
      %v2821 = vsel %vm1528, %v2779, %v2803
      %v2822 = vsel %vm1528, %v2781, %v2805
      %v2823 = vsel %vm1528, %v2783, %v2807
      %v2824 = vmul.f32 %v2816, %v1534
      %v2825 = vmul.f32 %v2817, %v1534
      %v2826 = vmul.f32 %v2818, %v1534
      %v2827 = vmul.f32 %v2819, %v1534
      %v2828 = vmul.f32 %v2820, %v1534
      %v2829 = vmul.f32 %v2821, %v1534
      %v2830 = vmul.f32 %v2822, %v1534
      %v2831 = vmul.f32 %v2823, %v1534
      %2832 = vrot.lane.b32.xlu0 %v2454, 120
      %v2833 = vpop.permute.xlu0 %2832
      %2834 = vrot.lane.b32.xlu0 %v2459, 120
      %v2835 = vpop.permute.xlu0 %2834
      %2836 = vrot.lane.b32.xlu0 %v2464, 120
      %v2837 = vpop.permute.xlu0 %2836
      %2838 = vrot.lane.b32.xlu0 %v2469, 120
      %v2839 = vpop.permute.xlu0 %2838
      %2840 = vrot.lane.b32.xlu0 %v2191, 120
      %v2841 = vpop.permute.xlu0 %2840
      %2842 = vrot.lane.b32.xlu0 %v2192, 120
      %v2843 = vpop.permute.xlu0 %2842
      %2844 = vrot.lane.b32.xlu0 %v2193, 120
      %v2845 = vpop.permute.xlu0 %2844
      %2846 = vrot.lane.b32.xlu0 %v2194, 120
      %v2847 = vpop.permute.xlu0 %2846
      %2856 = vrot.lane.b32.xlu0 %v2454, 56
      %v2857 = vpop.permute.xlu0 %2856
      %2858 = vrot.lane.b32.xlu0 %v2459, 56
      %v2859 = vpop.permute.xlu0 %2858
      %2860 = vrot.lane.b32.xlu0 %v2464, 56
      %v2861 = vpop.permute.xlu0 %2860
      %2862 = vrot.lane.b32.xlu0 %v2469, 56
      %v2863 = vpop.permute.xlu0 %2862
      %2864 = vrot.lane.b32.xlu0 %v2191, 56
      %v2865 = vpop.permute.xlu0 %2864
      %2866 = vrot.lane.b32.xlu0 %v2192, 56
      %v2867 = vpop.permute.xlu0 %2866
      %2868 = vrot.lane.b32.xlu0 %v2193, 56
      %v2869 = vpop.permute.xlu0 %2868
      %2870 = vrot.lane.b32.xlu0 %v2194, 56
      %v2871 = vpop.permute.xlu0 %2870
      %v2880 = vsel %vm1549, %v2833, %v2857
      %v2881 = vsel %vm1549, %v2835, %v2859
      %v2882 = vsel %vm1549, %v2837, %v2861
      %v2883 = vsel %vm1549, %v2839, %v2863
      %v2884 = vsel %vm1549, %v2841, %v2865
      %v2885 = vsel %vm1549, %v2843, %v2867
      %v2886 = vsel %vm1549, %v2845, %v2869
      %v2887 = vsel %vm1549, %v2847, %v2871
      %v2888 = vmul.f32 %v2880, %v1555
      %v2889 = vmul.f32 %v2881, %v1555
      %v2890 = vmul.f32 %v2882, %v1555
      %v2891 = vmul.f32 %v2883, %v1555
      %v2892 = vmul.f32 %v2884, %v1555
      %v2893 = vmul.f32 %v2885, %v1555
      %v2894 = vmul.f32 %v2886, %v1555
      %v2895 = vmul.f32 %v2887, %v1555
      %2896 = vrot.lane.b32.xlu0 %v2454, 119
      %v2897 = vpop.permute.xlu0 %2896
      %2898 = vrot.lane.b32.xlu0 %v2459, 119
      %v2899 = vpop.permute.xlu0 %2898
      %2900 = vrot.lane.b32.xlu0 %v2464, 119
      %v2901 = vpop.permute.xlu0 %2900
      %2902 = vrot.lane.b32.xlu0 %v2469, 119
      %v2903 = vpop.permute.xlu0 %2902
      %2904 = vrot.lane.b32.xlu0 %v2191, 119
      %v2905 = vpop.permute.xlu0 %2904
      %2906 = vrot.lane.b32.xlu0 %v2192, 119
      %v2907 = vpop.permute.xlu0 %2906
      %2908 = vrot.lane.b32.xlu0 %v2193, 119
      %v2909 = vpop.permute.xlu0 %2908
      %2910 = vrot.lane.b32.xlu0 %v2194, 119
      %v2911 = vpop.permute.xlu0 %2910
      %2920 = vrot.lane.b32.xlu0 %v2454, 55
      %v2921 = vpop.permute.xlu0 %2920
      %2922 = vrot.lane.b32.xlu0 %v2459, 55
      %v2923 = vpop.permute.xlu0 %2922
      %2924 = vrot.lane.b32.xlu0 %v2464, 55
      %v2925 = vpop.permute.xlu0 %2924
      %2926 = vrot.lane.b32.xlu0 %v2469, 55
      %v2927 = vpop.permute.xlu0 %2926
      %2928 = vrot.lane.b32.xlu0 %v2191, 55
      %v2929 = vpop.permute.xlu0 %2928
      %2930 = vrot.lane.b32.xlu0 %v2192, 55
      %v2931 = vpop.permute.xlu0 %2930
      %2932 = vrot.lane.b32.xlu0 %v2193, 55
      %v2933 = vpop.permute.xlu0 %2932
      %2934 = vrot.lane.b32.xlu0 %v2194, 55
      %v2935 = vpop.permute.xlu0 %2934
      %v2944 = vsel %vm1570, %v2897, %v2921
      %v2945 = vsel %vm1570, %v2899, %v2923
      %v2946 = vsel %vm1570, %v2901, %v2925
      %v2947 = vsel %vm1570, %v2903, %v2927
      %v2948 = vsel %vm1570, %v2905, %v2929
      %v2949 = vsel %vm1570, %v2907, %v2931
      %v2950 = vsel %vm1570, %v2909, %v2933
      %v2951 = vsel %vm1570, %v2911, %v2935
      %v2952 = vmul.f32 %v2944, %v1576
      %v2953 = vmul.f32 %v2945, %v1576
      %v2954 = vmul.f32 %v2946, %v1576
      %v2955 = vmul.f32 %v2947, %v1576
      %v2956 = vmul.f32 %v2948, %v1576
      %v2957 = vmul.f32 %v2949, %v1576
      %v2958 = vmul.f32 %v2950, %v1576
      %v2959 = vmul.f32 %v2951, %v1576
      %v2960 = vld [vmem:[%s9] sm:$0xff]
      %v2961 = vld [vmem:[%s9 + $0x8] sm:$0xff]
      %v2962 = vld [vmem:[%s9 + $0x10] sm:$0xff]
      %v2963 = vld [vmem:[%s9 + $0x18] sm:$0xff]
      %v2964 = vld [vmem:[%s9 + $0x20] sm:$0xff]
      %v2965 = vld [vmem:[%s9 + $0x28] sm:$0xff]
      %v2966 = vld [vmem:[%s9 + $0x30] sm:$0xff]
      %v2967 = vld [vmem:[%s9 + $0x38] sm:$0xff]
      %v2968 = vld [vmem:[%s9 + $0x40] sm:$0xff]
      %v2969 = vld [vmem:[%s9 + $0x48] sm:$0xff]
      %v2970 = vld [vmem:[%s9 + $0x50] sm:$0xff]
      %v2971 = vld [vmem:[%s9 + $0x58] sm:$0xff]
      %v2972 = vld [vmem:[%s9 + $0x60] sm:$0xff]
      %v2973 = vld [vmem:[%s9 + $0x68] sm:$0xff]
      %v2974 = vld [vmem:[%s9 + $0x70] sm:$0xff]
      %v2975 = vld [vmem:[%s9 + $0x78] sm:$0xff]
      %v2976 = vld [vmem:[%s9 + $0x80] sm:$0xff]
      %v2977 = vld [vmem:[%s9 + $0x88] sm:$0xff]
      %v2978 = vld [vmem:[%s9 + $0x90] sm:$0xff]
      %v2979 = vld [vmem:[%s9 + $0x98] sm:$0xff]
      %v2980 = vld [vmem:[%s10] sm:$0xff]
      %v2981 = vld [vmem:[%s10 + $0x8] sm:$0xff]
      %v2982 = vld [vmem:[%s10 + $0x10] sm:$0xff]
      %v2983 = vld [vmem:[%s10 + $0x18] sm:$0xff]
      %2985 = vset.pattern.permute.xlu0 0
      %2986 = vperm.xlu0 %2985, %v2980
      %v2987 = vpop.permute.xlu0 %2986
      %2990 = vset.pattern.permute.xlu0 0
      %2991 = vperm.xlu0 %2990, %v2981
      %v2992 = vpop.permute.xlu0 %2991
      %2995 = vset.pattern.permute.xlu0 0
      %2996 = vperm.xlu0 %2995, %v2982
      %v2997 = vpop.permute.xlu0 %2996
      %3000 = vset.pattern.permute.xlu0 0
      %3001 = vperm.xlu0 %3000, %v2983
      %v3002 = vpop.permute.xlu0 %3001
      %v3005 = vsel %vm2275, %v2964, 0
      %v3008 = vsel %vm2275, %v2969, 0
      %v3011 = vsel %vm2275, %v2974, 0
      %v3014 = vsel %vm2275, %v2979, 0
      %3016 = vmatprep.subr.mxu0 0.0
      %3017 = vmatpush1.msra.mxu0 %v2603
      %3018 = vmatprep.subr.mxu0 0.0
      %3019 = vmatpush1.msra.mxu0 %v2602
      %3020 = vmatprep.subr.mxu0 0.0
      %3021 = vmatpush1.msra.mxu0 %v2601
      %3022 = vmatprep.subr.mxu0 0.0
      %3023 = vmatpush1.msra.mxu0 %v2600
      %3024 = vmatprep.subr.mxu0 0.0
      %3025 = vmatpush1.msra.mxu0 %v2599
      %3026 = vmatprep.subr.mxu0 0.0
      %3027 = vmatpush1.msra.mxu0 %v2598
      %3028 = vmatprep.subr.mxu0 0.0
      %3029 = vmatpush1.msra.mxu0 %v2597
      %3030 = vmatprep.subr.mxu0 0.0
      %3031 = vmatpush1.msra.mxu0 %v2596
      %3032 = vmatprep.subr.mxu0 0.0
      %3033 = vmatpush1.msra.mxu0 %v2539
      %3034 = vmatprep.subr.mxu0 0.0
      %3035 = vmatpush1.msra.mxu0 %v2538
      %3036 = vmatprep.subr.mxu0 0.0
      %3037 = vmatpush1.msra.mxu0 %v2537
      %3038 = vmatprep.subr.mxu0 0.0
      %3039 = vmatpush1.msra.mxu0 %v2536
      %3040 = vmatprep.subr.mxu0 0.0
      %3041 = vmatpush1.msra.mxu0 %v2535
      %3042 = vmatprep.subr.mxu0 0.0
      %3043 = vmatpush1.msra.mxu0 %v2534
      %3044 = vmatprep.subr.mxu0 0.0
      %3045 = vmatpush1.msra.mxu0 %v2533
      %3046 = vmatprep.subr.mxu0 0.0
      %3047 = vmatpush1.msra.mxu0 %v2532
      %3048 = vmatprep.subr.mxu0 0.0
      %3049 = vmatpush2.msra.mxu0 %v2731
      %3050 = vmatprep.subr.mxu0 0.0
      %3051 = vmatpush2.msra.mxu0 %v2730
      %3052 = vmatprep.subr.mxu0 0.0
      %3053 = vmatpush2.msra.mxu0 %v2729
      %3054 = vmatprep.subr.mxu0 0.0
      %3055 = vmatpush2.msra.mxu0 %v2728
      %3056 = vmatprep.subr.mxu0 0.0
      %3057 = vmatpush2.msra.mxu0 %v2727
      %3058 = vmatprep.subr.mxu0 0.0
      %3059 = vmatpush2.msra.mxu0 %v2726
      %3060 = vmatprep.subr.mxu0 0.0
      %3061 = vmatpush2.msra.mxu0 %v2725
      %3062 = vmatprep.subr.mxu0 0.0
      %3063 = vmatpush2.msra.mxu0 %v2724
      %3064 = vmatprep.subr.mxu0 0.0
      %3065 = vmatpush2.msra.mxu0 %v2667
      %3066 = vmatprep.subr.mxu0 0.0
      %3067 = vmatpush2.msra.mxu0 %v2666
      %3068 = vmatprep.subr.mxu0 0.0
      %3069 = vmatpush2.msra.mxu0 %v2665
      %3070 = vmatprep.subr.mxu0 0.0
      %3071 = vmatpush2.msra.mxu0 %v2664
      %3072 = vmatprep.subr.mxu0 0.0
      %3073 = vmatpush2.msra.mxu0 %v2663
      %3074 = vmatprep.subr.mxu0 0.0
      %3075 = vmatpush2.msra.mxu0 %v2662
      %3076 = vmatprep.subr.mxu0 0.0
      %3077 = vmatpush2.msra.mxu0 %v2661
      %3078 = vmatprep.subr.mxu0 0.0
      %3079 = vmatpush2.msra.mxu0 %v2660
      %3080 = vmatprep.mubr.f32.mxu0 %v2961
      %3081 = vmatmul.mubr.f32.gmra.mxu0 %v2960
      %v3082 = vpop.f32.mrf.mxu0
      %v3083 = vadd.f32 %v2987, %v3082
      %v3084 = vpop.f32.mrf.mxu0
      %3085 = vmatprep.mubr.f32.mxu0 %v2966
      %3086 = vmatmul.mubr.f32.gmra.mxu0 %v2965
      %v3087 = vpop.f32.mrf.mxu0
      %v3088 = vadd.f32 %v2992, %v3087
      %v3089 = vpop.f32.mrf.mxu0
      %3090 = vmatprep.mubr.f32.mxu0 %v2971
      %3091 = vmatmul.mubr.f32.gmra.mxu0 %v2970
      %v3092 = vpop.f32.mrf.mxu0
      %v3093 = vadd.f32 %v2997, %v3092
      %v3094 = vpop.f32.mrf.mxu0
      %3095 = vmatprep.mubr.f32.mxu0 %v2976
      %3096 = vmatmul.mubr.f32.gmra.mxu0 %v2975
      %v3097 = vpop.f32.mrf.mxu0
      %v3098 = vadd.f32 %v3002, %v3097
      %v3099 = vpop.f32.mrf.mxu0
      %3100 = vdwg.mxu0
      %3101 = vmatprep.subr.mxu0 0.0
      %3102 = vmatpush1.msra.mxu0 %v2767
      %3103 = vmatprep.subr.mxu0 0.0
      %3104 = vmatpush1.msra.mxu0 %v2766
      %3105 = vmatprep.subr.mxu0 0.0
      %3106 = vmatpush1.msra.mxu0 %v2765
      %3107 = vmatprep.subr.mxu0 0.0
      %3108 = vmatpush1.msra.mxu0 %v2764
      %3109 = vmatprep.subr.mxu0 0.0
      %3110 = vmatpush1.msra.mxu0 %v2763
      %3111 = vmatprep.subr.mxu0 0.0
      %3112 = vmatpush1.msra.mxu0 %v2762
      %3113 = vmatprep.subr.mxu0 0.0
      %3114 = vmatpush1.msra.mxu0 %v2761
      %3115 = vmatprep.subr.mxu0 0.0
      %3116 = vmatpush1.msra.mxu0 %v2760
      %3117 = vmatprep.subr.mxu0 0.0
      %3118 = vmatpush1.msra.mxu0 %v2194
      %3119 = vmatprep.subr.mxu0 0.0
      %3120 = vmatpush1.msra.mxu0 %v2193
      %3121 = vmatprep.subr.mxu0 0.0
      %3122 = vmatpush1.msra.mxu0 %v2192
      %3123 = vmatprep.subr.mxu0 0.0
      %3124 = vmatpush1.msra.mxu0 %v2191
      %3125 = vmatprep.subr.mxu0 0.0
      %3126 = vmatpush1.msra.mxu0 %v2469
      %3127 = vmatprep.subr.mxu0 0.0
      %3128 = vmatpush1.msra.mxu0 %v2464
      %3129 = vmatprep.subr.mxu0 0.0
      %3130 = vmatpush1.msra.mxu0 %v2459
      %3131 = vmatprep.subr.mxu0 0.0
      %3132 = vmatpush1.msra.mxu0 %v2454
      %3133 = vmatprep.subr.mxu0 0.0
      %3134 = vmatpush2.msra.mxu0 %v2895
      %3135 = vmatprep.subr.mxu0 0.0
      %3136 = vmatpush2.msra.mxu0 %v2894
      %3137 = vmatprep.subr.mxu0 0.0
      %3138 = vmatpush2.msra.mxu0 %v2893
      %3139 = vmatprep.subr.mxu0 0.0
      %3140 = vmatpush2.msra.mxu0 %v2892
      %3141 = vmatprep.subr.mxu0 0.0
      %3142 = vmatpush2.msra.mxu0 %v2891
      %3143 = vmatprep.subr.mxu0 0.0
      %3144 = vmatpush2.msra.mxu0 %v2890
      %3145 = vmatprep.subr.mxu0 0.0
      %3146 = vmatpush2.msra.mxu0 %v2889
      %3147 = vmatprep.subr.mxu0 0.0
      %3148 = vmatpush2.msra.mxu0 %v2888
      %3149 = vmatprep.subr.mxu0 0.0
      %3150 = vmatpush2.msra.mxu0 %v2831
      %3151 = vmatprep.subr.mxu0 0.0
      %3152 = vmatpush2.msra.mxu0 %v2830
      %3153 = vmatprep.subr.mxu0 0.0
      %3154 = vmatpush2.msra.mxu0 %v2829
      %3155 = vmatprep.subr.mxu0 0.0
      %3156 = vmatpush2.msra.mxu0 %v2828
      %3157 = vmatprep.subr.mxu0 0.0
      %3158 = vmatpush2.msra.mxu0 %v2827
      %3159 = vmatprep.subr.mxu0 0.0
      %3160 = vmatpush2.msra.mxu0 %v2826
      %3161 = vmatprep.subr.mxu0 0.0
      %3162 = vmatpush2.msra.mxu0 %v2825
      %3163 = vmatprep.subr.mxu0 0.0
      %3164 = vmatpush2.msra.mxu0 %v2824
      %3165 = vmatprep.mubr.f32.mxu0 %v2963
      %3166 = vmatmul.mubr.f32.gmra.mxu0 %v2962
      %v3167 = vpop.f32.mrf.mxu0
      %v3168 = vadd.f32 %v3083, %v3167
      %v3169 = vpop.f32.mrf.mxu0
      %3170 = vmatprep.mubr.f32.mxu0 %v2968
      %3171 = vmatmul.mubr.f32.gmra.mxu0 %v2967
      %v3172 = vpop.f32.mrf.mxu0
      %v3173 = vadd.f32 %v3088, %v3172
      %v3174 = vpop.f32.mrf.mxu0
      %3175 = vmatprep.mubr.f32.mxu0 %v2973
      %3176 = vmatmul.mubr.f32.gmra.mxu0 %v2972
      %v3177 = vpop.f32.mrf.mxu0
      %v3178 = vadd.f32 %v3093, %v3177
      %v3179 = vpop.f32.mrf.mxu0
      %3180 = vmatprep.mubr.f32.mxu0 %v2978
      %3181 = vmatmul.mubr.f32.gmra.mxu0 %v2977
      %v3182 = vpop.f32.mrf.mxu0
      %v3183 = vadd.f32 %v3098, %v3182
      %v3184 = vpop.f32.mrf.mxu0
      %3185 = vdwg.mxu0
      %3186 = vmatprep.subr.mxu0 0.0
      %3187 = vmatpush1.msra.mxu0 0.0
      %3188 = vmatprep.subr.mxu0 0.0
      %3189 = vmatpush1.msra.mxu0 0.0
      %3190 = vmatprep.subr.mxu0 0.0
      %3191 = vmatpush1.msra.mxu0 0.0
      %3192 = vmatprep.subr.mxu0 0.0
      %3193 = vmatpush1.msra.mxu0 0.0
      %3194 = vmatprep.subr.mxu0 0.0
      %3195 = vmatpush1.msra.mxu0 0.0
      %3196 = vmatprep.subr.mxu0 0.0
      %3197 = vmatpush1.msra.mxu0 0.0
      %3198 = vmatprep.subr.mxu0 0.0
      %3199 = vmatpush1.msra.mxu0 0.0
      %3200 = vmatprep.subr.mxu0 0.0
      %3201 = vmatpush1.msra.mxu0 0.0
      %3202 = vmatprep.subr.mxu0 0.0
      %3203 = vmatpush1.msra.mxu0 %v2959
      %3204 = vmatprep.subr.mxu0 0.0
      %3205 = vmatpush1.msra.mxu0 %v2958
      %3206 = vmatprep.subr.mxu0 0.0
      %3207 = vmatpush1.msra.mxu0 %v2957
      %3208 = vmatprep.subr.mxu0 0.0
      %3209 = vmatpush1.msra.mxu0 %v2956
      %3210 = vmatprep.subr.mxu0 0.0
      %3211 = vmatpush1.msra.mxu0 %v2955
      %3212 = vmatprep.subr.mxu0 0.0
      %3213 = vmatpush1.msra.mxu0 %v2954
      %3214 = vmatprep.subr.mxu0 0.0
      %3215 = vmatpush1.msra.mxu0 %v2953
      %3216 = vmatprep.subr.mxu0 0.0
      %3217 = vmatpush1.msra.mxu0 %v2952
      %3218 = vmatprep.subr.mxu0 0.0
      %3219 = vmatpush2.msra.mxu0 0.0
      %3220 = vmatprep.subr.mxu0 0.0
      %3221 = vmatpush2.msra.mxu0 0.0
      %3222 = vmatprep.subr.mxu0 0.0
      %3223 = vmatpush2.msra.mxu0 0.0
      %3224 = vmatprep.subr.mxu0 0.0
      %3225 = vmatpush2.msra.mxu0 0.0
      %3226 = vmatprep.subr.mxu0 0.0
      %3227 = vmatpush2.msra.mxu0 0.0
      %3228 = vmatprep.subr.mxu0 0.0
      %3229 = vmatpush2.msra.mxu0 0.0
      %3230 = vmatprep.subr.mxu0 0.0
      %3231 = vmatpush2.msra.mxu0 0.0
      %3232 = vmatprep.subr.mxu0 0.0
      %3233 = vmatpush2.msra.mxu0 0.0
      %3234 = vmatprep.subr.mxu0 0.0
      %3235 = vmatpush2.msra.mxu0 0.0
      %3236 = vmatprep.subr.mxu0 0.0
      %3237 = vmatpush2.msra.mxu0 0.0
      %3238 = vmatprep.subr.mxu0 0.0
      %3239 = vmatpush2.msra.mxu0 0.0
      %3240 = vmatprep.subr.mxu0 0.0
      %3241 = vmatpush2.msra.mxu0 0.0
      %3242 = vmatprep.subr.mxu0 0.0
      %3243 = vmatpush2.msra.mxu0 0.0
      %3244 = vmatprep.subr.mxu0 0.0
      %3245 = vmatpush2.msra.mxu0 0.0
      %3246 = vmatprep.subr.mxu0 0.0
      %3247 = vmatpush2.msra.mxu0 0.0
      %3248 = vmatprep.subr.mxu0 0.0
      %3249 = vmatpush2.msra.mxu0 0.0
      %3250 = vmatprep.mubr.f32.mxu0 0.0
      %3251 = vmatmul.mubr.f32.gmra.mxu0 %v3005
      %v3252 = vpop.f32.mrf.mxu0
      %v3253 = vadd.f32 %v3168, %v3252
      %v3254 = vpop.f32.mrf.mxu0
      %3255 = vmatprep.mubr.f32.mxu0 0.0
      %3256 = vmatmul.mubr.f32.gmra.mxu0 %v3008
      %v3257 = vpop.f32.mrf.mxu0
      %v3258 = vadd.f32 %v3173, %v3257
      %v3259 = vpop.f32.mrf.mxu0
      %3260 = vmatprep.mubr.f32.mxu0 0.0
      %3261 = vmatmul.mubr.f32.gmra.mxu0 %v3011
      %v3262 = vpop.f32.mrf.mxu0
      %v3263 = vadd.f32 %v3178, %v3262
      %v3264 = vpop.f32.mrf.mxu0
      %3265 = vmatprep.mubr.f32.mxu0 0.0
      %3266 = vmatmul.mubr.f32.gmra.mxu0 %v3014
      %v3267 = vpop.f32.mrf.mxu0
      %v3268 = vadd.f32 %v3183, %v3267
      %v3269 = vpop.f32.mrf.mxu0
      %3270 = vdwg.mxu0
      %v3271 = vmax.f32 %v3253, 0.0
      %v3272 = vmax.f32 %v3258, 0.0
      %v3273 = vmax.f32 %v3263, 0.0
      %v3274 = vmax.f32 %v3268, 0.0
      %v3275 = vld [vmem:[%s20] sm:$0xff]
      %v3276 = vld [vmem:[%s20 + $0x8] sm:$0xff]
      %v3277 = vld [vmem:[%s20 + $0x10] sm:$0xff]
      %v3278 = vld [vmem:[%s20 + $0x18] sm:$0xff]
      %v3279 = vld [vmem:[%s20 + $0x20] sm:$0xff]
      %v3280 = vld [vmem:[%s20 + $0x28] sm:$0xff]
      %v3281 = vld [vmem:[%s20 + $0x30] sm:$0xff]
      %v3282 = vld [vmem:[%s20 + $0x38] sm:$0xff]
      %v3283 = vld [vmem:[%s20 + $0x40] sm:$0xff]
      %v3284 = vld [vmem:[%s20 + $0x48] sm:$0xff]
      %v3285 = vld [vmem:[%s20 + $0x50] sm:$0xff]
      %v3286 = vld [vmem:[%s20 + $0x58] sm:$0xff]
      %v3287 = vld [vmem:[%s20 + $0x60] sm:$0xff]
      %v3288 = vld [vmem:[%s20 + $0x68] sm:$0xff]
      %v3289 = vld [vmem:[%s20 + $0x70] sm:$0xff]
      %v3290 = vld [vmem:[%s20 + $0x78] sm:$0xff]
      %v3292 = vsel %vm2275, %v3271, 0
      %v3295 = vsel %vm2275, %v3272, 0
      %v3298 = vsel %vm2275, %v3273, 0
      %v3301 = vsel %vm2275, %v3274, 0
      %3303 = vmatprep.subr.mxu0 0.0
      %3304 = vmatpush1.msra.mxu0 0.0
      %3305 = vmatprep.subr.mxu0 0.0
      %3306 = vmatpush1.msra.mxu0 0.0
      %3307 = vmatprep.subr.mxu0 0.0
      %3308 = vmatpush1.msra.mxu0 0.0
      %3309 = vmatprep.subr.mxu0 0.0
      %3310 = vmatpush1.msra.mxu0 0.0
      %3311 = vmatprep.subr.mxu0 0.0
      %3312 = vmatpush1.msra.mxu0 0.0
      %3313 = vmatprep.subr.mxu0 0.0
      %3314 = vmatpush1.msra.mxu0 0.0
      %3315 = vmatprep.subr.mxu0 0.0
      %3316 = vmatpush1.msra.mxu0 0.0
      %3317 = vmatprep.subr.mxu0 0.0
      %3318 = vmatpush1.msra.mxu0 0.0
      %3319 = vmatprep.subr.mxu0 %v3290
      %3320 = vmatpush1.msra.mxu0 %v3289
      %3321 = vmatprep.subr.mxu0 %v3288
      %3322 = vmatpush1.msra.mxu0 %v3287
      %3323 = vmatprep.subr.mxu0 %v3286
      %3324 = vmatpush1.msra.mxu0 %v3285
      %3325 = vmatprep.subr.mxu0 %v3284
      %3326 = vmatpush1.msra.mxu0 %v3283
      %3327 = vmatprep.subr.mxu0 %v3282
      %3328 = vmatpush1.msra.mxu0 %v3281
      %3329 = vmatprep.subr.mxu0 %v3280
      %3330 = vmatpush1.msra.mxu0 %v3279
      %3331 = vmatprep.subr.mxu0 %v3278
      %3332 = vmatpush1.msra.mxu0 %v3277
      %3333 = vmatprep.subr.mxu0 %v3276
      %3334 = vmatpush1.msra.mxu0 %v3275
      %3335 = vmatprep.subr.mxu0 0.0
      %3336 = vmatpush2.msra.mxu0 0.0
      %3337 = vmatprep.subr.mxu0 0.0
      %3338 = vmatpush2.msra.mxu0 0.0
      %3339 = vmatprep.subr.mxu0 0.0
      %3340 = vmatpush2.msra.mxu0 0.0
      %3341 = vmatprep.subr.mxu0 0.0
      %3342 = vmatpush2.msra.mxu0 0.0
      %3343 = vmatprep.subr.mxu0 0.0
      %3344 = vmatpush2.msra.mxu0 0.0
      %3345 = vmatprep.subr.mxu0 0.0
      %3346 = vmatpush2.msra.mxu0 0.0
      %3347 = vmatprep.subr.mxu0 0.0
      %3348 = vmatpush2.msra.mxu0 0.0
      %3349 = vmatprep.subr.mxu0 0.0
      %3350 = vmatpush2.msra.mxu0 0.0
      %3351 = vmatprep.subr.mxu0 0.0
      %3352 = vmatpush2.msra.mxu0 0.0
      %3353 = vmatprep.subr.mxu0 0.0
      %3354 = vmatpush2.msra.mxu0 0.0
      %3355 = vmatprep.subr.mxu0 0.0
      %3356 = vmatpush2.msra.mxu0 0.0
      %3357 = vmatprep.subr.mxu0 0.0
      %3358 = vmatpush2.msra.mxu0 0.0
      %3359 = vmatprep.subr.mxu0 0.0
      %3360 = vmatpush2.msra.mxu0 0.0
      %3361 = vmatprep.subr.mxu0 0.0
      %3362 = vmatpush2.msra.mxu0 0.0
      %3363 = vmatprep.subr.mxu0 0.0
      %3364 = vmatpush2.msra.mxu0 0.0
      %3365 = vmatprep.subr.mxu0 0.0
      %3366 = vmatpush2.msra.mxu0 0.0
      %3367 = vmatprep.mubr.f32.mxu0 0.0
      %3368 = vmatmul.mubr.f32.gmra.mxu0 %v3292
      %v3369 = vpop.f32.mrf.mxu0
      %v3370 = vadd.f32 0.0, %v3369
      %v3371 = vpop.f32.mrf.mxu0
      %v3372 = vadd.f32 0.0, %v3371
      %3373 = vmatprep.mubr.f32.mxu0 0.0
      %3374 = vmatmul.mubr.f32.gmra.mxu0 %v3295
      %v3375 = vpop.f32.mrf.mxu0
      %v3376 = vadd.f32 0.0, %v3375
      %v3377 = vpop.f32.mrf.mxu0
      %v3378 = vadd.f32 0.0, %v3377
      %3379 = vmatprep.mubr.f32.mxu0 0.0
      %3380 = vmatmul.mubr.f32.gmra.mxu0 %v3298
      %v3381 = vpop.f32.mrf.mxu0
      %v3382 = vadd.f32 0.0, %v3381
      %v3383 = vpop.f32.mrf.mxu0
      %v3384 = vadd.f32 0.0, %v3383
      %3385 = vmatprep.mubr.f32.mxu0 0.0
      %3386 = vmatmul.mubr.f32.gmra.mxu0 %v3301
      %v3387 = vpop.f32.mrf.mxu0
      %v3388 = vadd.f32 0.0, %v3387
      %v3389 = vpop.f32.mrf.mxu0
      %v3390 = vadd.f32 0.0, %v3389
      %3391 = vdwg.mxu0
      %3396 = vrot.lane.b32.xlu0 %v3372, 17
      %v3397 = vpop.permute.xlu0 %3396
      %3398 = vrot.lane.b32.xlu0 %v3378, 17
      %v3399 = vpop.permute.xlu0 %3398
      %3400 = vrot.lane.b32.xlu0 %v3384, 17
      %v3401 = vpop.permute.xlu0 %3400
      %3402 = vrot.lane.b32.xlu0 %v3390, 17
      %v3403 = vpop.permute.xlu0 %3402
      %3404 = vrot.lane.b32.xlu0 %v1246, 17
      %v3405 = vpop.permute.xlu0 %3404
      %3406 = vrot.lane.b32.xlu0 %v1248, 17
      %v3407 = vpop.permute.xlu0 %3406
      %3418 = vrot.lane.b32.xlu0 %v3370, 17
      %v3419 = vpop.permute.xlu0 %3418
      %3420 = vrot.lane.b32.xlu0 %v3376, 17
      %v3421 = vpop.permute.xlu0 %3420
      %3422 = vrot.lane.b32.xlu0 %v3382, 17
      %v3423 = vpop.permute.xlu0 %3422
      %3424 = vrot.lane.b32.xlu0 %v3388, 17
      %v3425 = vpop.permute.xlu0 %3424
      %3426 = vrot.lane.b32.xlu0 %v1245, 17
      %v3427 = vpop.permute.xlu0 %3426
      %3428 = vrot.lane.b32.xlu0 %v1247, 17
      %v3429 = vpop.permute.xlu0 %3428
      %v3430 = vsel %vm669, %v3419, %v3397
      %v3431 = vsel %vm669, %v3421, %v3399
      %v3432 = vsel %vm669, %v3423, %v3401
      %v3433 = vsel %vm669, %v3425, %v3403
      %v3434 = vsel %vm669, %v3427, %v3405
      %v3435 = vsel %vm669, %v3429, %v3407
      %v3448 = vsel %vm669, %v3397, %v3419
      %v3449 = vsel %vm669, %v3399, %v3421
      %v3450 = vsel %vm669, %v3401, %v3423
      %v3451 = vsel %vm669, %v3403, %v3425
      %v3452 = vsel %vm669, %v3405, %v3427
      %v3453 = vsel %vm669, %v3407, %v3429
      %v3454 = vmul.f32 %v3448, %v677
      %v3455 = vmul.f32 %v3430, %v681
      %v3456 = vmul.f32 %v3449, %v677
      %v3457 = vmul.f32 %v3431, %v681
      %v3458 = vmul.f32 %v3450, %v677
      %v3459 = vmul.f32 %v3432, %v681
      %v3460 = vmul.f32 %v3451, %v677
      %v3461 = vmul.f32 %v3433, %v681
      %v3462 = vmul.f32 %v3452, %v677
      %v3463 = vmul.f32 %v3434, %v681
      %v3464 = vmul.f32 %v3453, %v677
      %v3465 = vmul.f32 %v3435, %v681
      %3466 = vrot.lane.b32.xlu0 %v3372, 16
      %v3467 = vpop.permute.xlu0 %3466
      %3468 = vrot.lane.b32.xlu0 %v3378, 16
      %v3469 = vpop.permute.xlu0 %3468
      %3470 = vrot.lane.b32.xlu0 %v3384, 16
      %v3471 = vpop.permute.xlu0 %3470
      %3472 = vrot.lane.b32.xlu0 %v3390, 16
      %v3473 = vpop.permute.xlu0 %3472
      %3474 = vrot.lane.b32.xlu0 %v1246, 16
      %v3475 = vpop.permute.xlu0 %3474
      %3476 = vrot.lane.b32.xlu0 %v1248, 16
      %v3477 = vpop.permute.xlu0 %3476
      %3484 = vrot.lane.b32.xlu0 %v3370, 16
      %v3485 = vpop.permute.xlu0 %3484
      %3486 = vrot.lane.b32.xlu0 %v3376, 16
      %v3487 = vpop.permute.xlu0 %3486
      %3488 = vrot.lane.b32.xlu0 %v3382, 16
      %v3489 = vpop.permute.xlu0 %3488
      %3490 = vrot.lane.b32.xlu0 %v3388, 16
      %v3491 = vpop.permute.xlu0 %3490
      %3492 = vrot.lane.b32.xlu0 %v1245, 16
      %v3493 = vpop.permute.xlu0 %3492
      %3494 = vrot.lane.b32.xlu0 %v1247, 16
      %v3495 = vpop.permute.xlu0 %3494
      %v3496 = vsel %vm689, %v3485, %v3467
      %v3497 = vsel %vm689, %v3487, %v3469
      %v3498 = vsel %vm689, %v3489, %v3471
      %v3499 = vsel %vm689, %v3491, %v3473
      %v3500 = vsel %vm689, %v3493, %v3475
      %v3501 = vsel %vm689, %v3495, %v3477
      %v3514 = vsel %vm689, %v3467, %v3485
      %v3515 = vsel %vm689, %v3469, %v3487
      %v3516 = vsel %vm689, %v3471, %v3489
      %v3517 = vsel %vm689, %v3473, %v3491
      %v3518 = vsel %vm689, %v3475, %v3493
      %v3519 = vsel %vm689, %v3477, %v3495
      %v3520 = vmul.f32 %v3514, %v697
      %v3521 = vmul.f32 %v3496, %v701
      %v3522 = vmul.f32 %v3515, %v697
      %v3523 = vmul.f32 %v3497, %v701
      %v3524 = vmul.f32 %v3516, %v697
      %v3525 = vmul.f32 %v3498, %v701
      %v3526 = vmul.f32 %v3517, %v697
      %v3527 = vmul.f32 %v3499, %v701
      %v3528 = vmul.f32 %v3518, %v697
      %v3529 = vmul.f32 %v3500, %v701
      %v3530 = vmul.f32 %v3519, %v697
      %v3531 = vmul.f32 %v3501, %v701
      %3532 = vrot.lane.b32.xlu0 %v3372, 15
      %v3533 = vpop.permute.xlu0 %3532
      %3534 = vrot.lane.b32.xlu0 %v3378, 15
      %v3535 = vpop.permute.xlu0 %3534
      %3536 = vrot.lane.b32.xlu0 %v3384, 15
      %v3537 = vpop.permute.xlu0 %3536
      %3538 = vrot.lane.b32.xlu0 %v3390, 15
      %v3539 = vpop.permute.xlu0 %3538
      %3540 = vrot.lane.b32.xlu0 %v1246, 15
      %v3541 = vpop.permute.xlu0 %3540
      %3542 = vrot.lane.b32.xlu0 %v1248, 15
      %v3543 = vpop.permute.xlu0 %3542
      %3550 = vrot.lane.b32.xlu0 %v3370, 15
      %v3551 = vpop.permute.xlu0 %3550
      %3552 = vrot.lane.b32.xlu0 %v3376, 15
      %v3553 = vpop.permute.xlu0 %3552
      %3554 = vrot.lane.b32.xlu0 %v3382, 15
      %v3555 = vpop.permute.xlu0 %3554
      %3556 = vrot.lane.b32.xlu0 %v3388, 15
      %v3557 = vpop.permute.xlu0 %3556
      %3558 = vrot.lane.b32.xlu0 %v1245, 15
      %v3559 = vpop.permute.xlu0 %3558
      %3560 = vrot.lane.b32.xlu0 %v1247, 15
      %v3561 = vpop.permute.xlu0 %3560
      %v3562 = vsel %vm709, %v3551, %v3533
      %v3563 = vsel %vm709, %v3553, %v3535
      %v3564 = vsel %vm709, %v3555, %v3537
      %v3565 = vsel %vm709, %v3557, %v3539
      %v3566 = vsel %vm709, %v3559, %v3541
      %v3567 = vsel %vm709, %v3561, %v3543
      %v3580 = vsel %vm709, %v3533, %v3551
      %v3581 = vsel %vm709, %v3535, %v3553
      %v3582 = vsel %vm709, %v3537, %v3555
      %v3583 = vsel %vm709, %v3539, %v3557
      %v3584 = vsel %vm709, %v3541, %v3559
      %v3585 = vsel %vm709, %v3543, %v3561
      %v3586 = vmul.f32 %v3580, %v717
      %v3587 = vmul.f32 %v3562, %v721
      %v3588 = vmul.f32 %v3581, %v717
      %v3589 = vmul.f32 %v3563, %v721
      %v3590 = vmul.f32 %v3582, %v717
      %v3591 = vmul.f32 %v3564, %v721
      %v3592 = vmul.f32 %v3583, %v717
      %v3593 = vmul.f32 %v3565, %v721
      %v3594 = vmul.f32 %v3584, %v717
      %v3595 = vmul.f32 %v3566, %v721
      %v3596 = vmul.f32 %v3585, %v717
      %v3597 = vmul.f32 %v3567, %v721
      %3598 = vrot.lane.b32.xlu0 %v3372, 1
      %v3599 = vpop.permute.xlu0 %3598
      %3600 = vrot.lane.b32.xlu0 %v3378, 1
      %v3601 = vpop.permute.xlu0 %3600
      %3602 = vrot.lane.b32.xlu0 %v3384, 1
      %v3603 = vpop.permute.xlu0 %3602
      %3604 = vrot.lane.b32.xlu0 %v3390, 1
      %v3605 = vpop.permute.xlu0 %3604
      %3606 = vrot.lane.b32.xlu0 %v1246, 1
      %v3607 = vpop.permute.xlu0 %3606
      %3608 = vrot.lane.b32.xlu0 %v1248, 1
      %v3609 = vpop.permute.xlu0 %3608
      %3616 = vrot.lane.b32.xlu0 %v3370, 1
      %v3617 = vpop.permute.xlu0 %3616
      %3618 = vrot.lane.b32.xlu0 %v3376, 1
      %v3619 = vpop.permute.xlu0 %3618
      %3620 = vrot.lane.b32.xlu0 %v3382, 1
      %v3621 = vpop.permute.xlu0 %3620
      %3622 = vrot.lane.b32.xlu0 %v3388, 1
      %v3623 = vpop.permute.xlu0 %3622
      %3624 = vrot.lane.b32.xlu0 %v1245, 1
      %v3625 = vpop.permute.xlu0 %3624
      %3626 = vrot.lane.b32.xlu0 %v1247, 1
      %v3627 = vpop.permute.xlu0 %3626
      %v3628 = vsel %vm729, %v3617, %v3599
      %v3629 = vsel %vm729, %v3619, %v3601
      %v3630 = vsel %vm729, %v3621, %v3603
      %v3631 = vsel %vm729, %v3623, %v3605
      %v3632 = vsel %vm729, %v3625, %v3607
      %v3633 = vsel %vm729, %v3627, %v3609
      %v3646 = vsel %vm729, %v3599, %v3617
      %v3647 = vsel %vm729, %v3601, %v3619
      %v3648 = vsel %vm729, %v3603, %v3621
      %v3649 = vsel %vm729, %v3605, %v3623
      %v3650 = vsel %vm729, %v3607, %v3625
      %v3651 = vsel %vm729, %v3609, %v3627
      %v3652 = vmul.f32 %v3646, %v737
      %v3653 = vmul.f32 %v3628, %v741
      %v3654 = vmul.f32 %v3647, %v737
      %v3655 = vmul.f32 %v3629, %v741
      %v3656 = vmul.f32 %v3648, %v737
      %v3657 = vmul.f32 %v3630, %v741
      %v3658 = vmul.f32 %v3649, %v737
      %v3659 = vmul.f32 %v3631, %v741
      %v3660 = vmul.f32 %v3650, %v737
      %v3661 = vmul.f32 %v3632, %v741
      %v3662 = vmul.f32 %v3651, %v737
      %v3663 = vmul.f32 %v3633, %v741
      %3664 = vrot.lane.b32.xlu0 %v3370, 127
      %v3665 = vpop.permute.xlu0 %3664
      %3666 = vrot.lane.b32.xlu0 %v3372, 127
      %v3667 = vpop.permute.xlu0 %3666
      %3668 = vrot.lane.b32.xlu0 %v3376, 127
      %v3669 = vpop.permute.xlu0 %3668
      %3670 = vrot.lane.b32.xlu0 %v3378, 127
      %v3671 = vpop.permute.xlu0 %3670
      %3672 = vrot.lane.b32.xlu0 %v3382, 127
      %v3673 = vpop.permute.xlu0 %3672
      %3674 = vrot.lane.b32.xlu0 %v3384, 127
      %v3675 = vpop.permute.xlu0 %3674
      %3676 = vrot.lane.b32.xlu0 %v3388, 127
      %v3677 = vpop.permute.xlu0 %3676
      %3678 = vrot.lane.b32.xlu0 %v3390, 127
      %v3679 = vpop.permute.xlu0 %3678
      %v3680 = vsel %vm748, %v3665, %v3667
      %v3681 = vsel %vm748, %v3669, %v3671
      %v3682 = vsel %vm748, %v3673, %v3675
      %v3683 = vsel %vm748, %v3677, %v3679
      %v3696 = vsel %vm748, %v3667, %v3665
      %v3697 = vsel %vm748, %v3671, %v3669
      %v3698 = vsel %vm748, %v3675, %v3673
      %v3699 = vsel %vm748, %v3679, %v3677
      %v3700 = vmul.f32 %v3680, %v757
      %v3701 = vmul.f32 %v3696, %v761
      %v3702 = vmul.f32 %v3681, %v757
      %v3703 = vmul.f32 %v3697, %v761
      %v3704 = vmul.f32 %v3682, %v757
      %v3705 = vmul.f32 %v3698, %v761
      %v3706 = vmul.f32 %v3683, %v757
      %v3707 = vmul.f32 %v3699, %v761
      %v3708 = vmul.f32 %v1261, %v757
      %v3709 = vmul.f32 %v1269, %v761
      %v3710 = vmul.f32 %v1262, %v757
      %v3711 = vmul.f32 %v1270, %v761
      %3712 = vrot.lane.b32.xlu0 %v3370, 113
      %v3713 = vpop.permute.xlu0 %3712
      %3714 = vrot.lane.b32.xlu0 %v3372, 113
      %v3715 = vpop.permute.xlu0 %3714
      %3716 = vrot.lane.b32.xlu0 %v3376, 113
      %v3717 = vpop.permute.xlu0 %3716
      %3718 = vrot.lane.b32.xlu0 %v3378, 113
      %v3719 = vpop.permute.xlu0 %3718
      %3720 = vrot.lane.b32.xlu0 %v3382, 113
      %v3721 = vpop.permute.xlu0 %3720
      %3722 = vrot.lane.b32.xlu0 %v3384, 113
      %v3723 = vpop.permute.xlu0 %3722
      %3724 = vrot.lane.b32.xlu0 %v3388, 113
      %v3725 = vpop.permute.xlu0 %3724
      %3726 = vrot.lane.b32.xlu0 %v3390, 113
      %v3727 = vpop.permute.xlu0 %3726
      %3728 = vrot.lane.b32.xlu0 %v1245, 113
      %v3729 = vpop.permute.xlu0 %3728
      %3730 = vrot.lane.b32.xlu0 %v1246, 113
      %v3731 = vpop.permute.xlu0 %3730
      %3732 = vrot.lane.b32.xlu0 %v1247, 113
      %v3733 = vpop.permute.xlu0 %3732
      %3734 = vrot.lane.b32.xlu0 %v1248, 113
      %v3735 = vpop.permute.xlu0 %3734
      %v3736 = vsel %vm768, %v3713, %v3715
      %v3737 = vsel %vm768, %v3717, %v3719
      %v3738 = vsel %vm768, %v3721, %v3723
      %v3739 = vsel %vm768, %v3725, %v3727
      %v3740 = vsel %vm768, %v3729, %v3731
      %v3741 = vsel %vm768, %v3733, %v3735
      %v3760 = vsel %vm768, %v3715, %v3713
      %v3761 = vsel %vm768, %v3719, %v3717
      %v3762 = vsel %vm768, %v3723, %v3721
      %v3763 = vsel %vm768, %v3727, %v3725
      %v3764 = vsel %vm768, %v3731, %v3729
      %v3765 = vsel %vm768, %v3735, %v3733
      %v3766 = vmul.f32 %v3736, %v777
      %v3767 = vmul.f32 %v3760, %v781
      %v3768 = vmul.f32 %v3737, %v777
      %v3769 = vmul.f32 %v3761, %v781
      %v3770 = vmul.f32 %v3738, %v777
      %v3771 = vmul.f32 %v3762, %v781
      %v3772 = vmul.f32 %v3739, %v777
      %v3773 = vmul.f32 %v3763, %v781
      %v3774 = vmul.f32 %v3740, %v777
      %v3775 = vmul.f32 %v3764, %v781
      %v3776 = vmul.f32 %v3741, %v777
      %v3777 = vmul.f32 %v3765, %v781
      %3778 = vrot.lane.b32.xlu0 %v3370, 112
      %v3779 = vpop.permute.xlu0 %3778
      %3780 = vrot.lane.b32.xlu0 %v3372, 112
      %v3781 = vpop.permute.xlu0 %3780
      %3782 = vrot.lane.b32.xlu0 %v3376, 112
      %v3783 = vpop.permute.xlu0 %3782
      %3784 = vrot.lane.b32.xlu0 %v3378, 112
      %v3785 = vpop.permute.xlu0 %3784
      %3786 = vrot.lane.b32.xlu0 %v3382, 112
      %v3787 = vpop.permute.xlu0 %3786
      %3788 = vrot.lane.b32.xlu0 %v3384, 112
      %v3789 = vpop.permute.xlu0 %3788
      %3790 = vrot.lane.b32.xlu0 %v3388, 112
      %v3791 = vpop.permute.xlu0 %3790
      %3792 = vrot.lane.b32.xlu0 %v3390, 112
      %v3793 = vpop.permute.xlu0 %3792
      %3794 = vrot.lane.b32.xlu0 %v1245, 112
      %v3795 = vpop.permute.xlu0 %3794
      %3796 = vrot.lane.b32.xlu0 %v1246, 112
      %v3797 = vpop.permute.xlu0 %3796
      %3798 = vrot.lane.b32.xlu0 %v1247, 112
      %v3799 = vpop.permute.xlu0 %3798
      %3800 = vrot.lane.b32.xlu0 %v1248, 112
      %v3801 = vpop.permute.xlu0 %3800
      %v3802 = vsel %vm788, %v3779, %v3781
      %v3803 = vsel %vm788, %v3783, %v3785
      %v3804 = vsel %vm788, %v3787, %v3789
      %v3805 = vsel %vm788, %v3791, %v3793
      %v3806 = vsel %vm788, %v3795, %v3797
      %v3807 = vsel %vm788, %v3799, %v3801
      %v3826 = vsel %vm788, %v3781, %v3779
      %v3827 = vsel %vm788, %v3785, %v3783
      %v3828 = vsel %vm788, %v3789, %v3787
      %v3829 = vsel %vm788, %v3793, %v3791
      %v3830 = vsel %vm788, %v3797, %v3795
      %v3831 = vsel %vm788, %v3801, %v3799
      %v3832 = vmul.f32 %v3802, %v797
      %v3833 = vmul.f32 %v3826, %v801
      %v3834 = vmul.f32 %v3803, %v797
      %v3835 = vmul.f32 %v3827, %v801
      %v3836 = vmul.f32 %v3804, %v797
      %v3837 = vmul.f32 %v3828, %v801
      %v3838 = vmul.f32 %v3805, %v797
      %v3839 = vmul.f32 %v3829, %v801
      %v3840 = vmul.f32 %v3806, %v797
      %v3841 = vmul.f32 %v3830, %v801
      %v3842 = vmul.f32 %v3807, %v797
      %v3843 = vmul.f32 %v3831, %v801
      %3844 = vrot.lane.b32.xlu0 %v3370, 111
      %v3845 = vpop.permute.xlu0 %3844
      %3846 = vrot.lane.b32.xlu0 %v3372, 111
      %v3847 = vpop.permute.xlu0 %3846
      %3848 = vrot.lane.b32.xlu0 %v3376, 111
      %v3849 = vpop.permute.xlu0 %3848
      %3850 = vrot.lane.b32.xlu0 %v3378, 111
      %v3851 = vpop.permute.xlu0 %3850
      %3852 = vrot.lane.b32.xlu0 %v3382, 111
      %v3853 = vpop.permute.xlu0 %3852
      %3854 = vrot.lane.b32.xlu0 %v3384, 111
      %v3855 = vpop.permute.xlu0 %3854
      %3856 = vrot.lane.b32.xlu0 %v3388, 111
      %v3857 = vpop.permute.xlu0 %3856
      %3858 = vrot.lane.b32.xlu0 %v3390, 111
      %v3859 = vpop.permute.xlu0 %3858
      %3860 = vrot.lane.b32.xlu0 %v1245, 111
      %v3861 = vpop.permute.xlu0 %3860
      %3862 = vrot.lane.b32.xlu0 %v1246, 111
      %v3863 = vpop.permute.xlu0 %3862
      %3864 = vrot.lane.b32.xlu0 %v1247, 111
      %v3865 = vpop.permute.xlu0 %3864
      %3866 = vrot.lane.b32.xlu0 %v1248, 111
      %v3867 = vpop.permute.xlu0 %3866
      %v3868 = vsel %vm808, %v3845, %v3847
      %v3869 = vsel %vm808, %v3849, %v3851
      %v3870 = vsel %vm808, %v3853, %v3855
      %v3871 = vsel %vm808, %v3857, %v3859
      %v3872 = vsel %vm808, %v3861, %v3863
      %v3873 = vsel %vm808, %v3865, %v3867
      %v3892 = vsel %vm808, %v3847, %v3845
      %v3893 = vsel %vm808, %v3851, %v3849
      %v3894 = vsel %vm808, %v3855, %v3853
      %v3895 = vsel %vm808, %v3859, %v3857
      %v3896 = vsel %vm808, %v3863, %v3861
      %v3897 = vsel %vm808, %v3867, %v3865
      %v3898 = vmul.f32 %v3868, %v817
      %v3899 = vmul.f32 %v3892, %v821
      %v3900 = vmul.f32 %v3869, %v817
      %v3901 = vmul.f32 %v3893, %v821
      %v3902 = vmul.f32 %v3870, %v817
      %v3903 = vmul.f32 %v3894, %v821
      %v3904 = vmul.f32 %v3871, %v817
      %v3905 = vmul.f32 %v3895, %v821
      %v3906 = vmul.f32 %v3872, %v817
      %v3907 = vmul.f32 %v3896, %v821
      %v3908 = vmul.f32 %v3873, %v817
      %v3909 = vmul.f32 %v3897, %v821
      %v3910 = vld [vmem:[%s11] sm:$0xff]
      %v3911 = vld [vmem:[%s11 + $0x8] sm:$0xff]
      %v3912 = vld [vmem:[%s11 + $0x10] sm:$0xff]
      %v3913 = vld [vmem:[%s11 + $0x18] sm:$0xff]
      %v3914 = vld [vmem:[%s11 + $0x20] sm:$0xff]
      %v3915 = vld [vmem:[%s11 + $0x28] sm:$0xff]
      %v3916 = vld [vmem:[%s11 + $0x30] sm:$0xff]
      %v3917 = vld [vmem:[%s11 + $0x38] sm:$0xff]
      %v3918 = vld [vmem:[%s12] sm:$0xff]
      %v3919 = vld [vmem:[%s12 + $0x8] sm:$0xff]
      %3921 = vset.pattern.permute.xlu0 0
      %3922 = vperm.xlu0 %3921, %v3918
      %v3923 = vpop.permute.xlu0 %3922
      %3926 = vset.pattern.permute.xlu0 0
      %3927 = vperm.xlu0 %3926, %v3919
      %v3928 = vpop.permute.xlu0 %3927
      %vm3930 = vcmask 392192
      %v3932 = vsel %vm3930, %v3913, 0
      %v3935 = vsel %vm3930, %v3917, 0
      %3937 = vmatprep.subr.mxu0 %v3593
      %3938 = vmatpush1.msra.mxu0 %v3592
      %3939 = vmatprep.subr.mxu0 %v3591
      %3940 = vmatpush1.msra.mxu0 %v3590
      %3941 = vmatprep.subr.mxu0 %v3589
      %3942 = vmatpush1.msra.mxu0 %v3588
      %3943 = vmatprep.subr.mxu0 %v3587
      %3944 = vmatpush1.msra.mxu0 %v3586
      %3945 = vmatprep.subr.mxu0 %v3531
      %3946 = vmatpush1.msra.mxu0 %v3530
      %3947 = vmatprep.subr.mxu0 %v3529
      %3948 = vmatpush1.msra.mxu0 %v3528
      %3949 = vmatprep.subr.mxu0 %v3527
      %3950 = vmatpush1.msra.mxu0 %v3526
      %3951 = vmatprep.subr.mxu0 %v3525
      %3952 = vmatpush1.msra.mxu0 %v3524
      %3953 = vmatprep.subr.mxu0 %v3523
      %3954 = vmatpush1.msra.mxu0 %v3522
      %3955 = vmatprep.subr.mxu0 %v3521
      %3956 = vmatpush1.msra.mxu0 %v3520
      %3957 = vmatprep.subr.mxu0 %v3465
      %3958 = vmatpush1.msra.mxu0 %v3464
      %3959 = vmatprep.subr.mxu0 %v3463
      %3960 = vmatpush1.msra.mxu0 %v3462
      %3961 = vmatprep.subr.mxu0 %v3461
      %3962 = vmatpush1.msra.mxu0 %v3460
      %3963 = vmatprep.subr.mxu0 %v3459
      %3964 = vmatpush1.msra.mxu0 %v3458
      %3965 = vmatprep.subr.mxu0 %v3457
      %3966 = vmatpush1.msra.mxu0 %v3456
      %3967 = vmatprep.subr.mxu0 %v3455
      %3968 = vmatpush1.msra.mxu0 %v3454
      %3969 = vmatprep.subr.mxu0 %v3703
      %3970 = vmatpush2.msra.mxu0 %v3702
      %3971 = vmatprep.subr.mxu0 %v3701
      %3972 = vmatpush2.msra.mxu0 %v3700
      %3973 = vmatprep.subr.mxu0 %v1248
      %3974 = vmatpush2.msra.mxu0 %v1247
      %3975 = vmatprep.subr.mxu0 %v1246
      %3976 = vmatpush2.msra.mxu0 %v1245
      %3977 = vmatprep.subr.mxu0 %v3390
      %3978 = vmatpush2.msra.mxu0 %v3388
      %3979 = vmatprep.subr.mxu0 %v3384
      %3980 = vmatpush2.msra.mxu0 %v3382
      %3981 = vmatprep.subr.mxu0 %v3378
      %3982 = vmatpush2.msra.mxu0 %v3376
      %3983 = vmatprep.subr.mxu0 %v3372
      %3984 = vmatpush2.msra.mxu0 %v3370
      %3985 = vmatprep.subr.mxu0 %v3663
      %3986 = vmatpush2.msra.mxu0 %v3662
      %3987 = vmatprep.subr.mxu0 %v3661
      %3988 = vmatpush2.msra.mxu0 %v3660
      %3989 = vmatprep.subr.mxu0 %v3659
      %3990 = vmatpush2.msra.mxu0 %v3658
      %3991 = vmatprep.subr.mxu0 %v3657
      %3992 = vmatpush2.msra.mxu0 %v3656
      %3993 = vmatprep.subr.mxu0 %v3655
      %3994 = vmatpush2.msra.mxu0 %v3654
      %3995 = vmatprep.subr.mxu0 %v3653
      %3996 = vmatpush2.msra.mxu0 %v3652
      %3997 = vmatprep.subr.mxu0 %v3597
      %3998 = vmatpush2.msra.mxu0 %v3596
      %3999 = vmatprep.subr.mxu0 %v3595
      %4000 = vmatpush2.msra.mxu0 %v3594
      %4001 = vmatprep.mubr.f32.mxu0 %v3911
      %4002 = vmatmul.mubr.f32.gmra.mxu0 %v3910
      %v4003 = vpop.f32.mrf.mxu0
      %v4004 = vadd.f32 %v3923, %v4003
      %v4005 = vpop.f32.mrf.mxu0
      %v4006 = vadd.f32 %v3923, %v4005
      %4007 = vmatprep.mubr.f32.mxu0 %v3915
      %4008 = vmatmul.mubr.f32.gmra.mxu0 %v3914
      %v4009 = vpop.f32.mrf.mxu0
      %v4010 = vadd.f32 %v3928, %v4009
      %v4011 = vpop.f32.mrf.mxu0
      %v4012 = vadd.f32 %v3928, %v4011
      %4013 = vdwg.mxu0
      %4014 = vmatprep.subr.mxu0 %v3843
      %4015 = vmatpush1.msra.mxu0 %v3842
      %4016 = vmatprep.subr.mxu0 %v3841
      %4017 = vmatpush1.msra.mxu0 %v3840
      %4018 = vmatprep.subr.mxu0 %v3839
      %4019 = vmatpush1.msra.mxu0 %v3838
      %4020 = vmatprep.subr.mxu0 %v3837
      %4021 = vmatpush1.msra.mxu0 %v3836
      %4022 = vmatprep.subr.mxu0 %v3835
      %4023 = vmatpush1.msra.mxu0 %v3834
      %4024 = vmatprep.subr.mxu0 %v3833
      %4025 = vmatpush1.msra.mxu0 %v3832
      %4026 = vmatprep.subr.mxu0 %v3777
      %4027 = vmatpush1.msra.mxu0 %v3776
      %4028 = vmatprep.subr.mxu0 %v3775
      %4029 = vmatpush1.msra.mxu0 %v3774
      %4030 = vmatprep.subr.mxu0 %v3773
      %4031 = vmatpush1.msra.mxu0 %v3772
      %4032 = vmatprep.subr.mxu0 %v3771
      %4033 = vmatpush1.msra.mxu0 %v3770
      %4034 = vmatprep.subr.mxu0 %v3769
      %4035 = vmatpush1.msra.mxu0 %v3768
      %4036 = vmatprep.subr.mxu0 %v3767
      %4037 = vmatpush1.msra.mxu0 %v3766
      %4038 = vmatprep.subr.mxu0 %v3711
      %4039 = vmatpush1.msra.mxu0 %v3710
      %4040 = vmatprep.subr.mxu0 %v3709
      %4041 = vmatpush1.msra.mxu0 %v3708
      %4042 = vmatprep.subr.mxu0 %v3707
      %4043 = vmatpush1.msra.mxu0 %v3706
      %4044 = vmatprep.subr.mxu0 %v3705
      %4045 = vmatpush1.msra.mxu0 %v3704
      %4046 = vmatprep.subr.mxu0 0.0
      %4047 = vmatpush2.msra.mxu0 0.0
      %4048 = vmatprep.subr.mxu0 0.0
      %4049 = vmatpush2.msra.mxu0 0.0
      %4050 = vmatprep.subr.mxu0 0.0
      %4051 = vmatpush2.msra.mxu0 0.0
      %4052 = vmatprep.subr.mxu0 0.0
      %4053 = vmatpush2.msra.mxu0 0.0
      %4054 = vmatprep.subr.mxu0 0.0
      %4055 = vmatpush2.msra.mxu0 0.0
      %4056 = vmatprep.subr.mxu0 0.0
      %4057 = vmatpush2.msra.mxu0 0.0
      %4058 = vmatprep.subr.mxu0 0.0
      %4059 = vmatpush2.msra.mxu0 0.0
      %4060 = vmatprep.subr.mxu0 0.0
      %4061 = vmatpush2.msra.mxu0 0.0
      %4062 = vmatprep.subr.mxu0 0.0
      %4063 = vmatpush2.msra.mxu0 0.0
      %4064 = vmatprep.subr.mxu0 0.0
      %4065 = vmatpush2.msra.mxu0 0.0
      %4066 = vmatprep.subr.mxu0 %v3909
      %4067 = vmatpush2.msra.mxu0 %v3908
      %4068 = vmatprep.subr.mxu0 %v3907
      %4069 = vmatpush2.msra.mxu0 %v3906
      %4070 = vmatprep.subr.mxu0 %v3905
      %4071 = vmatpush2.msra.mxu0 %v3904
      %4072 = vmatprep.subr.mxu0 %v3903
      %4073 = vmatpush2.msra.mxu0 %v3902
      %4074 = vmatprep.subr.mxu0 %v3901
      %4075 = vmatpush2.msra.mxu0 %v3900
      %4076 = vmatprep.subr.mxu0 %v3899
      %4077 = vmatpush2.msra.mxu0 %v3898
      %4078 = vmatprep.mubr.f32.mxu0 %v3932
      %4079 = vmatmul.mubr.f32.gmra.mxu0 %v3912
      %v4080 = vpop.f32.mrf.mxu0
      %v4081 = vadd.f32 %v4004, %v4080
      %v4082 = vpop.f32.mrf.mxu0
      %v4083 = vadd.f32 %v4006, %v4082
      %4084 = vmatprep.mubr.f32.mxu0 %v3935
      %4085 = vmatmul.mubr.f32.gmra.mxu0 %v3916
      %v4086 = vpop.f32.mrf.mxu0
      %v4087 = vadd.f32 %v4010, %v4086
      %v4088 = vpop.f32.mrf.mxu0
      %v4089 = vadd.f32 %v4012, %v4088
      %4090 = vdwg.mxu0
      %v4091 = vmax.f32 %v4081, 0.0
      %v4092 = vmax.f32 %v4083, 0.0
      %v4093 = vmax.f32 %v4087, 0.0
      %v4094 = vmax.f32 %v4089, 0.0
      %v4095 = vld [vmem:[%s13] sm:$0x1f]
      %v4096 = vld [vmem:[%s14] sm:$0x1f]
      %4098 = vset.pattern.permute.xlu0 0
      %4099 = vperm.xlu0 %4098, %v4096
      %v4100 = vpop.permute.xlu0 %4099
      %v4103 = vsel %vm689, %v4095, 0
      %4105 = vmatprep.subr.mxu0 0.0
      %4106 = vmatpush1.msra.mxu0 0.0
      %4107 = vmatprep.subr.mxu0 0.0
      %4108 = vmatpush1.msra.mxu0 0.0
      %4109 = vmatprep.subr.mxu0 0.0
      %4110 = vmatpush1.msra.mxu0 0.0
      %4111 = vmatprep.subr.mxu0 0.0
      %4112 = vmatpush1.msra.mxu0 0.0
      %4113 = vmatprep.subr.mxu0 0.0
      %4114 = vmatpush1.msra.mxu0 0.0
      %4115 = vmatprep.subr.mxu0 0.0
      %4116 = vmatpush1.msra.mxu0 0.0
      %4117 = vmatprep.subr.mxu0 0.0
      %4118 = vmatpush1.msra.mxu0 0.0
      %4119 = vmatprep.subr.mxu0 0.0
      %4120 = vmatpush1.msra.mxu0 0.0
      %4121 = vmatprep.subr.mxu0 0.0
      %4122 = vmatpush1.msra.mxu0 0.0
      %4123 = vmatprep.subr.mxu0 0.0
      %4124 = vmatpush1.msra.mxu0 0.0
      %4125 = vmatprep.subr.mxu0 0.0
      %4126 = vmatpush1.msra.mxu0 0.0
      %4127 = vmatprep.subr.mxu0 0.0
      %4128 = vmatpush1.msra.mxu0 0.0
      %4129 = vmatprep.subr.mxu0 0.0
      %4130 = vmatpush1.msra.mxu0 0.0
      %4131 = vmatprep.subr.mxu0 0.0
      %4132 = vmatpush1.msra.mxu0 0.0
      %4133 = vmatprep.subr.mxu0 %v4094
      %4134 = vmatpush1.msra.mxu0 %v4093
      %4135 = vmatprep.subr.mxu0 %v4092
      %4136 = vmatpush1.msra.mxu0 %v4091
      %4137 = vmatprep.subr.mxu0 0.0
      %4138 = vmatpush2.msra.mxu0 0.0
      %4139 = vmatprep.subr.mxu0 0.0
      %4140 = vmatpush2.msra.mxu0 0.0
      %4141 = vmatprep.subr.mxu0 0.0
      %4142 = vmatpush2.msra.mxu0 0.0
      %4143 = vmatprep.subr.mxu0 0.0
      %4144 = vmatpush2.msra.mxu0 0.0
      %4145 = vmatprep.subr.mxu0 0.0
      %4146 = vmatpush2.msra.mxu0 0.0
      %4147 = vmatprep.subr.mxu0 0.0
      %4148 = vmatpush2.msra.mxu0 0.0
      %4149 = vmatprep.subr.mxu0 0.0
      %4150 = vmatpush2.msra.mxu0 0.0
      %4151 = vmatprep.subr.mxu0 0.0
      %4152 = vmatpush2.msra.mxu0 0.0
      %4153 = vmatprep.subr.mxu0 0.0
      %4154 = vmatpush2.msra.mxu0 0.0
      %4155 = vmatprep.subr.mxu0 0.0
      %4156 = vmatpush2.msra.mxu0 0.0
      %4157 = vmatprep.subr.mxu0 0.0
      %4158 = vmatpush2.msra.mxu0 0.0
      %4159 = vmatprep.subr.mxu0 0.0
      %4160 = vmatpush2.msra.mxu0 0.0
      %4161 = vmatprep.subr.mxu0 0.0
      %4162 = vmatpush2.msra.mxu0 0.0
      %4163 = vmatprep.subr.mxu0 0.0
      %4164 = vmatpush2.msra.mxu0 0.0
      %4165 = vmatprep.subr.mxu0 0.0
      %4166 = vmatpush2.msra.mxu0 0.0
      %4167 = vmatprep.subr.mxu0 0.0
      %4168 = vmatpush2.msra.mxu0 0.0
      %4169 = vmatprep.mubr.f32.mxu0 0.0
      %4170 = vmatmul.mubr.f32.gmra.mxu0 %v4103
      %v4171 = vpop.f32.mrf.mxu0
      %v4172 = vadd.f32 %v4100, %v4171
      %v4173 = vpop.f32.mrf.mxu0
      %v4174 = vadd.f32 %v4100, %v4173
      %4175 = vdwg.mxu0
      %4176 = vst [vmem:[%s656] sm:$0x1f] %v4172
      %4177 = vst [vmem:[%s656 + $0x8] sm:$0x1f] %v4174
      %p4178 = scmp.lt.s32.totalorder %s32, 1
      %s4179 = scalar_select %p4178, %s32, 1
      %s4180 = smul.addr %s4179, 2
      %s4181 = smul.addr %s4180, 8
      %s4182 = scalar_lea.vmem %s21, %s4181
      // Predicated region
      $region105: #{nnet_forward.1} parent=103 // pred_check
        %p4183 = pneg %p496
      $region106: #{nnet_forward.1} parent=103 // pred_check_branch
        %4185 = sbr.rel (%p4183) target = $region108
      $region107: #{nnet_forward.1} parent=103 // pred_region
        _
      $region108: #{nnet_forward.1} parent=103 // pred_fallthru
        _
    $region104: #{nnet_forward.1} parent=5 // pred_fallthru
      _
    %p4186 = scmp.le.s32.totalorder 2, %s27
    // Predicated region
    $region109: #{nnet_forward.1} parent=5 // pred_check
      %p4187 = pneg %p4186
    $region110: #{nnet_forward.1} parent=5 // pred_check_branch
      %4189 = sbr.rel (%p4187) target = $region112
    $region111: #{nnet_forward.1} parent=5 // pred_region
      %s4190 = ssub.s32 %s27, 2
      // Predicated region
      $region113: #{nnet_forward.1} parent=111 // pred_check
        %p4191 = pneg %p502
      $region114: #{nnet_forward.1} parent=111 // pred_check_branch
        %4193 = sbr.rel (%p4191) target = $region116
      $region115: #{nnet_forward.1} parent=111 // pred_region
        %p4194 = scmp.lt.s32.totalorder %s33, 1
        %s4195 = scalar_select %p4194, %s33, 1
        %s4196 = smul.addr %s4195, 2
        %s4197 = smul.addr %s4196, 8
        %s4198 = scalar_lea.vmem %s21, %s4197
      $region116: #{nnet_forward.1} parent=111 // pred_fallthru
        _
    $region112: #{nnet_forward.1} parent=5 // pred_fallthru
      _
  $region6: #{nnet_forward.1} parent=0 // loop_footer
    %s31 = sadd.s32 1, %s27
  $region7: #{nnet_forward.1} parent=0 // loop_footer_branch
    %26 = sbr.rel target = $region3
  $region8: #{nnet_forward.1} parent=0 // loop_exit
    _

</llo_original>
